<compile_context>
chip_gen: v6e
topology: v6e:2x2x1
jax: 0.10.0
libtpu: 0.0.40
codegen_flags: <defaults>
</compile_context>

<pallas_src>
import functools

import jax
import jax.numpy as jnp
import numpy as np
from jax import lax
from jax.experimental import pallas as pl
from jax.experimental.pallas import tpu as pltpu


# ----------------------------- Pallas kernel ------------------------------ #
def wavenet_classifier_kernel(x_ref, wcaus_ref, wdil_ref, wres_ref, bres_ref,
                              wskip_ref, bskip_ref, wdense_ref, wlin_ref,
                              blin_ref, out_ref, buf_ref,
                              *, k, dilations, skip_size, halo):
    """One batch element: full WaveNetClassifier forward in (C, T) layout."""
    C, T = x_ref.shape
    num_blocks = len(dilations)
    f32 = jnp.float32

    # Stage the input into the working buffer.  Columns [0, halo) are a zero
    # halo that provides the PyTorch 'same' left padding for every dilated
    # conv; activation data always starts at lane offset `halo` (multiple of
    # 128 -> every store below is lane-aligned).
    if halo > 0:
        buf_ref[:, :halo] = jnp.zeros((C, halo), buf_ref.dtype)
    buf_ref[:, halo:halo + T] = x_ref[...].astype(buf_ref.dtype)

    def causal_dilated_conv(w_taps, t_in, dilation):
        # w_taps: (k, C_out, C_in).  Current activation has length t_in and is
        # stored at buf[:, halo : halo + t_in].  Returns the causally
        # truncated 'same' conv output (length t_in - (k-1)*dilation).
        total = (k - 1) * dilation
        left = total // 2                      # PyTorch 'same' left pad
        t_out = t_in - total
        base = halo - left
        y = None
        for j in range(k):
            start = base + j * dilation        # static lane-axis slice
            xs = buf_ref[:, start:start + t_out].astype(f32)   # (C_in, t_out)
            term = jnp.dot(w_taps[j], xs, preferred_element_type=f32)
            y = term if y is None else y + term
        return y, t_out

    # --- WaveNet.causalConv (dilation=1, bias=False) ------------------------
    y, t_cur = causal_dilated_conv(wcaus_ref[...].astype(f32), T, 1)
    buf_ref[:, halo:halo + t_cur] = y.astype(buf_ref.dtype)

    # --- StackResidualBloc (all residual blocks fused, VMEM-resident) -------
    c_skip = wskip_ref.shape[1]
    skip_sum = jnp.zeros((c_skip, skip_size), f32)
    for l, dilation in enumerate(dilations):
        w_taps = wdil_ref[l].astype(f32)                       # (k, C, C)
        y, t_out = causal_dilated_conv(w_taps, t_cur, dilation)
        g = jnp.maximum(y, 0.0) * jnp.tanh(y)                  # relu(y)*tanh(y)
        # TODO(synk): nn.Dropout treated as identity (inference semantics).

        # residual 1x1 conv + bias + residual add of x[..., -t_out:]
        res = jnp.dot(wres_ref[l].astype(f32), g, preferred_element_type=f32)
        res = res + bres_ref[l].astype(f32)                    # (C,1) bcast
        res = res + buf_ref[:, halo + t_cur - t_out:halo + t_cur].astype(f32)

        # skip branch: only the last skip_size samples are ever used
        g_tail = g[:, t_out - skip_size:]
        skip = jnp.dot(wskip_ref[l].astype(f32), g_tail,
                       preferred_element_type=f32)
        skip_sum = skip_sum + skip + bskip_ref[l].astype(f32)

        buf_ref[:, halo:halo + t_out] = res.astype(buf_ref.dtype)
        t_cur = t_out

    # --- DenseLayer: mean over blocks, then (relu -> shared 1x1 conv) x 2 ---
    xd = skip_sum * (1.0 / num_blocks)
    wd = wdense_ref[...].astype(f32)
    for _ in range(2):
        xd = jnp.maximum(xd, 0.0)
        xd = jnp.dot(wd, xd, preferred_element_type=f32)

    # --- Linear (over channels) + Softmax over the time axis (lanes) --------
    logits = jnp.dot(wlin_ref[...].astype(f32), xd, preferred_element_type=f32)
    logits = logits + blin_ref[...].astype(f32)                # (O,1) bcast
    m = jnp.max(logits, axis=-1, keepdims=True)
    e = jnp.exp(logits - m)
    p = e / jnp.sum(e, axis=-1, keepdims=True)
    out_ref[...] = p.astype(out_ref.dtype)


# ------------------------------- wrapper ----------------------------------- #
def wavenet_classifier_pallas(x_ncw, params, kernel_size, dilations, skip_size):
    """x_ncw: (B, C, T) like PyTorch. Returns softmax output (B, O, skip_size)."""
    B, C, T = x_ncw.shape
    k = kernel_size
    NB = len(dilations)
    Cs = params['wskip'].shape[1]
    O = params['wlin'].shape[0]

    # Guard the correctness concerns: skip_size must be positive and no larger
    # than the shortest block output length.
    t = T - (k - 1)
    min_t = t
    for d in dilations:
        t -= (k - 1) * d
        min_t = min(min_t, t)
    assert 0 < skip_size <= min_t, (
        f"skip_size={skip_size} must be in [1, {min_t}] for T={T}, "
        f"kernel_size={k}, dilations={dilations}")

    l_max = max([((k - 1) * d) // 2 for d in dilations] + [(k - 1) // 2])
    halo = ((l_max + 127) // 128) * 128 if l_max > 0 else 0

    kern = functools.partial(wavenet_classifier_kernel, k=k,
                             dilations=tuple(dilations),
                             skip_size=skip_size, halo=halo)

    out = pl.pallas_call(
        kern,
        out_shape=jax.ShapeDtypeStruct((B, O, skip_size), x_ncw.dtype),
        grid=(B,),
        in_specs=[
            pl.BlockSpec((None, C, T), lambda b: (b, 0, 0)),       # x (NCW)
            pl.BlockSpec((k, C, C), lambda b: (0, 0, 0)),          # causal conv W
            pl.BlockSpec((NB, k, C, C), lambda b: (0, 0, 0, 0)),   # dilated W
            pl.BlockSpec((NB, C, C), lambda b: (0, 0, 0)),         # res 1x1 W
            pl.BlockSpec((NB, C, 1), lambda b: (0, 0, 0)),         # res bias
            pl.BlockSpec((NB, Cs, C), lambda b: (0, 0, 0)),        # skip 1x1 W
            pl.BlockSpec((NB, Cs, 1), lambda b: (0, 0, 0)),        # skip bias
            pl.BlockSpec((C, C), lambda b: (0, 0)),                # dense 1x1 W
            pl.BlockSpec((O, C), lambda b: (0, 0)),                # linear W
            pl.BlockSpec((O, 1), lambda b: (0, 0)),                # linear bias
        ],
        out_specs=pl.BlockSpec((None, O, skip_size), lambda b: (b, 0, 0)),
        scratch_shapes=[pltpu.VMEM((C, halo + T), jnp.float32)],
        compiler_params=pltpu.CompilerParams(
            dimension_semantics=("parallel",),
            vmem_limit_bytes=32 * 1024 * 1024),
    )(x_ncw, params['wcaus'], params['wdil'], params['wres'], params['bres'],
      params['wskip'], params['bskip'], params['wdense'], params['wlin'],
      params['blin'])
    return out


# ---------------- pure-JAX reference (PyTorch semantics) ------------------- #
def ref_causal_conv(x, W, kernel_size, dilation):
    total = (kernel_size - 1) * dilation
    left = total // 2
    y = lax.conv_general_dilated(
        x, W, window_strides=(1,), padding=[(left, total - left)],
        rhs_dilation=(dilation,), dimension_numbers=('NCH', 'OIH', 'NCH'),
        precision=lax.Precision.HIGHEST)
    return y[..., :y.shape[-1] - total]


def ref_residual_block(x, Wdil, Wres, bres, Wskip, bskip, kernel_size, dilation,
                       skip_size):
    y = ref_causal_conv(x, Wdil, kernel_size, dilation)
    g = jnp.maximum(y, 0.0) * jnp.tanh(y)
    res = jnp.einsum('oc,bct->bot', Wres[:, :, 0], g,
                     precision=lax.Precision.HIGHEST) + bres[None, :, None]
    res = res + x[..., x.shape[-1] - res.shape[-1]:]
    skip = jnp.einsum('oc,bct->bot', Wskip[:, :, 0], g,
                      precision=lax.Precision.HIGHEST) + bskip[None, :, None]
    return res, skip[..., skip.shape[-1] - skip_size:]


def ref_wavenet_classifier(x, Wcaus, blocks, Wdense, Wlin, blin, kernel_size,
                           dilations, skip_size):
    r = ref_causal_conv(x, Wcaus, kernel_size, 1)
    skips = []
    for (Wdil, Wres, bres, Wskip, bskip), d in zip(blocks, dilations):
        r, s = ref_residual_block(r, Wdil, Wres, bres, Wskip, bskip,
                                  kernel_size, d, skip_size)
        skips.append(s)
    xd = jnp.stack(skips, axis=0).mean(axis=0)
    for _ in range(2):
        xd = jnp.maximum(xd, 0.0)
        xd = jnp.einsum('oc,bct->bot', Wdense[:, :, 0], xd,
                        precision=lax.Precision.HIGHEST)
    logits = jnp.einsum('oc,bct->bot', Wlin, xd,
                        precision=lax.Precision.HIGHEST) + blin[None, :, None]
    return jax.nn.softmax(logits, axis=-1)


# --------------------------------- demo ------------------------------------ #
if __name__ == "__main__":
    channel = 8
    kernel_size = 2
    stack_size = 2
    layer_size = 4
    seq_len = 128
    output_size = 5
    B = 2

    # StackResidualBloc.buildDilation
    dilations = []
    for _ in range(stack_size):
        for j in range(layer_size):
            dilations.append(2 ** (j % 10))

    # WaveNet.calculateReceptiveField
    receptive_field = int(np.sum(
        [(kernel_size - 1) * (2 ** i) for i in range(layer_size)] * stack_size)
        + kernel_size)
    skip_size = seq_len - receptive_field
    assert skip_size > 0, "decrease layer/stack size or increase seqLen"

    key = jax.random.PRNGKey(0)
    key, xk = jax.random.split(key)
    x = jax.random.normal(xk, (B, channel, seq_len), jnp.float32)   # NCW

    # Parameters in PyTorch layout.
    key, k0 = jax.random.split(key)
    Wcaus = 0.3 * jax.random.normal(k0, (channel, channel, kernel_size),
                                    jnp.float32)
    blocks_pt = []
    for _ in dilations:
        key, k1, k2, k3, k4, k5 = jax.random.split(key, 6)
        Wdil = 0.3 * jax.random.normal(k1, (channel, channel, kernel_size),
                                       jnp.float32)
        Wres = 0.3 * jax.random.normal(k2, (channel, channel, 1), jnp.float32)
        bres = 0.1 * jax.random.normal(k3, (channel,), jnp.float32)
        Wskip = 0.3 * jax.random.normal(k4, (channel, channel, 1), jnp.float32)
        bskip = 0.1 * jax.random.normal(k5, (channel,), jnp.float32)
        blocks_pt.append((Wdil, Wres, bres, Wskip, bskip))
    key, k6, k7, k8 = jax.random.split(key, 4)
    Wdense = 0.3 * jax.random.normal(k6, (channel, channel, 1), jnp.float32)
    Wlin = 0.3 * jax.random.normal(k7, (output_size, channel), jnp.float32)
    blin = 0.1 * jax.random.normal(k8, (output_size,), jnp.float32)

    # Kernel-layout parameters: every conv tap / 1x1 conv is (C_out, C_in),
    # biases are column vectors for lane broadcast.
    params = {
        'wcaus': jnp.transpose(Wcaus, (2, 0, 1)),                    # (k,Co,Ci)
        'wdil': jnp.stack([jnp.transpose(b[0], (2, 0, 1)) for b in blocks_pt]),
        'wres': jnp.stack([b[1][:, :, 0] for b in blocks_pt]),
        'bres': jnp.stack([b[2] for b in blocks_pt])[:, :, None],
        'wskip': jnp.stack([b[3][:, :, 0] for b in blocks_pt]),
        'bskip': jnp.stack([b[4] for b in blocks_pt])[:, :, None],
        'wdense': Wdense[:, :, 0],
        'wlin': Wlin,
        'blin': blin[:, None],
    }

    out = wavenet_classifier_pallas(x, params, kernel_size, dilations, skip_size)
    out = jax.block_until_ready(out)

    ref = ref_wavenet_classifier(x, Wcaus, blocks_pt, Wdense, Wlin, blin,
                                 kernel_size, dilations, skip_size)
    assert out.shape == ref.shape == (B, output_size, skip_size), (
        out.shape, ref.shape)
    np.testing.assert_allclose(np.asarray(out), np.asarray(ref),
                               rtol=1e-3, atol=1e-3)
    print("KERNEL_OK")
</pallas_src>

<mosaic_0001>
module attributes {stable_mosaic.version = 11 : i64} {
  func.func @wavenet_classifier_kernel(%arg0: i32, %arg1: memref<1x8x128xf32, #tpu.memory_space<vmem>>, %arg2: memref<2x8x8xf32, #tpu.memory_space<vmem>>, %arg3: memref<8x2x8x8xf32, #tpu.memory_space<vmem>>, %arg4: memref<8x8x8xf32, #tpu.memory_space<vmem>>, %arg5: memref<8x8x1xf32, #tpu.memory_space<vmem>>, %arg6: memref<8x8x8xf32, #tpu.memory_space<vmem>>, %arg7: memref<8x8x1xf32, #tpu.memory_space<vmem>>, %arg8: memref<8x8xf32, #tpu.memory_space<vmem>>, %arg9: memref<5x8xf32, #tpu.memory_space<vmem>>, %arg10: memref<5x1xf32, #tpu.memory_space<vmem>>, %arg11: memref<1x5x96xf32, #tpu.memory_space<vmem>>, %arg12: memref<8x256xf32, #tpu.memory_space<vmem>>) attributes {dimension_semantics = [#tpu.dimension_semantics<parallel>], iteration_bounds = array<i64: 2>, scalar_prefetch = 0 : i64, scratch_operands = 1 : i64, tpu.core_type = #tpu.core_type<tc>, window_params = [{transform_indices = @transform_0, window_bounds = array<i64: 1, 8, 128>}, {pipeline_mode = #tpu.pipeline_mode<synchronous>, transform_indices = @transform_1, window_bounds = array<i64: 2, 8, 8>}, {pipeline_mode = #tpu.pipeline_mode<synchronous>, transform_indices = @transform_2, window_bounds = array<i64: 8, 2, 8, 8>}, {pipeline_mode = #tpu.pipeline_mode<synchronous>, transform_indices = @transform_3, window_bounds = array<i64: 8, 8, 8>}, {pipeline_mode = #tpu.pipeline_mode<synchronous>, transform_indices = @transform_4, window_bounds = array<i64: 8, 8, 1>}, {pipeline_mode = #tpu.pipeline_mode<synchronous>, transform_indices = @transform_5, window_bounds = array<i64: 8, 8, 8>}, {pipeline_mode = #tpu.pipeline_mode<synchronous>, transform_indices = @transform_6, window_bounds = array<i64: 8, 8, 1>}, {pipeline_mode = #tpu.pipeline_mode<synchronous>, transform_indices = @transform_7, window_bounds = array<i64: 8, 8>}, {pipeline_mode = #tpu.pipeline_mode<synchronous>, transform_indices = @transform_8, window_bounds = array<i64: 5, 8>}, {pipeline_mode = #tpu.pipeline_mode<synchronous>, transform_indices = @transform_9, window_bounds = array<i64: 5, 1>}, {transform_indices = @transform_10, window_bounds = array<i64: 1, 5, 96>}]} {
    %cst = arith.constant 0.000000e+00 : f32
    %0 = vector.broadcast %cst : f32 to vector<8x128xf32>
    %c0 = arith.constant 0 : index
    %c0_0 = arith.constant 0 : index
    %1 = vector.load %arg12[%c0, %c0_0] : memref<8x256xf32, #tpu.memory_space<vmem>>, vector<8x128xf32>
    tpu.vector_store %arg12[%c0, %c0_0], %0 {strides = array<i32>} : memref<8x256xf32, #tpu.memory_space<vmem>>, vector<8x128xf32>,
    %c0_1 = arith.constant 0 : index
    %c0_2 = arith.constant 0 : index
    %c0_3 = arith.constant 0 : index
    %2 = vector.load %arg1[%c0_1, %c0_2, %c0_3] : memref<1x8x128xf32, #tpu.memory_space<vmem>>, vector<1x8x128xf32>
    %3 = vector.shape_cast %2 : vector<1x8x128xf32> to vector<8x128xf32>
    %c0_4 = arith.constant 0 : index
    %c128 = arith.constant 128 : index
    %4 = vector.load %arg12[%c0_4, %c128] : memref<8x256xf32, #tpu.memory_space<vmem>>, vector<8x128xf32>
    tpu.vector_store %arg12[%c0_4, %c128], %3 {strides = array<i32>} : memref<8x256xf32, #tpu.memory_space<vmem>>, vector<8x128xf32>,
    %c0_5 = arith.constant 0 : index
    %c0_6 = arith.constant 0 : index
    %c0_7 = arith.constant 0 : index
    %5 = vector.load %arg2[%c0_5, %c0_6, %c0_7] : memref<2x8x8xf32, #tpu.memory_space<vmem>>, vector<2x8x8xf32>
    %c0_8 = arith.constant 0 : index
    %c128_9 = arith.constant 128 : index
    %6 = vector.load %arg12[%c0_8, %c128_9] : memref<8x256xf32, #tpu.memory_space<vmem>>, vector<8x127xf32>
    %7 = vector.extract_strided_slice %5 {offsets = [0, 0, 0], sizes = [1, 8, 8], strides = [1, 1, 1]} : vector<2x8x8xf32> to vector<1x8x8xf32>
    %8 = vector.shape_cast %7 : vector<1x8x8xf32> to vector<8x8xf32>
    %cst_10 = arith.constant dense<0.000000e+00> : vector<8x127xf32>
    %9 = tpu.matmul %8, %6, %cst_10 {dimension_numbers = #tpu.dot_dimension_numbers<[1], [0], [0], [1], [0, 0, 1, 1], [], []>} : vector<8x8xf32>, vector<8x127xf32>, vector<8x127xf32> -> vector<8x127xf32>
    %c0_11 = arith.constant 0 : index
    %c129 = arith.constant 129 : index
    %10 = vector.load %arg12[%c0_11, %c129] : memref<8x256xf32, #tpu.memory_space<vmem>>, vector<8x127xf32>
    %11 = vector.extract_strided_slice %5 {offsets = [1, 0, 0], sizes = [1, 8, 8], strides = [1, 1, 1]} : vector<2x8x8xf32> to vector<1x8x8xf32>
    %12 = vector.shape_cast %11 : vector<1x8x8xf32> to vector<8x8xf32>
    %cst_12 = arith.constant dense<0.000000e+00> : vector<8x127xf32>
    %13 = tpu.matmul %12, %10, %cst_12 {dimension_numbers = #tpu.dot_dimension_numbers<[1], [0], [0], [1], [0, 0, 1, 1], [], []>} : vector<8x8xf32>, vector<8x127xf32>, vector<8x127xf32> -> vector<8x127xf32>
    %14 = arith.addf %9, %13 : vector<8x127xf32>
    %c0_13 = arith.constant 0 : index
    %c128_14 = arith.constant 128 : index
    %15 = vector.load %arg12[%c0_13, %c128_14] : memref<8x256xf32, #tpu.memory_space<vmem>>, vector<8x127xf32>
    tpu.vector_store %arg12[%c0_13, %c128_14], %14 {strides = array<i32>} : memref<8x256xf32, #tpu.memory_space<vmem>>, vector<8x127xf32>,
    %cst_15 = arith.constant 0.000000e+00 : f32
    %16 = vector.broadcast %cst_15 : f32 to vector<8x96xf32>
    %c0_16 = arith.constant 0 : index
    %c0_17 = arith.constant 0 : index
    %c0_18 = arith.constant 0 : index
    %c0_19 = arith.constant 0 : index
    %17 = vector.load %arg3[%c0_16, %c0_17, %c0_18, %c0_19] : memref<8x2x8x8xf32, #tpu.memory_space<vmem>>, vector<1x2x8x8xf32>
    %18 = vector.shape_cast %17 : vector<1x2x8x8xf32> to vector<2x8x8xf32>
    %c0_20 = arith.constant 0 : index
    %c128_21 = arith.constant 128 : index
    %19 = vector.load %arg12[%c0_20, %c128_21] : memref<8x256xf32, #tpu.memory_space<vmem>>, vector<8x126xf32>
    %20 = vector.extract_strided_slice %18 {offsets = [0, 0, 0], sizes = [1, 8, 8], strides = [1, 1, 1]} : vector<2x8x8xf32> to vector<1x8x8xf32>
    %21 = vector.shape_cast %20 : vector<1x8x8xf32> to vector<8x8xf32>
    %cst_22 = arith.constant dense<0.000000e+00> : vector<8x126xf32>
    %22 = tpu.matmul %21, %19, %cst_22 {dimension_numbers = #tpu.dot_dimension_numbers<[1], [0], [0], [1], [0, 0, 1, 1], [], []>} : vector<8x8xf32>, vector<8x126xf32>, vector<8x126xf32> -> vector<8x126xf32>
    %c0_23 = arith.constant 0 : index
    %c129_24 = arith.constant 129 : index
    %23 = vector.load %arg12[%c0_23, %c129_24] : memref<8x256xf32, #tpu.memory_space<vmem>>, vector<8x126xf32>
    %24 = vector.extract_strided_slice %18 {offsets = [1, 0, 0], sizes = [1, 8, 8], strides = [1, 1, 1]} : vector<2x8x8xf32> to vector<1x8x8xf32>
    %25 = vector.shape_cast %24 : vector<1x8x8xf32> to vector<8x8xf32>
    %cst_25 = arith.constant dense<0.000000e+00> : vector<8x126xf32>
    %26 = tpu.matmul %25, %23, %cst_25 {dimension_numbers = #tpu.dot_dimension_numbers<[1], [0], [0], [1], [0, 0, 1, 1], [], []>} : vector<8x8xf32>, vector<8x126xf32>, vector<8x126xf32> -> vector<8x126xf32>
    %27 = arith.addf %22, %26 : vector<8x126xf32>
    %cst_26 = arith.constant 0.000000e+00 : f32
    %28 = vector.broadcast %cst_26 : f32 to vector<8x126xf32>
    %29 = arith.maximumf %27, %28 : vector<8x126xf32>
    %30 = math.tanh %27 : vector<8x126xf32>
    %31 = arith.mulf %29, %30 : vector<8x126xf32>
    %c0_27 = arith.constant 0 : index
    %c0_28 = arith.constant 0 : index
    %c0_29 = arith.constant 0 : index
    %32 = vector.load %arg4[%c0_27, %c0_28, %c0_29] : memref<8x8x8xf32, #tpu.memory_space<vmem>>, vector<1x8x8xf32>
    %33 = vector.shape_cast %32 : vector<1x8x8xf32> to vector<8x8xf32>
    %cst_30 = arith.constant dense<0.000000e+00> : vector<8x126xf32>
    %34 = tpu.matmul %33, %31, %cst_30 {dimension_numbers = #tpu.dot_dimension_numbers<[1], [0], [0], [1], [0, 0, 1, 1], [], []>} : vector<8x8xf32>, vector<8x126xf32>, vector<8x126xf32> -> vector<8x126xf32>
    %c0_31 = arith.constant 0 : index
    %c0_32 = arith.constant 0 : index
    %c0_33 = arith.constant 0 : index
    %35 = vector.load %arg5[%c0_31, %c0_32, %c0_33] : memref<8x8x1xf32, #tpu.memory_space<vmem>>, vector<1x8x1xf32>
    %36 = vector.shape_cast %35 : vector<1x8x1xf32> to vector<8x1xf32>
    %37 = vector.broadcast %36 : vector<8x1xf32> to vector<8x126xf32>
    %38 = arith.addf %34, %37 : vector<8x126xf32>
    %c0_34 = arith.constant 0 : index
    %c129_35 = arith.constant 129 : index
    %39 = vector.load %arg12[%c0_34, %c129_35] : memref<8x256xf32, #tpu.memory_space<vmem>>, vector<8x126xf32>
    %40 = arith.addf %38, %39 : vector<8x126xf32>
    %41 = vector.extract_strided_slice %31 {offsets = [0, 30], sizes = [8, 96], strides = [1, 1]} : vector<8x126xf32> to vector<8x96xf32>
    %c0_36 = arith.constant 0 : index
    %c0_37 = arith.constant 0 : index
    %c0_38 = arith.constant 0 : index
    %42 = vector.load %arg6[%c0_36, %c0_37, %c0_38] : memref<8x8x8xf32, #tpu.memory_space<vmem>>, vector<1x8x8xf32>
    %43 = vector.shape_cast %42 : vector<1x8x8xf32> to vector<8x8xf32>
    %cst_39 = arith.constant dense<0.000000e+00> : vector<8x96xf32>
    %44 = tpu.matmul %43, %41, %cst_39 {dimension_numbers = #tpu.dot_dimension_numbers<[1], [0], [0], [1], [0, 0, 1, 1], [], []>} : vector<8x8xf32>, vector<8x96xf32>, vector<8x96xf32> -> vector<8x96xf32>
    %45 = arith.addf %16, %44 : vector<8x96xf32>
    %c0_40 = arith.constant 0 : index
    %c0_41 = arith.constant 0 : index
    %c0_42 = arith.constant 0 : index
    %46 = vector.load %arg7[%c0_40, %c0_41, %c0_42] : memref<8x8x1xf32, #tpu.memory_space<vmem>>, vector<1x8x1xf32>
    %47 = vector.shape_cast %46 : vector<1x8x1xf32> to vector<8x1xf32>
    %48 = vector.broadcast %47 : vector<8x1xf32> to vector<8x96xf32>
    %49 = arith.addf %45, %48 : vector<8x96xf32>
    %c0_43 = arith.constant 0 : index
    %c128_44 = arith.constant 128 : index
    %50 = vector.load %arg12[%c0_43, %c128_44] : memref<8x256xf32, #tpu.memory_space<vmem>>, vector<8x126xf32>
    tpu.vector_store %arg12[%c0_43, %c128_44], %40 {strides = array<i32>} : memref<8x256xf32, #tpu.memory_space<vmem>>, vector<8x126xf32>,
    %c1 = arith.constant 1 : index
    %c0_45 = arith.constant 0 : index
    %c0_46 = arith.constant 0 : index
    %c0_47 = arith.constant 0 : index
    %51 = vector.load %arg3[%c1, %c0_45, %c0_46, %c0_47] : memref<8x2x8x8xf32, #tpu.memory_space<vmem>>, vector<1x2x8x8xf32>
    %52 = vector.shape_cast %51 : vector<1x2x8x8xf32> to vector<2x8x8xf32>
    %c0_48 = arith.constant 0 : index
    %c127 = arith.constant 127 : index
    %53 = vector.load %arg12[%c0_48, %c127] : memref<8x256xf32, #tpu.memory_space<vmem>>, vector<8x124xf32>
    %54 = vector.extract_strided_slice %52 {offsets = [0, 0, 0], sizes = [1, 8, 8], strides = [1, 1, 1]} : vector<2x8x8xf32> to vector<1x8x8xf32>
    %55 = vector.shape_cast %54 : vector<1x8x8xf32> to vector<8x8xf32>
    %cst_49 = arith.constant dense<0.000000e+00> : vector<8x124xf32>
    %56 = tpu.matmul %55, %53, %cst_49 {dimension_numbers = #tpu.dot_dimension_numbers<[1], [0], [0], [1], [0, 0, 1, 1], [], []>} : vector<8x8xf32>, vector<8x124xf32>, vector<8x124xf32> -> vector<8x124xf32>
    %c0_50 = arith.constant 0 : index
    %c129_51 = arith.constant 129 : index
    %57 = vector.load %arg12[%c0_50, %c129_51] : memref<8x256xf32, #tpu.memory_space<vmem>>, vector<8x124xf32>
    %58 = vector.extract_strided_slice %52 {offsets = [1, 0, 0], sizes = [1, 8, 8], strides = [1, 1, 1]} : vector<2x8x8xf32> to vector<1x8x8xf32>
    %59 = vector.shape_cast %58 : vector<1x8x8xf32> to vector<8x8xf32>
    %cst_52 = arith.constant dense<0.000000e+00> : vector<8x124xf32>
    %60 = tpu.matmul %59, %57, %cst_52 {dimension_numbers = #tpu.dot_dimension_numbers<[1], [0], [0], [1], [0, 0, 1, 1], [], []>} : vector<8x8xf32>, vector<8x124xf32>, vector<8x124xf32> -> vector<8x124xf32>
    %61 = arith.addf %56, %60 : vector<8x124xf32>
    %cst_53 = arith.constant 0.000000e+00 : f32
    %62 = vector.broadcast %cst_53 : f32 to vector<8x124xf32>
    %63 = arith.maximumf %61, %62 : vector<8x124xf32>
    %64 = math.tanh %61 : vector<8x124xf32>
    %65 = arith.mulf %63, %64 : vector<8x124xf32>
    %c1_54 = arith.constant 1 : index
    %c0_55 = arith.constant 0 : index
    %c0_56 = arith.constant 0 : index
    %66 = vector.load %arg4[%c1_54, %c0_55, %c0_56] : memref<8x8x8xf32, #tpu.memory_space<vmem>>, vector<1x8x8xf32>
    %67 = vector.shape_cast %66 : vector<1x8x8xf32> to vector<8x8xf32>
    %cst_57 = arith.constant dense<0.000000e+00> : vector<8x124xf32>
    %68 = tpu.matmul %67, %65, %cst_57 {dimension_numbers = #tpu.dot_dimension_numbers<[1], [0], [0], [1], [0, 0, 1, 1], [], []>} : vector<8x8xf32>, vector<8x124xf32>, vector<8x124xf32> -> vector<8x124xf32>
    %c1_58 = arith.constant 1 : index
    %c0_59 = arith.constant 0 : index
    %c0_60 = arith.constant 0 : index
    %69 = vector.load %arg5[%c1_58, %c0_59, %c0_60] : memref<8x8x1xf32, #tpu.memory_space<vmem>>, vector<1x8x1xf32>
    %70 = vector.shape_cast %69 : vector<1x8x1xf32> to vector<8x1xf32>
    %71 = vector.broadcast %70 : vector<8x1xf32> to vector<8x124xf32>
    %72 = arith.addf %68, %71 : vector<8x124xf32>
    %c0_61 = arith.constant 0 : index
    %c130 = arith.constant 130 : index
    %73 = vector.load %arg12[%c0_61, %c130] : memref<8x256xf32, #tpu.memory_space<vmem>>, vector<8x124xf32>
    %74 = arith.addf %72, %73 : vector<8x124xf32>
    %75 = vector.extract_strided_slice %65 {offsets = [0, 28], sizes = [8, 96], strides = [1, 1]} : vector<8x124xf32> to vector<8x96xf32>
    %c1_62 = arith.constant 1 : index
    %c0_63 = arith.constant 0 : index
    %c0_64 = arith.constant 0 : index
    %76 = vector.load %arg6[%c1_62, %c0_63, %c0_64] : memref<8x8x8xf32, #tpu.memory_space<vmem>>, vector<1x8x8xf32>
    %77 = vector.shape_cast %76 : vector<1x8x8xf32> to vector<8x8xf32>
    %cst_65 = arith.constant dense<0.000000e+00> : vector<8x96xf32>
    %78 = tpu.matmul %77, %75, %cst_65 {dimension_numbers = #tpu.dot_dimension_numbers<[1], [0], [0], [1], [0, 0, 1, 1], [], []>} : vector<8x8xf32>, vector<8x96xf32>, vector<8x96xf32> -> vector<8x96xf32>
    %79 = arith.addf %49, %78 : vector<8x96xf32>
    %c1_66 = arith.constant 1 : index
    %c0_67 = arith.constant 0 : index
    %c0_68 = arith.constant 0 : index
    %80 = vector.load %arg7[%c1_66, %c0_67, %c0_68] : memref<8x8x1xf32, #tpu.memory_space<vmem>>, vector<1x8x1xf32>
    %81 = vector.shape_cast %80 : vector<1x8x1xf32> to vector<8x1xf32>
    %82 = vector.broadcast %81 : vector<8x1xf32> to vector<8x96xf32>
    %83 = arith.addf %79, %82 : vector<8x96xf32>
    %c0_69 = arith.constant 0 : index
    %c128_70 = arith.constant 128 : index
    %84 = vector.load %arg12[%c0_69, %c128_70] : memref<8x256xf32, #tpu.memory_space<vmem>>, vector<8x124xf32>
    tpu.vector_store %arg12[%c0_69, %c128_70], %74 {strides = array<i32>} : memref<8x256xf32, #tpu.memory_space<vmem>>, vector<8x124xf32>,
    %c2 = arith.constant 2 : index
    %c0_71 = arith.constant 0 : index
    %c0_72 = arith.constant 0 : index
    %c0_73 = arith.constant 0 : index
    %85 = vector.load %arg3[%c2, %c0_71, %c0_72, %c0_73] : memref<8x2x8x8xf32, #tpu.memory_space<vmem>>, vector<1x2x8x8xf32>
    %86 = vector.shape_cast %85 : vector<1x2x8x8xf32> to vector<2x8x8xf32>
    %c0_74 = arith.constant 0 : index
    %c126 = arith.constant 126 : index
    %87 = vector.load %arg12[%c0_74, %c126] : memref<8x256xf32, #tpu.memory_space<vmem>>, vector<8x120xf32>
    %88 = vector.extract_strided_slice %86 {offsets = [0, 0, 0], sizes = [1, 8, 8], strides = [1, 1, 1]} : vector<2x8x8xf32> to vector<1x8x8xf32>
    %89 = vector.shape_cast %88 : vector<1x8x8xf32> to vector<8x8xf32>
    %cst_75 = arith.constant dense<0.000000e+00> : vector<8x120xf32>
    %90 = tpu.matmul %89, %87, %cst_75 {dimension_numbers = #tpu.dot_dimension_numbers<[1], [0], [0], [1], [0, 0, 1, 1], [], []>} : vector<8x8xf32>, vector<8x120xf32>, vector<8x120xf32> -> vector<8x120xf32>
    %c0_76 = arith.constant 0 : index
    %c130_77 = arith.constant 130 : index
    %91 = vector.load %arg12[%c0_76, %c130_77] : memref<8x256xf32, #tpu.memory_space<vmem>>, vector<8x120xf32>
    %92 = vector.extract_strided_slice %86 {offsets = [1, 0, 0], sizes = [1, 8, 8], strides = [1, 1, 1]} : vector<2x8x8xf32> to vector<1x8x8xf32>
    %93 = vector.shape_cast %92 : vector<1x8x8xf32> to vector<8x8xf32>
    %cst_78 = arith.constant dense<0.000000e+00> : vector<8x120xf32>
    %94 = tpu.matmul %93, %91, %cst_78 {dimension_numbers = #tpu.dot_dimension_numbers<[1], [0], [0], [1], [0, 0, 1, 1], [], []>} : vector<8x8xf32>, vector<8x120xf32>, vector<8x120xf32> -> vector<8x120xf32>
    %95 = arith.addf %90, %94 : vector<8x120xf32>
    %cst_79 = arith.constant 0.000000e+00 : f32
    %96 = vector.broadcast %cst_79 : f32 to vector<8x120xf32>
    %97 = arith.maximumf %95, %96 : vector<8x120xf32>
    %98 = math.tanh %95 : vector<8x120xf32>
    %99 = arith.mulf %97, %98 : vector<8x120xf32>
    %c2_80 = arith.constant 2 : index
    %c0_81 = arith.constant 0 : index
    %c0_82 = arith.constant 0 : index
    %100 = vector.load %arg4[%c2_80, %c0_81, %c0_82] : memref<8x8x8xf32, #tpu.memory_space<vmem>>, vector<1x8x8xf32>
    %101 = vector.shape_cast %100 : vector<1x8x8xf32> to vector<8x8xf32>
    %cst_83 = arith.constant dense<0.000000e+00> : vector<8x120xf32>
    %102 = tpu.matmul %101, %99, %cst_83 {dimension_numbers = #tpu.dot_dimension_numbers<[1], [0], [0], [1], [0, 0, 1, 1], [], []>} : vector<8x8xf32>, vector<8x120xf32>, vector<8x120xf32> -> vector<8x120xf32>
    %c2_84 = arith.constant 2 : index
    %c0_85 = arith.constant 0 : index
    %c0_86 = arith.constant 0 : index
    %103 = vector.load %arg5[%c2_84, %c0_85, %c0_86] : memref<8x8x1xf32, #tpu.memory_space<vmem>>, vector<1x8x1xf32>
    %104 = vector.shape_cast %103 : vector<1x8x1xf32> to vector<8x1xf32>
    %105 = vector.broadcast %104 : vector<8x1xf32> to vector<8x120xf32>
    %106 = arith.addf %102, %105 : vector<8x120xf32>
    %c0_87 = arith.constant 0 : index
    %c132 = arith.constant 132 : index
    %107 = vector.load %arg12[%c0_87, %c132] : memref<8x256xf32, #tpu.memory_space<vmem>>, vector<8x120xf32>
    %108 = arith.addf %106, %107 : vector<8x120xf32>
    %109 = vector.extract_strided_slice %99 {offsets = [0, 24], sizes = [8, 96], strides = [1, 1]} : vector<8x120xf32> to vector<8x96xf32>
    %c2_88 = arith.constant 2 : index
    %c0_89 = arith.constant 0 : index
    %c0_90 = arith.constant 0 : index
    %110 = vector.load %arg6[%c2_88, %c0_89, %c0_90] : memref<8x8x8xf32, #tpu.memory_space<vmem>>, vector<1x8x8xf32>
    %111 = vector.shape_cast %110 : vector<1x8x8xf32> to vector<8x8xf32>
    %cst_91 = arith.constant dense<0.000000e+00> : vector<8x96xf32>
    %112 = tpu.matmul %111, %109, %cst_91 {dimension_numbers = #tpu.dot_dimension_numbers<[1], [0], [0], [1], [0, 0, 1, 1], [], []>} : vector<8x8xf32>, vector<8x96xf32>, vector<8x96xf32> -> vector<8x96xf32>
    %113 = arith.addf %83, %112 : vector<8x96xf32>
    %c2_92 = arith.constant 2 : index
    %c0_93 = arith.constant 0 : index
    %c0_94 = arith.constant 0 : index
    %114 = vector.load %arg7[%c2_92, %c0_93, %c0_94] : memref<8x8x1xf32, #tpu.memory_space<vmem>>, vector<1x8x1xf32>
    %115 = vector.shape_cast %114 : vector<1x8x1xf32> to vector<8x1xf32>
    %116 = vector.broadcast %115 : vector<8x1xf32> to vector<8x96xf32>
    %117 = arith.addf %113, %116 : vector<8x96xf32>
    %c0_95 = arith.constant 0 : index
    %c128_96 = arith.constant 128 : index
    %118 = vector.load %arg12[%c0_95, %c128_96] : memref<8x256xf32, #tpu.memory_space<vmem>>, vector<8x120xf32>
    tpu.vector_store %arg12[%c0_95, %c128_96], %108 {strides = array<i32>} : memref<8x256xf32, #tpu.memory_space<vmem>>, vector<8x120xf32>,
    %c3 = arith.constant 3 : index
    %c0_97 = arith.constant 0 : index
    %c0_98 = arith.constant 0 : index
    %c0_99 = arith.constant 0 : index
    %119 = vector.load %arg3[%c3, %c0_97, %c0_98, %c0_99] : memref<8x2x8x8xf32, #tpu.memory_space<vmem>>, vector<1x2x8x8xf32>
    %120 = vector.shape_cast %119 : vector<1x2x8x8xf32> to vector<2x8x8xf32>
    %c0_100 = arith.constant 0 : index
    %c124 = arith.constant 124 : index
    %121 = vector.load %arg12[%c0_100, %c124] : memref<8x256xf32, #tpu.memory_space<vmem>>, vector<8x112xf32>
    %122 = vector.extract_strided_slice %120 {offsets = [0, 0, 0], sizes = [1, 8, 8], strides = [1, 1, 1]} : vector<2x8x8xf32> to vector<1x8x8xf32>
    %123 = vector.shape_cast %122 : vector<1x8x8xf32> to vector<8x8xf32>
    %cst_101 = arith.constant dense<0.000000e+00> : vector<8x112xf32>
    %124 = tpu.matmul %123, %121, %cst_101 {dimension_numbers = #tpu.dot_dimension_numbers<[1], [0], [0], [1], [0, 0, 1, 1], [], []>} : vector<8x8xf32>, vector<8x112xf32>, vector<8x112xf32> -> vector<8x112xf32>
    %c0_102 = arith.constant 0 : index
    %c132_103 = arith.constant 132 : index
    %125 = vector.load %arg12[%c0_102, %c132_103] : memref<8x256xf32, #tpu.memory_space<vmem>>, vector<8x112xf32>
    %126 = vector.extract_strided_slice %120 {offsets = [1, 0, 0], sizes = [1, 8, 8], strides = [1, 1, 1]} : vector<2x8x8xf32> to vector<1x8x8xf32>
    %127 = vector.shape_cast %126 : vector<1x8x8xf32> to vector<8x8xf32>
    %cst_104 = arith.constant dense<0.000000e+00> : vector<8x112xf32>
    %128 = tpu.matmul %127, %125, %cst_104 {dimension_numbers = #tpu.dot_dimension_numbers<[1], [0], [0], [1], [0, 0, 1, 1], [], []>} : vector<8x8xf32>, vector<8x112xf32>, vector<8x112xf32> -> vector<8x112xf32>
    %129 = arith.addf %124, %128 : vector<8x112xf32>
    %cst_105 = arith.constant 0.000000e+00 : f32
    %130 = vector.broadcast %cst_105 : f32 to vector<8x112xf32>
    %131 = arith.maximumf %129, %130 : vector<8x112xf32>
    %132 = math.tanh %129 : vector<8x112xf32>
    %133 = arith.mulf %131, %132 : vector<8x112xf32>
    %c3_106 = arith.constant 3 : index
    %c0_107 = arith.constant 0 : index
    %c0_108 = arith.constant 0 : index
    %134 = vector.load %arg4[%c3_106, %c0_107, %c0_108] : memref<8x8x8xf32, #tpu.memory_space<vmem>>, vector<1x8x8xf32>
    %135 = vector.shape_cast %134 : vector<1x8x8xf32> to vector<8x8xf32>
    %cst_109 = arith.constant dense<0.000000e+00> : vector<8x112xf32>
    %136 = tpu.matmul %135, %133, %cst_109 {dimension_numbers = #tpu.dot_dimension_numbers<[1], [0], [0], [1], [0, 0, 1, 1], [], []>} : vector<8x8xf32>, vector<8x112xf32>, vector<8x112xf32> -> vector<8x112xf32>
    %c3_110 = arith.constant 3 : index
    %c0_111 = arith.constant 0 : index
    %c0_112 = arith.constant 0 : index
    %137 = vector.load %arg5[%c3_110, %c0_111, %c0_112] : memref<8x8x1xf32, #tpu.memory_space<vmem>>, vector<1x8x1xf32>
    %138 = vector.shape_cast %137 : vector<1x8x1xf32> to vector<8x1xf32>
    %139 = vector.broadcast %138 : vector<8x1xf32> to vector<8x112xf32>
    %140 = arith.addf %136, %139 : vector<8x112xf32>
    %c0_113 = arith.constant 0 : index
    %c136 = arith.constant 136 : index
    %141 = vector.load %arg12[%c0_113, %c136] : memref<8x256xf32, #tpu.memory_space<vmem>>, vector<8x112xf32>
    %142 = arith.addf %140, %141 : vector<8x112xf32>
    %143 = vector.extract_strided_slice %133 {offsets = [0, 16], sizes = [8, 96], strides = [1, 1]} : vector<8x112xf32> to vector<8x96xf32>
    %c3_114 = arith.constant 3 : index
    %c0_115 = arith.constant 0 : index
    %c0_116 = arith.constant 0 : index
    %144 = vector.load %arg6[%c3_114, %c0_115, %c0_116] : memref<8x8x8xf32, #tpu.memory_space<vmem>>, vector<1x8x8xf32>
    %145 = vector.shape_cast %144 : vector<1x8x8xf32> to vector<8x8xf32>
    %cst_117 = arith.constant dense<0.000000e+00> : vector<8x96xf32>
    %146 = tpu.matmul %145, %143, %cst_117 {dimension_numbers = #tpu.dot_dimension_numbers<[1], [0], [0], [1], [0, 0, 1, 1], [], []>} : vector<8x8xf32>, vector<8x96xf32>, vector<8x96xf32> -> vector<8x96xf32>
    %147 = arith.addf %117, %146 : vector<8x96xf32>
    %c3_118 = arith.constant 3 : index
    %c0_119 = arith.constant 0 : index
    %c0_120 = arith.constant 0 : index
    %148 = vector.load %arg7[%c3_118, %c0_119, %c0_120] : memref<8x8x1xf32, #tpu.memory_space<vmem>>, vector<1x8x1xf32>
    %149 = vector.shape_cast %148 : vector<1x8x1xf32> to vector<8x1xf32>
    %150 = vector.broadcast %149 : vector<8x1xf32> to vector<8x96xf32>
    %151 = arith.addf %147, %150 : vector<8x96xf32>
    %c0_121 = arith.constant 0 : index
    %c128_122 = arith.constant 128 : index
    %152 = vector.load %arg12[%c0_121, %c128_122] : memref<8x256xf32, #tpu.memory_space<vmem>>, vector<8x112xf32>
    tpu.vector_store %arg12[%c0_121, %c128_122], %142 {strides = array<i32>} : memref<8x256xf32, #tpu.memory_space<vmem>>, vector<8x112xf32>,
    %c4 = arith.constant 4 : index
    %c0_123 = arith.constant 0 : index
    %c0_124 = arith.constant 0 : index
    %c0_125 = arith.constant 0 : index
    %153 = vector.load %arg3[%c4, %c0_123, %c0_124, %c0_125] : memref<8x2x8x8xf32, #tpu.memory_space<vmem>>, vector<1x2x8x8xf32>
    %154 = vector.shape_cast %153 : vector<1x2x8x8xf32> to vector<2x8x8xf32>
    %c0_126 = arith.constant 0 : index
    %c128_127 = arith.constant 128 : index
    %155 = vector.load %arg12[%c0_126, %c128_127] : memref<8x256xf32, #tpu.memory_space<vmem>>, vector<8x111xf32>
    %156 = vector.extract_strided_slice %154 {offsets = [0, 0, 0], sizes = [1, 8, 8], strides = [1, 1, 1]} : vector<2x8x8xf32> to vector<1x8x8xf32>
    %157 = vector.shape_cast %156 : vector<1x8x8xf32> to vector<8x8xf32>
    %cst_128 = arith.constant dense<0.000000e+00> : vector<8x111xf32>
    %158 = tpu.matmul %157, %155, %cst_128 {dimension_numbers = #tpu.dot_dimension_numbers<[1], [0], [0], [1], [0, 0, 1, 1], [], []>} : vector<8x8xf32>, vector<8x111xf32>, vector<8x111xf32> -> vector<8x111xf32>
    %c0_129 = arith.constant 0 : index
    %c129_130 = arith.constant 129 : index
    %159 = vector.load %arg12[%c0_129, %c129_130] : memref<8x256xf32, #tpu.memory_space<vmem>>, vector<8x111xf32>
    %160 = vector.extract_strided_slice %154 {offsets = [1, 0, 0], sizes = [1, 8, 8], strides = [1, 1, 1]} : vector<2x8x8xf32> to vector<1x8x8xf32>
    %161 = vector.shape_cast %160 : vector<1x8x8xf32> to vector<8x8xf32>
    %cst_131 = arith.constant dense<0.000000e+00> : vector<8x111xf32>
    %162 = tpu.matmul %161, %159, %cst_131 {dimension_numbers = #tpu.dot_dimension_numbers<[1], [0], [0], [1], [0, 0, 1, 1], [], []>} : vector<8x8xf32>, vector<8x111xf32>, vector<8x111xf32> -> vector<8x111xf32>
    %163 = arith.addf %158, %162 : vector<8x111xf32>
    %cst_132 = arith.constant 0.000000e+00 : f32
    %164 = vector.broadcast %cst_132 : f32 to vector<8x111xf32>
    %165 = arith.maximumf %163, %164 : vector<8x111xf32>
    %166 = math.tanh %163 : vector<8x111xf32>
    %167 = arith.mulf %165, %166 : vector<8x111xf32>
    %c4_133 = arith.constant 4 : index
    %c0_134 = arith.constant 0 : index
    %c0_135 = arith.constant 0 : index
    %168 = vector.load %arg4[%c4_133, %c0_134, %c0_135] : memref<8x8x8xf32, #tpu.memory_space<vmem>>, vector<1x8x8xf32>
    %169 = vector.shape_cast %168 : vector<1x8x8xf32> to vector<8x8xf32>
    %cst_136 = arith.constant dense<0.000000e+00> : vector<8x111xf32>
    %170 = tpu.matmul %169, %167, %cst_136 {dimension_numbers = #tpu.dot_dimension_numbers<[1], [0], [0], [1], [0, 0, 1, 1], [], []>} : vector<8x8xf32>, vector<8x111xf32>, vector<8x111xf32> -> vector<8x111xf32>
    %c4_137 = arith.constant 4 : index
    %c0_138 = arith.constant 0 : index
    %c0_139 = arith.constant 0 : index
    %171 = vector.load %arg5[%c4_137, %c0_138, %c0_139] : memref<8x8x1xf32, #tpu.memory_space<vmem>>, vector<1x8x1xf32>
    %172 = vector.shape_cast %171 : vector<1x8x1xf32> to vector<8x1xf32>
    %173 = vector.broadcast %172 : vector<8x1xf32> to vector<8x111xf32>
    %174 = arith.addf %170, %173 : vector<8x111xf32>
    %c0_140 = arith.constant 0 : index
    %c129_141 = arith.constant 129 : index
    %175 = vector.load %arg12[%c0_140, %c129_141] : memref<8x256xf32, #tpu.memory_space<vmem>>, vector<8x111xf32>
    %176 = arith.addf %174, %175 : vector<8x111xf32>
    %177 = vector.extract_strided_slice %167 {offsets = [0, 15], sizes = [8, 96], strides = [1, 1]} : vector<8x111xf32> to vector<8x96xf32>
    %c4_142 = arith.constant 4 : index
    %c0_143 = arith.constant 0 : index
    %c0_144 = arith.constant 0 : index
    %178 = vector.load %arg6[%c4_142, %c0_143, %c0_144] : memref<8x8x8xf32, #tpu.memory_space<vmem>>, vector<1x8x8xf32>
    %179 = vector.shape_cast %178 : vector<1x8x8xf32> to vector<8x8xf32>
    %cst_145 = arith.constant dense<0.000000e+00> : vector<8x96xf32>
    %180 = tpu.matmul %179, %177, %cst_145 {dimension_numbers = #tpu.dot_dimension_numbers<[1], [0], [0], [1], [0, 0, 1, 1], [], []>} : vector<8x8xf32>, vector<8x96xf32>, vector<8x96xf32> -> vector<8x96xf32>
    %181 = arith.addf %151, %180 : vector<8x96xf32>
    %c4_146 = arith.constant 4 : index
    %c0_147 = arith.constant 0 : index
    %c0_148 = arith.constant 0 : index
    %182 = vector.load %arg7[%c4_146, %c0_147, %c0_148] : memref<8x8x1xf32, #tpu.memory_space<vmem>>, vector<1x8x1xf32>
    %183 = vector.shape_cast %182 : vector<1x8x1xf32> to vector<8x1xf32>
    %184 = vector.broadcast %183 : vector<8x1xf32> to vector<8x96xf32>
    %185 = arith.addf %181, %184 : vector<8x96xf32>
    %c0_149 = arith.constant 0 : index
    %c128_150 = arith.constant 128 : index
    %186 = vector.load %arg12[%c0_149, %c128_150] : memref<8x256xf32, #tpu.memory_space<vmem>>, vector<8x111xf32>
    tpu.vector_store %arg12[%c0_149, %c128_150], %176 {strides = array<i32>} : memref<8x256xf32, #tpu.memory_space<vmem>>, vector<8x111xf32>,
    %c5 = arith.constant 5 : index
    %c0_151 = arith.constant 0 : index
    %c0_152 = arith.constant 0 : index
    %c0_153 = arith.constant 0 : index
    %187 = vector.load %arg3[%c5, %c0_151, %c0_152, %c0_153] : memref<8x2x8x8xf32, #tpu.memory_space<vmem>>, vector<1x2x8x8xf32>
    %188 = vector.shape_cast %187 : vector<1x2x8x8xf32> to vector<2x8x8xf32>
    %c0_154 = arith.constant 0 : index
    %c127_155 = arith.constant 127 : index
    %189 = vector.load %arg12[%c0_154, %c127_155] : memref<8x256xf32, #tpu.memory_space<vmem>>, vector<8x109xf32>
    %190 = vector.extract_strided_slice %188 {offsets = [0, 0, 0], sizes = [1, 8, 8], strides = [1, 1, 1]} : vector<2x8x8xf32> to vector<1x8x8xf32>
    %191 = vector.shape_cast %190 : vector<1x8x8xf32> to vector<8x8xf32>
    %cst_156 = arith.constant dense<0.000000e+00> : vector<8x109xf32>
    %192 = tpu.matmul %191, %189, %cst_156 {dimension_numbers = #tpu.dot_dimension_numbers<[1], [0], [0], [1], [0, 0, 1, 1], [], []>} : vector<8x8xf32>, vector<8x109xf32>, vector<8x109xf32> -> vector<8x109xf32>
    %c0_157 = arith.constant 0 : index
    %c129_158 = arith.constant 129 : index
    %193 = vector.load %arg12[%c0_157, %c129_158] : memref<8x256xf32, #tpu.memory_space<vmem>>, vector<8x109xf32>
    %194 = vector.extract_strided_slice %188 {offsets = [1, 0, 0], sizes = [1, 8, 8], strides = [1, 1, 1]} : vector<2x8x8xf32> to vector<1x8x8xf32>
    %195 = vector.shape_cast %194 : vector<1x8x8xf32> to vector<8x8xf32>
    %cst_159 = arith.constant dense<0.000000e+00> : vector<8x109xf32>
    %196 = tpu.matmul %195, %193, %cst_159 {dimension_numbers = #tpu.dot_dimension_numbers<[1], [0], [0], [1], [0, 0, 1, 1], [], []>} : vector<8x8xf32>, vector<8x109xf32>, vector<8x109xf32> -> vector<8x109xf32>
    %197 = arith.addf %192, %196 : vector<8x109xf32>
    %cst_160 = arith.constant 0.000000e+00 : f32
    %198 = vector.broadcast %cst_160 : f32 to vector<8x109xf32>
    %199 = arith.maximumf %197, %198 : vector<8x109xf32>
    %200 = math.tanh %197 : vector<8x109xf32>
    %201 = arith.mulf %199, %200 : vector<8x109xf32>
    %c5_161 = arith.constant 5 : index
    %c0_162 = arith.constant 0 : index
    %c0_163 = arith.constant 0 : index
    %202 = vector.load %arg4[%c5_161, %c0_162, %c0_163] : memref<8x8x8xf32, #tpu.memory_space<vmem>>, vector<1x8x8xf32>
    %203 = vector.shape_cast %202 : vector<1x8x8xf32> to vector<8x8xf32>
    %cst_164 = arith.constant dense<0.000000e+00> : vector<8x109xf32>
    %204 = tpu.matmul %203, %201, %cst_164 {dimension_numbers = #tpu.dot_dimension_numbers<[1], [0], [0], [1], [0, 0, 1, 1], [], []>} : vector<8x8xf32>, vector<8x109xf32>, vector<8x109xf32> -> vector<8x109xf32>
    %c5_165 = arith.constant 5 : index
    %c0_166 = arith.constant 0 : index
    %c0_167 = arith.constant 0 : index
    %205 = vector.load %arg5[%c5_165, %c0_166, %c0_167] : memref<8x8x1xf32, #tpu.memory_space<vmem>>, vector<1x8x1xf32>
    %206 = vector.shape_cast %205 : vector<1x8x1xf32> to vector<8x1xf32>
    %207 = vector.broadcast %206 : vector<8x1xf32> to vector<8x109xf32>
    %208 = arith.addf %204, %207 : vector<8x109xf32>
    %c0_168 = arith.constant 0 : index
    %c130_169 = arith.constant 130 : index
    %209 = vector.load %arg12[%c0_168, %c130_169] : memref<8x256xf32, #tpu.memory_space<vmem>>, vector<8x109xf32>
    %210 = arith.addf %208, %209 : vector<8x109xf32>
    %211 = vector.extract_strided_slice %201 {offsets = [0, 13], sizes = [8, 96], strides = [1, 1]} : vector<8x109xf32> to vector<8x96xf32>
    %c5_170 = arith.constant 5 : index
    %c0_171 = arith.constant 0 : index
    %c0_172 = arith.constant 0 : index
    %212 = vector.load %arg6[%c5_170, %c0_171, %c0_172] : memref<8x8x8xf32, #tpu.memory_space<vmem>>, vector<1x8x8xf32>
    %213 = vector.shape_cast %212 : vector<1x8x8xf32> to vector<8x8xf32>
    %cst_173 = arith.constant dense<0.000000e+00> : vector<8x96xf32>
    %214 = tpu.matmul %213, %211, %cst_173 {dimension_numbers = #tpu.dot_dimension_numbers<[1], [0], [0], [1], [0, 0, 1, 1], [], []>} : vector<8x8xf32>, vector<8x96xf32>, vector<8x96xf32> -> vector<8x96xf32>
    %215 = arith.addf %185, %214 : vector<8x96xf32>
    %c5_174 = arith.constant 5 : index
    %c0_175 = arith.constant 0 : index
    %c0_176 = arith.constant 0 : index
    %216 = vector.load %arg7[%c5_174, %c0_175, %c0_176] : memref<8x8x1xf32, #tpu.memory_space<vmem>>, vector<1x8x1xf32>
    %217 = vector.shape_cast %216 : vector<1x8x1xf32> to vector<8x1xf32>
    %218 = vector.broadcast %217 : vector<8x1xf32> to vector<8x96xf32>
    %219 = arith.addf %215, %218 : vector<8x96xf32>
    %c0_177 = arith.constant 0 : index
    %c128_178 = arith.constant 128 : index
    %220 = vector.load %arg12[%c0_177, %c128_178] : memref<8x256xf32, #tpu.memory_space<vmem>>, vector<8x109xf32>
    tpu.vector_store %arg12[%c0_177, %c128_178], %210 {strides = array<i32>} : memref<8x256xf32, #tpu.memory_space<vmem>>, vector<8x109xf32>,
    %c6 = arith.constant 6 : index
    %c0_179 = arith.constant 0 : index
    %c0_180 = arith.constant 0 : index
    %c0_181 = arith.constant 0 : index
    %221 = vector.load %arg3[%c6, %c0_179, %c0_180, %c0_181] : memref<8x2x8x8xf32, #tpu.memory_space<vmem>>, vector<1x2x8x8xf32>
    %222 = vector.shape_cast %221 : vector<1x2x8x8xf32> to vector<2x8x8xf32>
    %c0_182 = arith.constant 0 : index
    %c126_183 = arith.constant 126 : index
    %223 = vector.load %arg12[%c0_182, %c126_183] : memref<8x256xf32, #tpu.memory_space<vmem>>, vector<8x105xf32>
    %224 = vector.extract_strided_slice %222 {offsets = [0, 0, 0], sizes = [1, 8, 8], strides = [1, 1, 1]} : vector<2x8x8xf32> to vector<1x8x8xf32>
    %225 = vector.shape_cast %224 : vector<1x8x8xf32> to vector<8x8xf32>
    %cst_184 = arith.constant dense<0.000000e+00> : vector<8x105xf32>
    %226 = tpu.matmul %225, %223, %cst_184 {dimension_numbers = #tpu.dot_dimension_numbers<[1], [0], [0], [1], [0, 0, 1, 1], [], []>} : vector<8x8xf32>, vector<8x105xf32>, vector<8x105xf32> -> vector<8x105xf32>
    %c0_185 = arith.constant 0 : index
    %c130_186 = arith.constant 130 : index
    %227 = vector.load %arg12[%c0_185, %c130_186] : memref<8x256xf32, #tpu.memory_space<vmem>>, vector<8x105xf32>
    %228 = vector.extract_strided_slice %222 {offsets = [1, 0, 0], sizes = [1, 8, 8], strides = [1, 1, 1]} : vector<2x8x8xf32> to vector<1x8x8xf32>
    %229 = vector.shape_cast %228 : vector<1x8x8xf32> to vector<8x8xf32>
    %cst_187 = arith.constant dense<0.000000e+00> : vector<8x105xf32>
    %230 = tpu.matmul %229, %227, %cst_187 {dimension_numbers = #tpu.dot_dimension_numbers<[1], [0], [0], [1], [0, 0, 1, 1], [], []>} : vector<8x8xf32>, vector<8x105xf32>, vector<8x105xf32> -> vector<8x105xf32>
    %231 = arith.addf %226, %230 : vector<8x105xf32>
    %cst_188 = arith.constant 0.000000e+00 : f32
    %232 = vector.broadcast %cst_188 : f32 to vector<8x105xf32>
    %233 = arith.maximumf %231, %232 : vector<8x105xf32>
    %234 = math.tanh %231 : vector<8x105xf32>
    %235 = arith.mulf %233, %234 : vector<8x105xf32>
    %c6_189 = arith.constant 6 : index
    %c0_190 = arith.constant 0 : index
    %c0_191 = arith.constant 0 : index
    %236 = vector.load %arg4[%c6_189, %c0_190, %c0_191] : memref<8x8x8xf32, #tpu.memory_space<vmem>>, vector<1x8x8xf32>
    %237 = vector.shape_cast %236 : vector<1x8x8xf32> to vector<8x8xf32>
    %cst_192 = arith.constant dense<0.000000e+00> : vector<8x105xf32>
    %238 = tpu.matmul %237, %235, %cst_192 {dimension_numbers = #tpu.dot_dimension_numbers<[1], [0], [0], [1], [0, 0, 1, 1], [], []>} : vector<8x8xf32>, vector<8x105xf32>, vector<8x105xf32> -> vector<8x105xf32>
    %c6_193 = arith.constant 6 : index
    %c0_194 = arith.constant 0 : index
    %c0_195 = arith.constant 0 : index
    %239 = vector.load %arg5[%c6_193, %c0_194, %c0_195] : memref<8x8x1xf32, #tpu.memory_space<vmem>>, vector<1x8x1xf32>
    %240 = vector.shape_cast %239 : vector<1x8x1xf32> to vector<8x1xf32>
    %241 = vector.broadcast %240 : vector<8x1xf32> to vector<8x105xf32>
    %242 = arith.addf %238, %241 : vector<8x105xf32>
    %c0_196 = arith.constant 0 : index
    %c132_197 = arith.constant 132 : index
    %243 = vector.load %arg12[%c0_196, %c132_197] : memref<8x256xf32, #tpu.memory_space<vmem>>, vector<8x105xf32>
    %244 = arith.addf %242, %243 : vector<8x105xf32>
    %245 = vector.extract_strided_slice %235 {offsets = [0, 9], sizes = [8, 96], strides = [1, 1]} : vector<8x105xf32> to vector<8x96xf32>
    %c6_198 = arith.constant 6 : index
    %c0_199 = arith.constant 0 : index
    %c0_200 = arith.constant 0 : index
    %246 = vector.load %arg6[%c6_198, %c0_199, %c0_200] : memref<8x8x8xf32, #tpu.memory_space<vmem>>, vector<1x8x8xf32>
    %247 = vector.shape_cast %246 : vector<1x8x8xf32> to vector<8x8xf32>
    %cst_201 = arith.constant dense<0.000000e+00> : vector<8x96xf32>
    %248 = tpu.matmul %247, %245, %cst_201 {dimension_numbers = #tpu.dot_dimension_numbers<[1], [0], [0], [1], [0, 0, 1, 1], [], []>} : vector<8x8xf32>, vector<8x96xf32>, vector<8x96xf32> -> vector<8x96xf32>
    %249 = arith.addf %219, %248 : vector<8x96xf32>
    %c6_202 = arith.constant 6 : index
    %c0_203 = arith.constant 0 : index
    %c0_204 = arith.constant 0 : index
    %250 = vector.load %arg7[%c6_202, %c0_203, %c0_204] : memref<8x8x1xf32, #tpu.memory_space<vmem>>, vector<1x8x1xf32>
    %251 = vector.shape_cast %250 : vector<1x8x1xf32> to vector<8x1xf32>
    %252 = vector.broadcast %251 : vector<8x1xf32> to vector<8x96xf32>
    %253 = arith.addf %249, %252 : vector<8x96xf32>
    %c0_205 = arith.constant 0 : index
    %c128_206 = arith.constant 128 : index
    %254 = vector.load %arg12[%c0_205, %c128_206] : memref<8x256xf32, #tpu.memory_space<vmem>>, vector<8x105xf32>
    tpu.vector_store %arg12[%c0_205, %c128_206], %244 {strides = array<i32>} : memref<8x256xf32, #tpu.memory_space<vmem>>, vector<8x105xf32>,
    %c7 = arith.constant 7 : index
    %c0_207 = arith.constant 0 : index
    %c0_208 = arith.constant 0 : index
    %c0_209 = arith.constant 0 : index
    %255 = vector.load %arg3[%c7, %c0_207, %c0_208, %c0_209] : memref<8x2x8x8xf32, #tpu.memory_space<vmem>>, vector<1x2x8x8xf32>
    %256 = vector.shape_cast %255 : vector<1x2x8x8xf32> to vector<2x8x8xf32>
    %c0_210 = arith.constant 0 : index
    %c124_211 = arith.constant 124 : index
    %257 = vector.load %arg12[%c0_210, %c124_211] : memref<8x256xf32, #tpu.memory_space<vmem>>, vector<8x97xf32>
    %258 = vector.extract_strided_slice %256 {offsets = [0, 0, 0], sizes = [1, 8, 8], strides = [1, 1, 1]} : vector<2x8x8xf32> to vector<1x8x8xf32>
    %259 = vector.shape_cast %258 : vector<1x8x8xf32> to vector<8x8xf32>
    %cst_212 = arith.constant dense<0.000000e+00> : vector<8x97xf32>
    %260 = tpu.matmul %259, %257, %cst_212 {dimension_numbers = #tpu.dot_dimension_numbers<[1], [0], [0], [1], [0, 0, 1, 1], [], []>} : vector<8x8xf32>, vector<8x97xf32>, vector<8x97xf32> -> vector<8x97xf32>
    %c0_213 = arith.constant 0 : index
    %c132_214 = arith.constant 132 : index
    %261 = vector.load %arg12[%c0_213, %c132_214] : memref<8x256xf32, #tpu.memory_space<vmem>>, vector<8x97xf32>
    %262 = vector.extract_strided_slice %256 {offsets = [1, 0, 0], sizes = [1, 8, 8], strides = [1, 1, 1]} : vector<2x8x8xf32> to vector<1x8x8xf32>
    %263 = vector.shape_cast %262 : vector<1x8x8xf32> to vector<8x8xf32>
    %cst_215 = arith.constant dense<0.000000e+00> : vector<8x97xf32>
    %264 = tpu.matmul %263, %261, %cst_215 {dimension_numbers = #tpu.dot_dimension_numbers<[1], [0], [0], [1], [0, 0, 1, 1], [], []>} : vector<8x8xf32>, vector<8x97xf32>, vector<8x97xf32> -> vector<8x97xf32>
    %265 = arith.addf %260, %264 : vector<8x97xf32>
    %cst_216 = arith.constant 0.000000e+00 : f32
    %266 = vector.broadcast %cst_216 : f32 to vector<8x97xf32>
    %267 = arith.maximumf %265, %266 : vector<8x97xf32>
    %268 = math.tanh %265 : vector<8x97xf32>
    %269 = arith.mulf %267, %268 : vector<8x97xf32>
    %c7_217 = arith.constant 7 : index
    %c0_218 = arith.constant 0 : index
    %c0_219 = arith.constant 0 : index
    %270 = vector.load %arg4[%c7_217, %c0_218, %c0_219] : memref<8x8x8xf32, #tpu.memory_space<vmem>>, vector<1x8x8xf32>
    %271 = vector.shape_cast %270 : vector<1x8x8xf32> to vector<8x8xf32>
    %cst_220 = arith.constant dense<0.000000e+00> : vector<8x97xf32>
    %272 = tpu.matmul %271, %269, %cst_220 {dimension_numbers = #tpu.dot_dimension_numbers<[1], [0], [0], [1], [0, 0, 1, 1], [], []>} : vector<8x8xf32>, vector<8x97xf32>, vector<8x97xf32> -> vector<8x97xf32>
    %c7_221 = arith.constant 7 : index
    %c0_222 = arith.constant 0 : index
    %c0_223 = arith.constant 0 : index
    %273 = vector.load %arg5[%c7_221, %c0_222, %c0_223] : memref<8x8x1xf32, #tpu.memory_space<vmem>>, vector<1x8x1xf32>
    %274 = vector.shape_cast %273 : vector<1x8x1xf32> to vector<8x1xf32>
    %275 = vector.broadcast %274 : vector<8x1xf32> to vector<8x97xf32>
    %276 = arith.addf %272, %275 : vector<8x97xf32>
    %c0_224 = arith.constant 0 : index
    %c136_225 = arith.constant 136 : index
    %277 = vector.load %arg12[%c0_224, %c136_225] : memref<8x256xf32, #tpu.memory_space<vmem>>, vector<8x97xf32>
    %278 = arith.addf %276, %277 : vector<8x97xf32>
    %279 = vector.extract_strided_slice %269 {offsets = [0, 1], sizes = [8, 96], strides = [1, 1]} : vector<8x97xf32> to vector<8x96xf32>
    %c7_226 = arith.constant 7 : index
    %c0_227 = arith.constant 0 : index
    %c0_228 = arith.constant 0 : index
    %280 = vector.load %arg6[%c7_226, %c0_227, %c0_228] : memref<8x8x8xf32, #tpu.memory_space<vmem>>, vector<1x8x8xf32>
    %281 = vector.shape_cast %280 : vector<1x8x8xf32> to vector<8x8xf32>
    %cst_229 = arith.constant dense<0.000000e+00> : vector<8x96xf32>
    %282 = tpu.matmul %281, %279, %cst_229 {dimension_numbers = #tpu.dot_dimension_numbers<[1], [0], [0], [1], [0, 0, 1, 1], [], []>} : vector<8x8xf32>, vector<8x96xf32>, vector<8x96xf32> -> vector<8x96xf32>
    %283 = arith.addf %253, %282 : vector<8x96xf32>
    %c7_230 = arith.constant 7 : index
    %c0_231 = arith.constant 0 : index
    %c0_232 = arith.constant 0 : index
    %284 = vector.load %arg7[%c7_230, %c0_231, %c0_232] : memref<8x8x1xf32, #tpu.memory_space<vmem>>, vector<1x8x1xf32>
    %285 = vector.shape_cast %284 : vector<1x8x1xf32> to vector<8x1xf32>
    %286 = vector.broadcast %285 : vector<8x1xf32> to vector<8x96xf32>
    %287 = arith.addf %283, %286 : vector<8x96xf32>
    %c0_233 = arith.constant 0 : index
    %c128_234 = arith.constant 128 : index
    %288 = vector.load %arg12[%c0_233, %c128_234] : memref<8x256xf32, #tpu.memory_space<vmem>>, vector<8x97xf32>
    tpu.vector_store %arg12[%c0_233, %c128_234], %278 {strides = array<i32>} : memref<8x256xf32, #tpu.memory_space<vmem>>, vector<8x97xf32>,
    %cst_235 = arith.constant 1.250000e-01 : f32
    %289 = vector.broadcast %cst_235 : f32 to vector<8x96xf32>
    %290 = arith.mulf %287, %289 : vector<8x96xf32>
    %c0_236 = arith.constant 0 : index
    %c0_237 = arith.constant 0 : index
    %291 = vector.load %arg8[%c0_236, %c0_237] : memref<8x8xf32, #tpu.memory_space<vmem>>, vector<8x8xf32>
    %cst_238 = arith.constant 0.000000e+00 : f32
    %292 = vector.broadcast %cst_238 : f32 to vector<8x96xf32>
    %293 = arith.maximumf %290, %292 : vector<8x96xf32>
    %cst_239 = arith.constant dense<0.000000e+00> : vector<8x96xf32>
    %294 = tpu.matmul %291, %293, %cst_239 {dimension_numbers = #tpu.dot_dimension_numbers<[1], [0], [0], [1], [0, 0, 1, 1], [], []>} : vector<8x8xf32>, vector<8x96xf32>, vector<8x96xf32> -> vector<8x96xf32>
    %cst_240 = arith.constant 0.000000e+00 : f32
    %295 = vector.broadcast %cst_240 : f32 to vector<8x96xf32>
    %296 = arith.maximumf %294, %295 : vector<8x96xf32>
    %cst_241 = arith.constant dense<0.000000e+00> : vector<8x96xf32>
    %297 = tpu.matmul %291, %296, %cst_241 {dimension_numbers = #tpu.dot_dimension_numbers<[1], [0], [0], [1], [0, 0, 1, 1], [], []>} : vector<8x8xf32>, vector<8x96xf32>, vector<8x96xf32> -> vector<8x96xf32>
    %c0_242 = arith.constant 0 : index
    %c0_243 = arith.constant 0 : index
    %298 = vector.load %arg9[%c0_242, %c0_243] : memref<5x8xf32, #tpu.memory_space<vmem>>, vector<5x8xf32>
    %cst_244 = arith.constant dense<0.000000e+00> : vector<5x96xf32>
    %299 = tpu.matmul %298, %297, %cst_244 {dimension_numbers = #tpu.dot_dimension_numbers<[1], [0], [0], [1], [0, 0, 1, 1], [], []>} : vector<5x8xf32>, vector<8x96xf32>, vector<5x96xf32> -> vector<5x96xf32>
    %c0_245 = arith.constant 0 : index
    %c0_246 = arith.constant 0 : index
    %300 = vector.load %arg10[%c0_245, %c0_246] : memref<5x1xf32, #tpu.memory_space<vmem>>, vector<5x1xf32>
    %301 = vector.broadcast %300 : vector<5x1xf32> to vector<5x96xf32>
    %302 = arith.addf %299, %301 : vector<5x96xf32>
    %cst_247 = arith.constant dense<0xFF800000> : vector<5xf32>
    %303 = vector.multi_reduction <maximumf>, %302, %cst_247 [1] : vector<5x96xf32> to vector<5xf32>
    %304 = vector.shape_cast %303 : vector<5xf32> to vector<5x1xf32>
    %305 = vector.broadcast %304 : vector<5x1xf32> to vector<5x96xf32>
    %306 = arith.subf %302, %305 : vector<5x96xf32>
    %307 = math.exp %306 : vector<5x96xf32>
    %cst_248 = arith.constant dense<0.000000e+00> : vector<5xf32>
    %308 = vector.multi_reduction <add>, %307, %cst_248 [1] : vector<5x96xf32> to vector<5xf32>
    %309 = vector.shape_cast %308 : vector<5xf32> to vector<5x1xf32>
    %310 = vector.broadcast %309 : vector<5x1xf32> to vector<5x96xf32>
    %311 = arith.divf %307, %310 : vector<5x96xf32>
    %c0_249 = arith.constant 0 : index
    %c0_250 = arith.constant 0 : index
    %c0_251 = arith.constant 0 : index
    %312 = vector.load %arg11[%c0_249, %c0_250, %c0_251] : memref<1x5x96xf32, #tpu.memory_space<vmem>>, vector<1x5x96xf32>
    %313 = vector.shape_cast %312 : vector<1x5x96xf32> to vector<5x96xf32>
    %314 = vector.shape_cast %311 : vector<5x96xf32> to vector<1x5x96xf32>
    tpu.vector_store %arg11[%c0_249, %c0_250, %c0_251], %314 {strides = array<i32>} : memref<1x5x96xf32, #tpu.memory_space<vmem>>, vector<1x5x96xf32>,
    return
  }
  func.func @transform_0(%arg0: i32) -> (i32, i32, i32) {
    %c0_i32 = arith.constant 0 : i32
    %c0_i32_0 = arith.constant 0 : i32
    %c0_i32_1 = arith.constant 0 : i32
    return %arg0, %c0_i32, %c0_i32_0 : i32, i32, i32
  }
  func.func @transform_1(%arg0: i32) -> (i32, i32, i32) {
    %c0_i32 = arith.constant 0 : i32
    %c0_i32_0 = arith.constant 0 : i32
    %c0_i32_1 = arith.constant 0 : i32
    %c0_i32_2 = arith.constant 0 : i32
    return %c0_i32, %c0_i32_0, %c0_i32_1 : i32, i32, i32
  }
  func.func @transform_2(%arg0: i32) -> (i32, i32, i32, i32) {
    %c0_i32 = arith.constant 0 : i32
    %c0_i32_0 = arith.constant 0 : i32
    %c0_i32_1 = arith.constant 0 : i32
    %c0_i32_2 = arith.constant 0 : i32
    %c0_i32_3 = arith.constant 0 : i32
    return %c0_i32, %c0_i32_0, %c0_i32_1, %c0_i32_2 : i32, i32, i32, i32
  }
  func.func @transform_3(%arg0: i32) -> (i32, i32, i32) {
    %c0_i32 = arith.constant 0 : i32
    %c0_i32_0 = arith.constant 0 : i32
    %c0_i32_1 = arith.constant 0 : i32
    %c0_i32_2 = arith.constant 0 : i32
    return %c0_i32, %c0_i32_0, %c0_i32_1 : i32, i32, i32
  }
  func.func @transform_4(%arg0: i32) -> (i32, i32, i32) {
    %c0_i32 = arith.constant 0 : i32
    %c0_i32_0 = arith.constant 0 : i32
    %c0_i32_1 = arith.constant 0 : i32
    %c0_i32_2 = arith.constant 0 : i32
    return %c0_i32, %c0_i32_0, %c0_i32_1 : i32, i32, i32
  }
  func.func @transform_5(%arg0: i32) -> (i32, i32, i32) {
    %c0_i32 = arith.constant 0 : i32
    %c0_i32_0 = arith.constant 0 : i32
    %c0_i32_1 = arith.constant 0 : i32
    %c0_i32_2 = arith.constant 0 : i32
    return %c0_i32, %c0_i32_0, %c0_i32_1 : i32, i32, i32
  }
  func.func @transform_6(%arg0: i32) -> (i32, i32, i32) {
    %c0_i32 = arith.constant 0 : i32
    %c0_i32_0 = arith.constant 0 : i32
    %c0_i32_1 = arith.constant 0 : i32
    %c0_i32_2 = arith.constant 0 : i32
    return %c0_i32, %c0_i32_0, %c0_i32_1 : i32, i32, i32
  }
  func.func @transform_7(%arg0: i32) -> (i32, i32) {
    %c0_i32 = arith.constant 0 : i32
    %c0_i32_0 = arith.constant 0 : i32
    %c0_i32_1 = arith.constant 0 : i32
    return %c0_i32, %c0_i32_0 : i32, i32
  }
  func.func @transform_8(%arg0: i32) -> (i32, i32) {
    %c0_i32 = arith.constant 0 : i32
    %c0_i32_0 = arith.constant 0 : i32
    %c0_i32_1 = arith.constant 0 : i32
    return %c0_i32, %c0_i32_0 : i32, i32
  }
  func.func @transform_9(%arg0: i32) -> (i32, i32) {
    %c0_i32 = arith.constant 0 : i32
    %c0_i32_0 = arith.constant 0 : i32
    %c0_i32_1 = arith.constant 0 : i32
    return %c0_i32, %c0_i32_0 : i32, i32
  }
  func.func @transform_10(%arg0: i32) -> (i32, i32, i32) {
    %c0_i32 = arith.constant 0 : i32
    %c0_i32_0 = arith.constant 0 : i32
    %c0_i32_1 = arith.constant 0 : i32
    return %arg0, %c0_i32, %c0_i32_0 : i32, i32, i32
  }
}

</mosaic_0001>

<llo_original>
// kernel: tpu_custom_call.1
$region0: #{tpu_custom_call.1}
  #allocation0 [shape = 'u32[]', space=smem, size = 0x4, offset = 0x4, fixed_abs, tag = 'smem constant byte address 0x4 - core index']
  #allocation1 [shape = 'u32[144,128]{1,0:T(1,128)}', space=vmem, size = 0x12000, scoped, tag = 'internal scratch']
  #allocation2 [shape = 'f32[8,256]{1,0:T(8,128)}', space=vmem, size = 0x2000, scoped, tag = 'scratch operand']
  %s0 = inlined_call_operand.vmem [shape: f32[2,8,128], index: 0, kind: input, shape index: {}]
  %s1 = inlined_call_operand.hbm [shape: f32[2,8,8], index: 1, kind: input, shape index: {}]
  %s2 = inlined_call_operand.vmem [shape: f32[8,2,8,8], index: 2, kind: input, shape index: {}]
  %s3 = inlined_call_operand.hbm [shape: f32[8,8,8], index: 3, kind: input, shape index: {}]
  %s4 = inlined_call_operand.vmem [shape: f32[8,8,1], index: 4, kind: input, shape index: {}]
  %s5 = inlined_call_operand.hbm [shape: f32[8,8,8], index: 5, kind: input, shape index: {}]
  %s6 = inlined_call_operand.vmem [shape: f32[8,8,1], index: 6, kind: input, shape index: {}]
  %s7 = inlined_call_operand.hbm [shape: f32[8,8], index: 7, kind: input, shape index: {}]
  %s8 = inlined_call_operand.hbm [shape: f32[5,8], index: 8, kind: input, shape index: {}]
  %s9 = inlined_call_operand.vmem [shape: f32[5,1], index: 9, kind: input, shape index: {}]
  %s10 = inlined_call_operand.vmem [shape: f32[2,5,96], index: 10, kind: output, shape index: {}]
  %s11 = sld [smem:[#allocation0]]
  $region93: #{tpu_custom_call.1} parent=0
    _
  %s13 = ssub.s32 1, %s11
  %s14 = scalar_select 0, %s13, %s11
  $region1: #{tpu_custom_call.1} parent=0
    #allocation3 [shape = 'u8[8192]{0}', space=vmem, size = 0x2000, scoped, tag = 'input window, operand 1, single buffered']
    #allocation4 [shape = 's32[2]{0}', space=sflag, size = 0x8, scoped, tag = 'scoped memory for tpu_custom_call.1']
    #allocation5 [shape = 'u8[32768]{0}', space=vmem, size = 0x8000, scoped, tag = 'input window, operand 3, single buffered']
    #allocation6 [shape = 's32[1]{0}', space=sflag, size = 0x4, scoped, tag = 'scoped memory for tpu_custom_call.1']
    #allocation7 [shape = 'u8[32768]{0}', space=vmem, size = 0x8000, scoped, tag = 'input window, operand 5, single buffered']
    #allocation8 [shape = 'u8[4096]{0}', space=vmem, size = 0x1000, scoped, tag = 'input window, operand 7, single buffered']
    #allocation9 [shape = 's32[1]{0}', space=sflag, size = 0x4, scoped, tag = 'scoped memory for tpu_custom_call.1']
    #allocation10 [shape = 'u8[4096]{0}', space=vmem, size = 0x1000, scoped, tag = 'input window, operand 8, single buffered']
    %15 = vsyncpa [#allocation4], 0
    %16 = vsyncpa [#allocation6], 0
    %17 = vsyncpa [#allocation9], 0
    loop: start=0, step=1, limit=4
    $region2: #{tpu_custom_call.1} parent=1 // loop_pre_header
      _
    $region3: #{tpu_custom_call.1} parent=1 // loop_header
      %s19 = sphi 0, %s23
      %p20 = scmp.ge.s32.totalorder %s19, 4
      %s29 = sphi 0, %s31
      %s32 = sphi 0, %s29
      %s33 = sphi 0, %s32
      %s49 = sphi 0, %s33
      %s53 = sphi 0, %s53
      %s55 = sphi 0, %s53
      %s56 = sphi 0, %s55
      %s70 = sphi 0, %s56
      %s74 = sphi 0, %s74
      %s76 = sphi 0, %s74
      %s77 = sphi 0, %s76
      %s91 = sphi 0, %s77
      %s95 = sphi 0, %s95
      %s97 = sphi 0, %s95
      %s98 = sphi 0, %s97
      %s112 = sphi 0, %s98
      %s116 = sphi 0, %s116
      %s118 = sphi 0, %s116
      %s119 = sphi 0, %s118
      %s133 = sphi 0, %s119
      %s137 = sphi 0, %s137
      %s139 = sphi 0, %s137
      %s140 = sphi 0, %s139
      %s154 = sphi 0, %s140
      %s158 = sphi 0, %s158
      %s160 = sphi 0, %s158
      %s161 = sphi 0, %s160
      %s175 = sphi 0, %s161
      %s179 = sphi 0, %s179
      %s181 = sphi 0, %s179
      %s182 = sphi 0, %s181
      %s196 = sphi 0, %s182
      %s200 = sphi 0, %s200
      %s202 = sphi 0, %s200
      %s203 = sphi 0, %s202
      %s217 = sphi 0, %s203
      %s221 = sphi 0, %s221
      %s223 = sphi 0, %s221
      %s224 = sphi 0, %s223
      %s238 = sphi 0, %s224
      %s244 = sphi 0, %s246
      %s247 = sphi 0, %s244
      %s248 = sphi 0, %s247
      %s264 = sphi 0, %s248
    $region4: #{tpu_custom_call.1} parent=1 // loop_header_branch
      %22 = sbr.rel (%p20) target = $region8
    $region5: #{tpu_custom_call.1} parent=1 // loop_body
      %s24 = ssub.s32 %s19, 1
      %s25 = ssub.s32 %s19, 2
      %s26 = sadd.s32 %s19, 1
      %s27 = ssub.s32 %s19, %s26
      %p28 = scmp.eq.s32.totalorder %s27, 0
      %s30 = sadd.s32 %s29, 1
      %s31 = scalar_select %p28, %s29, %s30
      %p34 = pneg %p28
      %p35 = scmp.eq.s32.totalorder %s19, 1
      %p36 = por %p34, %p35
      %p37 = scmp.ne.s32.totalorder %s29, %s32
      %p38 = scmp.eq.s32.totalorder %s19, 0
      %p39 = por %p37, %p38
      %p40 = scmp.ne.s32.totalorder %s29, %s32
      %p41 = scmp.eq.s32.totalorder %s24, 1
      %p42 = por %p40, %p41
      %p43 = scmp.ne.s32.totalorder %s32, %s33
      %p44 = scmp.eq.s32.totalorder %s24, 0
      %p45 = por %p43, %p44
      %p46 = scmp.ne.s32.totalorder %s32, %s33
      %p47 = scmp.eq.s32.totalorder %s25, 1
      %p48 = por %p46, %p47
      %p50 = scmp.ne.s32.totalorder %s33, %s49
      %p51 = scmp.eq.s32.totalorder %s25, 0
      %p52 = por %p50, %p51
      %s54 = sadd.s32 %s53, 1
      %p57 = scmp.eq.s32.totalorder %s19, 1
      %p58 = scmp.ne.s32.totalorder %s53, %s55
      %p59 = scmp.eq.s32.totalorder %s19, 0
      %p60 = por %p58, %p59
      %p61 = scmp.ne.s32.totalorder %s53, %s55
      %p62 = scmp.eq.s32.totalorder %s24, 1
      %p63 = por %p61, %p62
      %p64 = scmp.ne.s32.totalorder %s55, %s56
      %p65 = scmp.eq.s32.totalorder %s24, 0
      %p66 = por %p64, %p65
      %p67 = scmp.ne.s32.totalorder %s55, %s56
      %p68 = scmp.eq.s32.totalorder %s25, 1
      %p69 = por %p67, %p68
      %p71 = scmp.ne.s32.totalorder %s56, %s70
      %p72 = scmp.eq.s32.totalorder %s25, 0
      %p73 = por %p71, %p72
      %s75 = sadd.s32 %s74, 1
      %p78 = scmp.eq.s32.totalorder %s19, 1
      %p79 = scmp.ne.s32.totalorder %s74, %s76
      %p80 = scmp.eq.s32.totalorder %s19, 0
      %p81 = por %p79, %p80
      %p82 = scmp.ne.s32.totalorder %s74, %s76
      %p83 = scmp.eq.s32.totalorder %s24, 1
      %p84 = por %p82, %p83
      %p85 = scmp.ne.s32.totalorder %s76, %s77
      %p86 = scmp.eq.s32.totalorder %s24, 0
      %p87 = por %p85, %p86
      %p88 = scmp.ne.s32.totalorder %s76, %s77
      %p89 = scmp.eq.s32.totalorder %s25, 1
      %p90 = por %p88, %p89
      %p92 = scmp.ne.s32.totalorder %s77, %s91
      %p93 = scmp.eq.s32.totalorder %s25, 0
      %p94 = por %p92, %p93
      %s96 = sadd.s32 %s95, 1
      %p99 = scmp.eq.s32.totalorder %s19, 1
      %p100 = scmp.ne.s32.totalorder %s95, %s97
      %p101 = scmp.eq.s32.totalorder %s19, 0
      %p102 = por %p100, %p101
      %p103 = scmp.ne.s32.totalorder %s95, %s97
      %p104 = scmp.eq.s32.totalorder %s24, 1
      %p105 = por %p103, %p104
      %p106 = scmp.ne.s32.totalorder %s97, %s98
      %p107 = scmp.eq.s32.totalorder %s24, 0
      %p108 = por %p106, %p107
      %p109 = scmp.ne.s32.totalorder %s97, %s98
      %p110 = scmp.eq.s32.totalorder %s25, 1
      %p111 = por %p109, %p110
      %p113 = scmp.ne.s32.totalorder %s98, %s112
      %p114 = scmp.eq.s32.totalorder %s25, 0
      %p115 = por %p113, %p114
      %s117 = sadd.s32 %s116, 1
      %p120 = scmp.eq.s32.totalorder %s19, 1
      %p121 = scmp.ne.s32.totalorder %s116, %s118
      %p122 = scmp.eq.s32.totalorder %s19, 0
      %p123 = por %p121, %p122
      %p124 = scmp.ne.s32.totalorder %s116, %s118
      %p125 = scmp.eq.s32.totalorder %s24, 1
      %p126 = por %p124, %p125
      %p127 = scmp.ne.s32.totalorder %s118, %s119
      %p128 = scmp.eq.s32.totalorder %s24, 0
      %p129 = por %p127, %p128
      %p130 = scmp.ne.s32.totalorder %s118, %s119
      %p131 = scmp.eq.s32.totalorder %s25, 1
      %p132 = por %p130, %p131
      %p134 = scmp.ne.s32.totalorder %s119, %s133
      %p135 = scmp.eq.s32.totalorder %s25, 0
      %p136 = por %p134, %p135
      %s138 = sadd.s32 %s137, 1
      %p141 = scmp.eq.s32.totalorder %s19, 1
      %p142 = scmp.ne.s32.totalorder %s137, %s139
      %p143 = scmp.eq.s32.totalorder %s19, 0
      %p144 = por %p142, %p143
      %p145 = scmp.ne.s32.totalorder %s137, %s139
      %p146 = scmp.eq.s32.totalorder %s24, 1
      %p147 = por %p145, %p146
      %p148 = scmp.ne.s32.totalorder %s139, %s140
      %p149 = scmp.eq.s32.totalorder %s24, 0
      %p150 = por %p148, %p149
      %p151 = scmp.ne.s32.totalorder %s139, %s140
      %p152 = scmp.eq.s32.totalorder %s25, 1
      %p153 = por %p151, %p152
      %p155 = scmp.ne.s32.totalorder %s140, %s154
      %p156 = scmp.eq.s32.totalorder %s25, 0
      %p157 = por %p155, %p156
      %s159 = sadd.s32 %s158, 1
      %p162 = scmp.eq.s32.totalorder %s19, 1
      %p163 = scmp.ne.s32.totalorder %s158, %s160
      %p164 = scmp.eq.s32.totalorder %s19, 0
      %p165 = por %p163, %p164
      %p166 = scmp.ne.s32.totalorder %s158, %s160
      %p167 = scmp.eq.s32.totalorder %s24, 1
      %p168 = por %p166, %p167
      %p169 = scmp.ne.s32.totalorder %s160, %s161
      %p170 = scmp.eq.s32.totalorder %s24, 0
      %p171 = por %p169, %p170
      %p172 = scmp.ne.s32.totalorder %s160, %s161
      %p173 = scmp.eq.s32.totalorder %s25, 1
      %p174 = por %p172, %p173
      %p176 = scmp.ne.s32.totalorder %s161, %s175
      %p177 = scmp.eq.s32.totalorder %s25, 0
      %p178 = por %p176, %p177
      %s180 = sadd.s32 %s179, 1
      %p183 = scmp.eq.s32.totalorder %s19, 1
      %p184 = scmp.ne.s32.totalorder %s179, %s181
      %p185 = scmp.eq.s32.totalorder %s19, 0
      %p186 = por %p184, %p185
      %p187 = scmp.ne.s32.totalorder %s179, %s181
      %p188 = scmp.eq.s32.totalorder %s24, 1
      %p189 = por %p187, %p188
      %p190 = scmp.ne.s32.totalorder %s181, %s182
      %p191 = scmp.eq.s32.totalorder %s24, 0
      %p192 = por %p190, %p191
      %p193 = scmp.ne.s32.totalorder %s181, %s182
      %p194 = scmp.eq.s32.totalorder %s25, 1
      %p195 = por %p193, %p194
      %p197 = scmp.ne.s32.totalorder %s182, %s196
      %p198 = scmp.eq.s32.totalorder %s25, 0
      %p199 = por %p197, %p198
      %s201 = sadd.s32 %s200, 1
      %p204 = scmp.eq.s32.totalorder %s19, 1
      %p205 = scmp.ne.s32.totalorder %s200, %s202
      %p206 = scmp.eq.s32.totalorder %s19, 0
      %p207 = por %p205, %p206
      %p208 = scmp.ne.s32.totalorder %s200, %s202
      %p209 = scmp.eq.s32.totalorder %s24, 1
      %p210 = por %p208, %p209
      %p211 = scmp.ne.s32.totalorder %s202, %s203
      %p212 = scmp.eq.s32.totalorder %s24, 0
      %p213 = por %p211, %p212
      %p214 = scmp.ne.s32.totalorder %s202, %s203
      %p215 = scmp.eq.s32.totalorder %s25, 1
      %p216 = por %p214, %p215
      %p218 = scmp.ne.s32.totalorder %s203, %s217
      %p219 = scmp.eq.s32.totalorder %s25, 0
      %p220 = por %p218, %p219
      %s222 = sadd.s32 %s221, 1
      %p225 = scmp.eq.s32.totalorder %s19, 1
      %p226 = scmp.ne.s32.totalorder %s221, %s223
      %p227 = scmp.eq.s32.totalorder %s19, 0
      %p228 = por %p226, %p227
      %p229 = scmp.ne.s32.totalorder %s221, %s223
      %p230 = scmp.eq.s32.totalorder %s24, 1
      %p231 = por %p229, %p230
      %p232 = scmp.ne.s32.totalorder %s223, %s224
      %p233 = scmp.eq.s32.totalorder %s24, 0
      %p234 = por %p232, %p233
      %p235 = scmp.ne.s32.totalorder %s223, %s224
      %p236 = scmp.eq.s32.totalorder %s25, 1
      %p237 = por %p235, %p236
      %p239 = scmp.ne.s32.totalorder %s224, %s238
      %p240 = scmp.eq.s32.totalorder %s25, 0
      %p241 = por %p239, %p240
      %s242 = ssub.s32 %s19, %s26
      %p243 = scmp.eq.s32.totalorder %s242, 0
      %s245 = sadd.s32 %s244, 1
      %s246 = scalar_select %p243, %s244, %s245
      %p249 = pneg %p243
      %p250 = scmp.eq.s32.totalorder %s19, 1
      %p251 = por %p249, %p250
      %p252 = scmp.ne.s32.totalorder %s244, %s247
      %p253 = scmp.eq.s32.totalorder %s19, 0
      %p254 = por %p252, %p253
      %p255 = scmp.ne.s32.totalorder %s244, %s247
      %p256 = scmp.eq.s32.totalorder %s24, 1
      %p257 = por %p255, %p256
      %p258 = scmp.ne.s32.totalorder %s247, %s248
      %p259 = scmp.eq.s32.totalorder %s24, 0
      %p260 = por %p258, %p259
      %p261 = scmp.ne.s32.totalorder %s247, %s248
      %p262 = scmp.eq.s32.totalorder %s25, 1
      %p263 = por %p261, %p262
      %p265 = scmp.ne.s32.totalorder %s248, %s264
      %p266 = scmp.eq.s32.totalorder %s25, 0
      %p267 = por %p265, %p266
      %p268 = scmp.le.s32.totalorder 1, %s19
      %p269 = scmp.lt.s32.totalorder %s19, 3
      %p270 = pnand %p268, %p269
      %p271 = pneg %p270
      // Predicated region
      $region9: #{tpu_custom_call.1} parent=5 // pred_check
        _
      $region10: #{tpu_custom_call.1} parent=5 // pred_check_branch
        %273 = sbr.rel (%p270) target = $region12
      $region11: #{tpu_custom_call.1} parent=5 // pred_region
        %s274 = ssub.s32 %s19, 1
        // Predicated region
        $region13: #{tpu_custom_call.1} parent=11 // pred_check
          %p275 = pneg %p66
        $region14: #{tpu_custom_call.1} parent=11 // pred_check_branch
          %277 = sbr.rel (%p275) target = $region16
        $region15: #{tpu_custom_call.1} parent=11 // pred_region
          %s279 = ssub.s32 256, 256
          %280 = vsyncadd [#allocation4], %s279
          %s281 = sshll.u32 [#allocation3], 4
          %s282 = int_to_ptr.vmem [resolvable:$true] %s281
          %287 = dma.hbm_to_vmem [thread:$0]  %s1, 256, %s282, [#allocation4], 128, 128, 8
        $region16: #{tpu_custom_call.1} parent=11 // pred_fallthru
          _
        // Predicated region
        $region17: #{tpu_custom_call.1} parent=11 // pred_check
          %p288 = pneg %p87
        $region18: #{tpu_custom_call.1} parent=11 // pred_check_branch
          %290 = sbr.rel (%p288) target = $region20
        $region19: #{tpu_custom_call.1} parent=11 // pred_region
          _
        $region20: #{tpu_custom_call.1} parent=11 // pred_fallthru
          _
        // Predicated region
        $region21: #{tpu_custom_call.1} parent=11 // pred_check
          %p291 = pneg %p108
        $region22: #{tpu_custom_call.1} parent=11 // pred_check_branch
          %293 = sbr.rel (%p291) target = $region24
        $region23: #{tpu_custom_call.1} parent=11 // pred_region
          %s295 = ssub.s32 1024, 1024
          %296 = vsyncadd [#allocation6], %s295
          %s297 = sshll.u32 [#allocation5], 4
          %s298 = int_to_ptr.vmem [resolvable:$true] %s297
          %303 = dma.hbm_to_vmem [thread:$0]  %s3, 1024, %s298, [#allocation6], 128, 128, 8
        $region24: #{tpu_custom_call.1} parent=11 // pred_fallthru
          _
        // Predicated region
        $region25: #{tpu_custom_call.1} parent=11 // pred_check
          %p304 = pneg %p129
        $region26: #{tpu_custom_call.1} parent=11 // pred_check_branch
          %306 = sbr.rel (%p304) target = $region28
        $region27: #{tpu_custom_call.1} parent=11 // pred_region
          _
        $region28: #{tpu_custom_call.1} parent=11 // pred_fallthru
          _
        // Predicated region
        $region29: #{tpu_custom_call.1} parent=11 // pred_check
          %p307 = pneg %p150
        $region30: #{tpu_custom_call.1} parent=11 // pred_check_branch
          %309 = sbr.rel (%p307) target = $region32
        $region31: #{tpu_custom_call.1} parent=11 // pred_region
          %s311 = ssub.s32 1024, 1024
          %312 = vsyncadd [#allocation6], %s311
          %s313 = sshll.u32 [#allocation7], 4
          %s314 = int_to_ptr.vmem [resolvable:$true] %s313
          %319 = dma.hbm_to_vmem [thread:$0]  %s5, 1024, %s314, [#allocation6], 128, 128, 8
        $region32: #{tpu_custom_call.1} parent=11 // pred_fallthru
          _
        // Predicated region
        $region33: #{tpu_custom_call.1} parent=11 // pred_check
          %p320 = pneg %p171
        $region34: #{tpu_custom_call.1} parent=11 // pred_check_branch
          %322 = sbr.rel (%p320) target = $region36
        $region35: #{tpu_custom_call.1} parent=11 // pred_region
          _
        $region36: #{tpu_custom_call.1} parent=11 // pred_fallthru
          _
        // Predicated region
        $region37: #{tpu_custom_call.1} parent=11 // pred_check
          %p323 = pneg %p192
        $region38: #{tpu_custom_call.1} parent=11 // pred_check_branch
          %325 = sbr.rel (%p323) target = $region40
        $region39: #{tpu_custom_call.1} parent=11 // pred_region
          %s327 = ssub.s32 128, 128
          %328 = vsyncadd [#allocation9], %s327
          %s330 = sshll.u32 [#allocation8], 4
          %s331 = int_to_ptr.vmem [resolvable:$true] %s330
          %333 = dma.hbm_to_vmem [thread:$0]  %s7, 128, %s331, [#allocation9]
        $region40: #{tpu_custom_call.1} parent=11 // pred_fallthru
          _
        // Predicated region
        $region41: #{tpu_custom_call.1} parent=11 // pred_check
          %p334 = pneg %p213
        $region42: #{tpu_custom_call.1} parent=11 // pred_check_branch
          %336 = sbr.rel (%p334) target = $region44
        $region43: #{tpu_custom_call.1} parent=11 // pred_region
          %s338 = ssub.s32 128, 128
          %339 = vsyncadd [#allocation9], %s338
          %s341 = sshll.u32 [#allocation10], 4
          %s342 = int_to_ptr.vmem [resolvable:$true] %s341
          %344 = dma.hbm_to_vmem [thread:$0]  %s8, 128, %s342, [#allocation9]
        $region44: #{tpu_custom_call.1} parent=11 // pred_fallthru
          _
        // Predicated region
        $region45: #{tpu_custom_call.1} parent=11 // pred_check
          %p345 = pneg %p234
        $region46: #{tpu_custom_call.1} parent=11 // pred_check_branch
          %347 = sbr.rel (%p345) target = $region48
        $region47: #{tpu_custom_call.1} parent=11 // pred_region
          _
        $region48: #{tpu_custom_call.1} parent=11 // pred_fallthru
          _
      $region12: #{tpu_custom_call.1} parent=5 // pred_fallthru
        _
      %p348 = scmp.lt.s32.totalorder %s19, 2
      // Predicated region
      $region49: #{tpu_custom_call.1} parent=5 // pred_check
        %p349 = pneg %p348
      $region50: #{tpu_custom_call.1} parent=5 // pred_check_branch
        %351 = sbr.rel (%p349) target = $region52
      $region51: #{tpu_custom_call.1} parent=5 // pred_region
        // Predicated region
        $region53: #{tpu_custom_call.1} parent=51 // pred_check
          %p352 = pneg %p39
        $region54: #{tpu_custom_call.1} parent=51 // pred_check_branch
          %354 = sbr.rel (%p352) target = $region56
        $region55: #{tpu_custom_call.1} parent=51 // pred_region
          %p355 = scmp.lt.s32.totalorder %s19, 1
          %s356 = scalar_select %p355, %s19, 1
          %s357 = smul.addr %s356, 8
          %s358 = scalar_lea.vmem %s0, %s357
        $region56: #{tpu_custom_call.1} parent=51 // pred_fallthru
          _
      $region52: #{tpu_custom_call.1} parent=5 // pred_fallthru
        _
      %p359 = scmp.le.s32.totalorder 1, %s19
      %p360 = scmp.lt.s32.totalorder %s19, 3
      %p361 = pnand %p359, %p360
      %p362 = pneg %p361
      // Predicated region
      $region57: #{tpu_custom_call.1} parent=5 // pred_check
        _
      $region58: #{tpu_custom_call.1} parent=5 // pred_check_branch
        %364 = sbr.rel (%p361) target = $region60
      $region59: #{tpu_custom_call.1} parent=5 // pred_region
        %s365 = ssub.s32 %s19, 1
        // Predicated region
        $region61: #{tpu_custom_call.1} parent=59 // pred_check
          %p366 = pneg %p66
        $region62: #{tpu_custom_call.1} parent=59 // pred_check_branch
          %368 = sbr.rel (%p366) target = $region64
        $region63: #{tpu_custom_call.1} parent=59 // pred_region
          %369 = dma.done [#allocation4], 256
        $region64: #{tpu_custom_call.1} parent=59 // pred_fallthru
          _
        // Predicated region
        $region65: #{tpu_custom_call.1} parent=59 // pred_check
          %p370 = pneg %p108
        $region66: #{tpu_custom_call.1} parent=59 // pred_check_branch
          %372 = sbr.rel (%p370) target = $region68
        $region67: #{tpu_custom_call.1} parent=59 // pred_region
          %373 = dma.done [#allocation6], 1024
        $region68: #{tpu_custom_call.1} parent=59 // pred_fallthru
          _
        // Predicated region
        $region69: #{tpu_custom_call.1} parent=59 // pred_check
          %p374 = pneg %p150
        $region70: #{tpu_custom_call.1} parent=59 // pred_check_branch
          %376 = sbr.rel (%p374) target = $region72
        $region71: #{tpu_custom_call.1} parent=59 // pred_region
          %377 = dma.done [#allocation6], 1024
        $region72: #{tpu_custom_call.1} parent=59 // pred_fallthru
          _
        // Predicated region
        $region73: #{tpu_custom_call.1} parent=59 // pred_check
          %p378 = pneg %p192
        $region74: #{tpu_custom_call.1} parent=59 // pred_check_branch
          %380 = sbr.rel (%p378) target = $region76
        $region75: #{tpu_custom_call.1} parent=59 // pred_region
          %381 = dma.done [#allocation9], 128
        $region76: #{tpu_custom_call.1} parent=59 // pred_fallthru
          _
        // Predicated region
        $region77: #{tpu_custom_call.1} parent=59 // pred_check
          %p382 = pneg %p213
        $region78: #{tpu_custom_call.1} parent=59 // pred_check_branch
          %384 = sbr.rel (%p382) target = $region80
        $region79: #{tpu_custom_call.1} parent=59 // pred_region
          %385 = dma.done [#allocation9], 128
        $region80: #{tpu_custom_call.1} parent=59 // pred_fallthru
          _
        %p386 = scmp.lt.s32.totalorder %s24, 1
        %s387 = scalar_select %p386, %s24, 1
        %s388 = smul.addr %s387, 8
        %s389 = scalar_lea.vmem %s0, %s388
        %p390 = pneg %p45
        %p391 = pneg %p42
        %p392 = pneg %p66
        %p393 = pneg %p63
        %p394 = pneg %p87
        %p395 = pneg %p84
        %p396 = pneg %p108
        %p397 = pneg %p105
        %p398 = pneg %p129
        %p399 = pneg %p126
        %p400 = pneg %p150
        %p401 = pneg %p147
        %p402 = pneg %p171
        %p403 = pneg %p168
        %p404 = pneg %p192
        %p405 = pneg %p189
        %p406 = pneg %p213
        %p407 = pneg %p210
        %p408 = pneg %p234
        %p409 = pneg %p231
        %p410 = pneg %p260
        %p411 = pneg %p257
        %p412 = scmp.lt.s32.totalorder %s24, 1
        %s413 = scalar_select %p412, %s24, 1
        %s414 = smul.addr %s413, 8
        %s415 = scalar_lea.vmem %s10, %s414
        %p416 = scmp.lt.s32.totalorder %s24, 1
        %s417 = scalar_select %p416, %s24, 1
        %s418 = smul.addr %s417, 8
        %s419 = scalar_lea.vmem %s0, %s418
        %p420 = scmp.lt.s32.totalorder %s24, 1
        %s421 = scalar_select %p420, %s24, 1
        %s422 = smul.addr %s421, 8
        %s423 = scalar_lea.vmem %s10, %s422
        %424 = vst [vmem:[#allocation2] sm:$0xff] 0.0
        %v425 = vld [vmem:[%s419] sm:$0xff]
        %426 = vst [vmem:[#allocation2 + $0x8] sm:$0xff] %v425
        %v427 = vld [vmem:[#allocation3] sm:$0xff]
        %v428 = vld [vmem:[#allocation3 + $0x8] sm:$0xff]
        %v429 = vld [vmem:[#allocation2 + $0x8] sm:$0xff]
        %431 = vrot.lane.b32.xlu0 %v429, 127
        %v432 = vpop.permute.xlu0 %431
        %vm434 = vcmask 64512
        %v436 = vsel %vm434, %v428, 0
        %438 = vmatprep.subr.mxu0 0.0
        %439 = vmatpush1.msra.mxu0 0.0
        %440 = vmatprep.subr.mxu0 0.0
        %441 = vmatpush1.msra.mxu0 0.0
        %442 = vmatprep.subr.mxu0 0.0
        %443 = vmatpush1.msra.mxu0 0.0
        %444 = vmatprep.subr.mxu0 0.0
        %445 = vmatpush1.msra.mxu0 0.0
        %446 = vmatprep.subr.mxu0 0.0
        %447 = vmatpush1.msra.mxu0 0.0
        %448 = vmatprep.subr.mxu0 0.0
        %449 = vmatpush1.msra.mxu0 0.0
        %450 = vmatprep.subr.mxu0 0.0
        %451 = vmatpush1.msra.mxu0 0.0
        %452 = vmatprep.subr.mxu0 0.0
        %453 = vmatpush1.msra.mxu0 0.0
        %454 = vmatprep.subr.mxu0 0.0
        %455 = vmatpush1.msra.mxu0 0.0
        %456 = vmatprep.subr.mxu0 0.0
        %457 = vmatpush1.msra.mxu0 0.0
        %458 = vmatprep.subr.mxu0 0.0
        %459 = vmatpush1.msra.mxu0 0.0
        %460 = vmatprep.subr.mxu0 0.0
        %461 = vmatpush1.msra.mxu0 0.0
        %462 = vmatprep.subr.mxu0 0.0
        %463 = vmatpush1.msra.mxu0 0.0
        %464 = vmatprep.subr.mxu0 0.0
        %465 = vmatpush1.msra.mxu0 0.0
        %466 = vmatprep.subr.mxu0 0.0
        %467 = vmatpush1.msra.mxu0 0.0
        %468 = vmatprep.subr.mxu0 0.0
        %469 = vmatpush1.msra.mxu0 %v432
        %470 = vmatprep.subr.mxu0 0.0
        %471 = vmatpush2.msra.mxu0 0.0
        %472 = vmatprep.subr.mxu0 0.0
        %473 = vmatpush2.msra.mxu0 0.0
        %474 = vmatprep.subr.mxu0 0.0
        %475 = vmatpush2.msra.mxu0 0.0
        %476 = vmatprep.subr.mxu0 0.0
        %477 = vmatpush2.msra.mxu0 0.0
        %478 = vmatprep.subr.mxu0 0.0
        %479 = vmatpush2.msra.mxu0 0.0
        %480 = vmatprep.subr.mxu0 0.0
        %481 = vmatpush2.msra.mxu0 0.0
        %482 = vmatprep.subr.mxu0 0.0
        %483 = vmatpush2.msra.mxu0 0.0
        %484 = vmatprep.subr.mxu0 0.0
        %485 = vmatpush2.msra.mxu0 0.0
        %486 = vmatprep.subr.mxu0 0.0
        %487 = vmatpush2.msra.mxu0 0.0
        %488 = vmatprep.subr.mxu0 0.0
        %489 = vmatpush2.msra.mxu0 0.0
        %490 = vmatprep.subr.mxu0 0.0
        %491 = vmatpush2.msra.mxu0 0.0
        %492 = vmatprep.subr.mxu0 0.0
        %493 = vmatpush2.msra.mxu0 0.0
        %494 = vmatprep.subr.mxu0 0.0
        %495 = vmatpush2.msra.mxu0 0.0
        %496 = vmatprep.subr.mxu0 0.0
        %497 = vmatpush2.msra.mxu0 0.0
        %498 = vmatprep.subr.mxu0 0.0
        %499 = vmatpush2.msra.mxu0 0.0
        %500 = vmatprep.subr.mxu0 0.0
        %501 = vmatpush2.msra.mxu0 0.0
        %502 = vmatprep.mubr.f32.mxu0 0.0
        %503 = vmatmul.mubr.f32.gmra.mxu0 %v436
        %v504 = vpop.f32.mrf.mxu0
        %v505 = vadd.f32 0.0, %v504
        %v506 = vpop.f32.mrf.mxu0
        %507 = vdwg.mxu0
        %v509 = vsel %vm434, %v427, 0
        %511 = vmatprep.subr.mxu0 0.0
        %512 = vmatpush1.msra.mxu0 0.0
        %513 = vmatprep.subr.mxu0 0.0
        %514 = vmatpush1.msra.mxu0 0.0
        %515 = vmatprep.subr.mxu0 0.0
        %516 = vmatpush1.msra.mxu0 0.0
        %517 = vmatprep.subr.mxu0 0.0
        %518 = vmatpush1.msra.mxu0 0.0
        %519 = vmatprep.subr.mxu0 0.0
        %520 = vmatpush1.msra.mxu0 0.0
        %521 = vmatprep.subr.mxu0 0.0
        %522 = vmatpush1.msra.mxu0 0.0
        %523 = vmatprep.subr.mxu0 0.0
        %524 = vmatpush1.msra.mxu0 0.0
        %525 = vmatprep.subr.mxu0 0.0
        %526 = vmatpush1.msra.mxu0 0.0
        %527 = vmatprep.subr.mxu0 0.0
        %528 = vmatpush1.msra.mxu0 0.0
        %529 = vmatprep.subr.mxu0 0.0
        %530 = vmatpush1.msra.mxu0 0.0
        %531 = vmatprep.subr.mxu0 0.0
        %532 = vmatpush1.msra.mxu0 0.0
        %533 = vmatprep.subr.mxu0 0.0
        %534 = vmatpush1.msra.mxu0 0.0
        %535 = vmatprep.subr.mxu0 0.0
        %536 = vmatpush1.msra.mxu0 0.0
        %537 = vmatprep.subr.mxu0 0.0
        %538 = vmatpush1.msra.mxu0 0.0
        %539 = vmatprep.subr.mxu0 0.0
        %540 = vmatpush1.msra.mxu0 0.0
        %541 = vmatprep.subr.mxu0 0.0
        %542 = vmatpush1.msra.mxu0 %v429
        %543 = vmatprep.subr.mxu0 0.0
        %544 = vmatpush2.msra.mxu0 0.0
        %545 = vmatprep.subr.mxu0 0.0
        %546 = vmatpush2.msra.mxu0 0.0
        %547 = vmatprep.subr.mxu0 0.0
        %548 = vmatpush2.msra.mxu0 0.0
        %549 = vmatprep.subr.mxu0 0.0
        %550 = vmatpush2.msra.mxu0 0.0
        %551 = vmatprep.subr.mxu0 0.0
        %552 = vmatpush2.msra.mxu0 0.0
        %553 = vmatprep.subr.mxu0 0.0
        %554 = vmatpush2.msra.mxu0 0.0
        %555 = vmatprep.subr.mxu0 0.0
        %556 = vmatpush2.msra.mxu0 0.0
        %557 = vmatprep.subr.mxu0 0.0
        %558 = vmatpush2.msra.mxu0 0.0
        %559 = vmatprep.subr.mxu0 0.0
        %560 = vmatpush2.msra.mxu0 0.0
        %561 = vmatprep.subr.mxu0 0.0
        %562 = vmatpush2.msra.mxu0 0.0
        %563 = vmatprep.subr.mxu0 0.0
        %564 = vmatpush2.msra.mxu0 0.0
        %565 = vmatprep.subr.mxu0 0.0
        %566 = vmatpush2.msra.mxu0 0.0
        %567 = vmatprep.subr.mxu0 0.0
        %568 = vmatpush2.msra.mxu0 0.0
        %569 = vmatprep.subr.mxu0 0.0
        %570 = vmatpush2.msra.mxu0 0.0
        %571 = vmatprep.subr.mxu0 0.0
        %572 = vmatpush2.msra.mxu0 0.0
        %573 = vmatprep.subr.mxu0 0.0
        %574 = vmatpush2.msra.mxu0 0.0
        %575 = vmatprep.mubr.f32.mxu0 0.0
        %576 = vmatmul.mubr.f32.gmra.mxu0 %v509
        %v577 = vpop.f32.mrf.mxu0
        %v578 = vadd.f32 %v505, %v577
        %v579 = vpop.f32.mrf.mxu0
        %580 = vdwg.mxu0
        %vm581 = vcmask 1039360
        %582 = vst.msk [vmem:[#allocation2 + $0x8] sm:$0xff] %vm581, %v578
        %v583 = vld [vmem:[%s2] sm:$0xff]
        %v584 = vld [vmem:[%s2 + $0x8] sm:$0xff]
        %v585 = vld [vmem:[#allocation2 + $0x8] sm:$0xff]
        %587 = vrot.lane.b32.xlu0 %v585, 127
        %v588 = vpop.permute.xlu0 %587
        %v591 = vsel %vm434, %v584, 0
        %593 = vmatprep.subr.mxu0 0.0
        %594 = vmatpush1.msra.mxu0 0.0
        %595 = vmatprep.subr.mxu0 0.0
        %596 = vmatpush1.msra.mxu0 0.0
        %597 = vmatprep.subr.mxu0 0.0
        %598 = vmatpush1.msra.mxu0 0.0
        %599 = vmatprep.subr.mxu0 0.0
        %600 = vmatpush1.msra.mxu0 0.0
        %601 = vmatprep.subr.mxu0 0.0
        %602 = vmatpush1.msra.mxu0 0.0
        %603 = vmatprep.subr.mxu0 0.0
        %604 = vmatpush1.msra.mxu0 0.0
        %605 = vmatprep.subr.mxu0 0.0
        %606 = vmatpush1.msra.mxu0 0.0
        %607 = vmatprep.subr.mxu0 0.0
        %608 = vmatpush1.msra.mxu0 0.0
        %609 = vmatprep.subr.mxu0 0.0
        %610 = vmatpush1.msra.mxu0 0.0
        %611 = vmatprep.subr.mxu0 0.0
        %612 = vmatpush1.msra.mxu0 0.0
        %613 = vmatprep.subr.mxu0 0.0
        %614 = vmatpush1.msra.mxu0 0.0
        %615 = vmatprep.subr.mxu0 0.0
        %616 = vmatpush1.msra.mxu0 0.0
        %617 = vmatprep.subr.mxu0 0.0
        %618 = vmatpush1.msra.mxu0 0.0
        %619 = vmatprep.subr.mxu0 0.0
        %620 = vmatpush1.msra.mxu0 0.0
        %621 = vmatprep.subr.mxu0 0.0
        %622 = vmatpush1.msra.mxu0 0.0
        %623 = vmatprep.subr.mxu0 0.0
        %624 = vmatpush1.msra.mxu0 %v588
        %625 = vmatprep.subr.mxu0 0.0
        %626 = vmatpush2.msra.mxu0 0.0
        %627 = vmatprep.subr.mxu0 0.0
        %628 = vmatpush2.msra.mxu0 0.0
        %629 = vmatprep.subr.mxu0 0.0
        %630 = vmatpush2.msra.mxu0 0.0
        %631 = vmatprep.subr.mxu0 0.0
        %632 = vmatpush2.msra.mxu0 0.0
        %633 = vmatprep.subr.mxu0 0.0
        %634 = vmatpush2.msra.mxu0 0.0
        %635 = vmatprep.subr.mxu0 0.0
        %636 = vmatpush2.msra.mxu0 0.0
        %637 = vmatprep.subr.mxu0 0.0
        %638 = vmatpush2.msra.mxu0 0.0
        %639 = vmatprep.subr.mxu0 0.0
        %640 = vmatpush2.msra.mxu0 0.0
        %641 = vmatprep.subr.mxu0 0.0
        %642 = vmatpush2.msra.mxu0 0.0
        %643 = vmatprep.subr.mxu0 0.0
        %644 = vmatpush2.msra.mxu0 0.0
        %645 = vmatprep.subr.mxu0 0.0
        %646 = vmatpush2.msra.mxu0 0.0
        %647 = vmatprep.subr.mxu0 0.0
        %648 = vmatpush2.msra.mxu0 0.0
        %649 = vmatprep.subr.mxu0 0.0
        %650 = vmatpush2.msra.mxu0 0.0
        %651 = vmatprep.subr.mxu0 0.0
        %652 = vmatpush2.msra.mxu0 0.0
        %653 = vmatprep.subr.mxu0 0.0
        %654 = vmatpush2.msra.mxu0 0.0
        %655 = vmatprep.subr.mxu0 0.0
        %656 = vmatpush2.msra.mxu0 0.0
        %657 = vmatprep.mubr.f32.mxu0 0.0
        %658 = vmatmul.mubr.f32.gmra.mxu0 %v591
        %v659 = vpop.f32.mrf.mxu0
        %v660 = vadd.f32 0.0, %v659
        %v661 = vpop.f32.mrf.mxu0
        %662 = vdwg.mxu0
        %v664 = vsel %vm434, %v583, 0
        %666 = vmatprep.subr.mxu0 0.0
        %667 = vmatpush1.msra.mxu0 0.0
        %668 = vmatprep.subr.mxu0 0.0
        %669 = vmatpush1.msra.mxu0 0.0
        %670 = vmatprep.subr.mxu0 0.0
        %671 = vmatpush1.msra.mxu0 0.0
        %672 = vmatprep.subr.mxu0 0.0
        %673 = vmatpush1.msra.mxu0 0.0
        %674 = vmatprep.subr.mxu0 0.0
        %675 = vmatpush1.msra.mxu0 0.0
        %676 = vmatprep.subr.mxu0 0.0
        %677 = vmatpush1.msra.mxu0 0.0
        %678 = vmatprep.subr.mxu0 0.0
        %679 = vmatpush1.msra.mxu0 0.0
        %680 = vmatprep.subr.mxu0 0.0
        %681 = vmatpush1.msra.mxu0 0.0
        %682 = vmatprep.subr.mxu0 0.0
        %683 = vmatpush1.msra.mxu0 0.0
        %684 = vmatprep.subr.mxu0 0.0
        %685 = vmatpush1.msra.mxu0 0.0
        %686 = vmatprep.subr.mxu0 0.0
        %687 = vmatpush1.msra.mxu0 0.0
        %688 = vmatprep.subr.mxu0 0.0
        %689 = vmatpush1.msra.mxu0 0.0
        %690 = vmatprep.subr.mxu0 0.0
        %691 = vmatpush1.msra.mxu0 0.0
        %692 = vmatprep.subr.mxu0 0.0
        %693 = vmatpush1.msra.mxu0 0.0
        %694 = vmatprep.subr.mxu0 0.0
        %695 = vmatpush1.msra.mxu0 0.0
        %696 = vmatprep.subr.mxu0 0.0
        %697 = vmatpush1.msra.mxu0 %v585
        %698 = vmatprep.subr.mxu0 0.0
        %699 = vmatpush2.msra.mxu0 0.0
        %700 = vmatprep.subr.mxu0 0.0
        %701 = vmatpush2.msra.mxu0 0.0
        %702 = vmatprep.subr.mxu0 0.0
        %703 = vmatpush2.msra.mxu0 0.0
        %704 = vmatprep.subr.mxu0 0.0
        %705 = vmatpush2.msra.mxu0 0.0
        %706 = vmatprep.subr.mxu0 0.0
        %707 = vmatpush2.msra.mxu0 0.0
        %708 = vmatprep.subr.mxu0 0.0
        %709 = vmatpush2.msra.mxu0 0.0
        %710 = vmatprep.subr.mxu0 0.0
        %711 = vmatpush2.msra.mxu0 0.0
        %712 = vmatprep.subr.mxu0 0.0
        %713 = vmatpush2.msra.mxu0 0.0
        %714 = vmatprep.subr.mxu0 0.0
        %715 = vmatpush2.msra.mxu0 0.0
        %716 = vmatprep.subr.mxu0 0.0
        %717 = vmatpush2.msra.mxu0 0.0
        %718 = vmatprep.subr.mxu0 0.0
        %719 = vmatpush2.msra.mxu0 0.0
        %720 = vmatprep.subr.mxu0 0.0
        %721 = vmatpush2.msra.mxu0 0.0
        %722 = vmatprep.subr.mxu0 0.0
        %723 = vmatpush2.msra.mxu0 0.0
        %724 = vmatprep.subr.mxu0 0.0
        %725 = vmatpush2.msra.mxu0 0.0
        %726 = vmatprep.subr.mxu0 0.0
        %727 = vmatpush2.msra.mxu0 0.0
        %728 = vmatprep.subr.mxu0 0.0
        %729 = vmatpush2.msra.mxu0 0.0
        %730 = vmatprep.mubr.f32.mxu0 0.0
        %731 = vmatmul.mubr.f32.gmra.mxu0 %v664
        %v732 = vpop.f32.mrf.mxu0
        %v733 = vadd.f32 %v660, %v732
        %v734 = vpop.f32.mrf.mxu0
        %735 = vdwg.mxu0
        %v736 = vmax.f32 %v733, 0.0
        %v737 = vtanh.pop %v733
        %v738 = vmul.f32 %v736, %v737
        %v739 = vld [vmem:[#allocation5] sm:$0xff]
        %v740 = vld [vmem:[%s4] sm:$0xff]
        %742 = vset.pattern.permute.xlu0 0
        %743 = vperm.xlu0 %742, %v740
        %v744 = vpop.permute.xlu0 %743
        %v747 = vsel %vm434, %v739, 0
        %749 = vmatprep.subr.mxu0 0.0
        %750 = vmatpush1.msra.mxu0 0.0
        %751 = vmatprep.subr.mxu0 0.0
        %752 = vmatpush1.msra.mxu0 0.0
        %753 = vmatprep.subr.mxu0 0.0
        %754 = vmatpush1.msra.mxu0 0.0
        %755 = vmatprep.subr.mxu0 0.0
        %756 = vmatpush1.msra.mxu0 0.0
        %757 = vmatprep.subr.mxu0 0.0
        %758 = vmatpush1.msra.mxu0 0.0
        %759 = vmatprep.subr.mxu0 0.0
        %760 = vmatpush1.msra.mxu0 0.0
        %761 = vmatprep.subr.mxu0 0.0
        %762 = vmatpush1.msra.mxu0 0.0
        %763 = vmatprep.subr.mxu0 0.0
        %764 = vmatpush1.msra.mxu0 0.0
        %765 = vmatprep.subr.mxu0 0.0
        %766 = vmatpush1.msra.mxu0 0.0
        %767 = vmatprep.subr.mxu0 0.0
        %768 = vmatpush1.msra.mxu0 0.0
        %769 = vmatprep.subr.mxu0 0.0
        %770 = vmatpush1.msra.mxu0 0.0
        %771 = vmatprep.subr.mxu0 0.0
        %772 = vmatpush1.msra.mxu0 0.0
        %773 = vmatprep.subr.mxu0 0.0
        %774 = vmatpush1.msra.mxu0 0.0
        %775 = vmatprep.subr.mxu0 0.0
        %776 = vmatpush1.msra.mxu0 0.0
        %777 = vmatprep.subr.mxu0 0.0
        %778 = vmatpush1.msra.mxu0 0.0
        %779 = vmatprep.subr.mxu0 0.0
        %780 = vmatpush1.msra.mxu0 %v738
        %781 = vmatprep.subr.mxu0 0.0
        %782 = vmatpush2.msra.mxu0 0.0
        %783 = vmatprep.subr.mxu0 0.0
        %784 = vmatpush2.msra.mxu0 0.0
        %785 = vmatprep.subr.mxu0 0.0
        %786 = vmatpush2.msra.mxu0 0.0
        %787 = vmatprep.subr.mxu0 0.0
        %788 = vmatpush2.msra.mxu0 0.0
        %789 = vmatprep.subr.mxu0 0.0
        %790 = vmatpush2.msra.mxu0 0.0
        %791 = vmatprep.subr.mxu0 0.0
        %792 = vmatpush2.msra.mxu0 0.0
        %793 = vmatprep.subr.mxu0 0.0
        %794 = vmatpush2.msra.mxu0 0.0
        %795 = vmatprep.subr.mxu0 0.0
        %796 = vmatpush2.msra.mxu0 0.0
        %797 = vmatprep.subr.mxu0 0.0
        %798 = vmatpush2.msra.mxu0 0.0
        %799 = vmatprep.subr.mxu0 0.0
        %800 = vmatpush2.msra.mxu0 0.0
        %801 = vmatprep.subr.mxu0 0.0
        %802 = vmatpush2.msra.mxu0 0.0
        %803 = vmatprep.subr.mxu0 0.0
        %804 = vmatpush2.msra.mxu0 0.0
        %805 = vmatprep.subr.mxu0 0.0
        %806 = vmatpush2.msra.mxu0 0.0
        %807 = vmatprep.subr.mxu0 0.0
        %808 = vmatpush2.msra.mxu0 0.0
        %809 = vmatprep.subr.mxu0 0.0
        %810 = vmatpush2.msra.mxu0 0.0
        %811 = vmatprep.subr.mxu0 0.0
        %812 = vmatpush2.msra.mxu0 0.0
        %813 = vmatprep.mubr.f32.mxu0 0.0
        %814 = vmatmul.mubr.f32.gmra.mxu0 %v747
        %v815 = vpop.f32.mrf.mxu0
        %v816 = vadd.f32 %v744, %v815
        %v817 = vpop.f32.mrf.mxu0
        %818 = vdwg.mxu0
        %v819 = vadd.f32 %v816, %v588
        %v820 = vld [vmem:[#allocation7] sm:$0xff]
        %v821 = vld [vmem:[%s6] sm:$0xff]
        %823 = vset.pattern.permute.xlu0 0
        %824 = vperm.xlu0 %823, %v821
        %v825 = vpop.permute.xlu0 %824
        %828 = vrot.lane.b32.xlu0 %v738, 98
        %v829 = vpop.permute.xlu0 %828
        %v832 = vsel %vm434, %v820, 0
        %834 = vmatprep.subr.mxu0 0.0
        %835 = vmatpush1.msra.mxu0 0.0
        %836 = vmatprep.subr.mxu0 0.0
        %837 = vmatpush1.msra.mxu0 0.0
        %838 = vmatprep.subr.mxu0 0.0
        %839 = vmatpush1.msra.mxu0 0.0
        %840 = vmatprep.subr.mxu0 0.0
        %841 = vmatpush1.msra.mxu0 0.0
        %842 = vmatprep.subr.mxu0 0.0
        %843 = vmatpush1.msra.mxu0 0.0
        %844 = vmatprep.subr.mxu0 0.0
        %845 = vmatpush1.msra.mxu0 0.0
        %846 = vmatprep.subr.mxu0 0.0
        %847 = vmatpush1.msra.mxu0 0.0
        %848 = vmatprep.subr.mxu0 0.0
        %849 = vmatpush1.msra.mxu0 0.0
        %850 = vmatprep.subr.mxu0 0.0
        %851 = vmatpush1.msra.mxu0 0.0
        %852 = vmatprep.subr.mxu0 0.0
        %853 = vmatpush1.msra.mxu0 0.0
        %854 = vmatprep.subr.mxu0 0.0
        %855 = vmatpush1.msra.mxu0 0.0
        %856 = vmatprep.subr.mxu0 0.0
        %857 = vmatpush1.msra.mxu0 0.0
        %858 = vmatprep.subr.mxu0 0.0
        %859 = vmatpush1.msra.mxu0 0.0
        %860 = vmatprep.subr.mxu0 0.0
        %861 = vmatpush1.msra.mxu0 0.0
        %862 = vmatprep.subr.mxu0 0.0
        %863 = vmatpush1.msra.mxu0 0.0
        %864 = vmatprep.subr.mxu0 0.0
        %865 = vmatpush1.msra.mxu0 %v829
        %866 = vmatprep.subr.mxu0 0.0
        %867 = vmatpush2.msra.mxu0 0.0
        %868 = vmatprep.subr.mxu0 0.0
        %869 = vmatpush2.msra.mxu0 0.0
        %870 = vmatprep.subr.mxu0 0.0
        %871 = vmatpush2.msra.mxu0 0.0
        %872 = vmatprep.subr.mxu0 0.0
        %873 = vmatpush2.msra.mxu0 0.0
        %874 = vmatprep.subr.mxu0 0.0
        %875 = vmatpush2.msra.mxu0 0.0
        %876 = vmatprep.subr.mxu0 0.0
        %877 = vmatpush2.msra.mxu0 0.0
        %878 = vmatprep.subr.mxu0 0.0
        %879 = vmatpush2.msra.mxu0 0.0
        %880 = vmatprep.subr.mxu0 0.0
        %881 = vmatpush2.msra.mxu0 0.0
        %882 = vmatprep.subr.mxu0 0.0
        %883 = vmatpush2.msra.mxu0 0.0
        %884 = vmatprep.subr.mxu0 0.0
        %885 = vmatpush2.msra.mxu0 0.0
        %886 = vmatprep.subr.mxu0 0.0
        %887 = vmatpush2.msra.mxu0 0.0
        %888 = vmatprep.subr.mxu0 0.0
        %889 = vmatpush2.msra.mxu0 0.0
        %890 = vmatprep.subr.mxu0 0.0
        %891 = vmatpush2.msra.mxu0 0.0
        %892 = vmatprep.subr.mxu0 0.0
        %893 = vmatpush2.msra.mxu0 0.0
        %894 = vmatprep.subr.mxu0 0.0
        %895 = vmatpush2.msra.mxu0 0.0
        %896 = vmatprep.subr.mxu0 0.0
        %897 = vmatpush2.msra.mxu0 0.0
        %898 = vmatprep.mubr.f32.mxu0 0.0
        %899 = vmatmul.mubr.f32.gmra.mxu0 %v832
        %v900 = vpop.f32.mrf.mxu0
        %v901 = vadd.f32 %v825, %v900
        %v902 = vpop.f32.mrf.mxu0
        %903 = vdwg.mxu0
        %vm904 = vcmask 1031168
        %905 = vst.msk [vmem:[#allocation2 + $0x8] sm:$0xff] %vm904, %v819
        %s906 = scalar_lea.vmem %s2, 16
        %v907 = vld [vmem:[%s906] sm:$0xff]
        %v908 = vld [vmem:[%s906 + $0x8] sm:$0xff]
        %v909 = vld [vmem:[#allocation2] sm:$0xff]
        %v910 = vld [vmem:[#allocation2 + $0x8] sm:$0xff]
        %912 = vrot.lane.b32.xlu0 %v910, 127
        %v913 = vpop.permute.xlu0 %912
        %v916 = vsel %vm434, %v908, 0
        %918 = vmatprep.subr.mxu0 0.0
        %919 = vmatpush1.msra.mxu0 0.0
        %920 = vmatprep.subr.mxu0 0.0
        %921 = vmatpush1.msra.mxu0 0.0
        %922 = vmatprep.subr.mxu0 0.0
        %923 = vmatpush1.msra.mxu0 0.0
        %924 = vmatprep.subr.mxu0 0.0
        %925 = vmatpush1.msra.mxu0 0.0
        %926 = vmatprep.subr.mxu0 0.0
        %927 = vmatpush1.msra.mxu0 0.0
        %928 = vmatprep.subr.mxu0 0.0
        %929 = vmatpush1.msra.mxu0 0.0
        %930 = vmatprep.subr.mxu0 0.0
        %931 = vmatpush1.msra.mxu0 0.0
        %932 = vmatprep.subr.mxu0 0.0
        %933 = vmatpush1.msra.mxu0 0.0
        %934 = vmatprep.subr.mxu0 0.0
        %935 = vmatpush1.msra.mxu0 0.0
        %936 = vmatprep.subr.mxu0 0.0
        %937 = vmatpush1.msra.mxu0 0.0
        %938 = vmatprep.subr.mxu0 0.0
        %939 = vmatpush1.msra.mxu0 0.0
        %940 = vmatprep.subr.mxu0 0.0
        %941 = vmatpush1.msra.mxu0 0.0
        %942 = vmatprep.subr.mxu0 0.0
        %943 = vmatpush1.msra.mxu0 0.0
        %944 = vmatprep.subr.mxu0 0.0
        %945 = vmatpush1.msra.mxu0 0.0
        %946 = vmatprep.subr.mxu0 0.0
        %947 = vmatpush1.msra.mxu0 0.0
        %948 = vmatprep.subr.mxu0 0.0
        %949 = vmatpush1.msra.mxu0 %v913
        %950 = vmatprep.subr.mxu0 0.0
        %951 = vmatpush2.msra.mxu0 0.0
        %952 = vmatprep.subr.mxu0 0.0
        %953 = vmatpush2.msra.mxu0 0.0
        %954 = vmatprep.subr.mxu0 0.0
        %955 = vmatpush2.msra.mxu0 0.0
        %956 = vmatprep.subr.mxu0 0.0
        %957 = vmatpush2.msra.mxu0 0.0
        %958 = vmatprep.subr.mxu0 0.0
        %959 = vmatpush2.msra.mxu0 0.0
        %960 = vmatprep.subr.mxu0 0.0
        %961 = vmatpush2.msra.mxu0 0.0
        %962 = vmatprep.subr.mxu0 0.0
        %963 = vmatpush2.msra.mxu0 0.0
        %964 = vmatprep.subr.mxu0 0.0
        %965 = vmatpush2.msra.mxu0 0.0
        %966 = vmatprep.subr.mxu0 0.0
        %967 = vmatpush2.msra.mxu0 0.0
        %968 = vmatprep.subr.mxu0 0.0
        %969 = vmatpush2.msra.mxu0 0.0
        %970 = vmatprep.subr.mxu0 0.0
        %971 = vmatpush2.msra.mxu0 0.0
        %972 = vmatprep.subr.mxu0 0.0
        %973 = vmatpush2.msra.mxu0 0.0
        %974 = vmatprep.subr.mxu0 0.0
        %975 = vmatpush2.msra.mxu0 0.0
        %976 = vmatprep.subr.mxu0 0.0
        %977 = vmatpush2.msra.mxu0 0.0
        %978 = vmatprep.subr.mxu0 0.0
        %979 = vmatpush2.msra.mxu0 0.0
        %980 = vmatprep.subr.mxu0 0.0
        %981 = vmatpush2.msra.mxu0 0.0
        %982 = vmatprep.mubr.f32.mxu0 0.0
        %983 = vmatmul.mubr.f32.gmra.mxu0 %v916
        %v984 = vpop.f32.mrf.mxu0
        %v985 = vadd.f32 0.0, %v984
        %v986 = vpop.f32.mrf.mxu0
        %987 = vdwg.mxu0
        %989 = vrot.lane.b32.xlu0 %v909, 1
        %v990 = vpop.permute.xlu0 %989
        %991 = vrot.lane.b32.xlu0 %v910, 1
        %v992 = vpop.permute.xlu0 %991
        %vm993 = vcmask 7168
        %v994 = vsel %vm993, %v990, %v992
        %v997 = vsel %vm434, %v907, 0
        %999 = vmatprep.subr.mxu0 0.0
        %1000 = vmatpush1.msra.mxu0 0.0
        %1001 = vmatprep.subr.mxu0 0.0
        %1002 = vmatpush1.msra.mxu0 0.0
        %1003 = vmatprep.subr.mxu0 0.0
        %1004 = vmatpush1.msra.mxu0 0.0
        %1005 = vmatprep.subr.mxu0 0.0
        %1006 = vmatpush1.msra.mxu0 0.0
        %1007 = vmatprep.subr.mxu0 0.0
        %1008 = vmatpush1.msra.mxu0 0.0
        %1009 = vmatprep.subr.mxu0 0.0
        %1010 = vmatpush1.msra.mxu0 0.0
        %1011 = vmatprep.subr.mxu0 0.0
        %1012 = vmatpush1.msra.mxu0 0.0
        %1013 = vmatprep.subr.mxu0 0.0
        %1014 = vmatpush1.msra.mxu0 0.0
        %1015 = vmatprep.subr.mxu0 0.0
        %1016 = vmatpush1.msra.mxu0 0.0
        %1017 = vmatprep.subr.mxu0 0.0
        %1018 = vmatpush1.msra.mxu0 0.0
        %1019 = vmatprep.subr.mxu0 0.0
        %1020 = vmatpush1.msra.mxu0 0.0
        %1021 = vmatprep.subr.mxu0 0.0
        %1022 = vmatpush1.msra.mxu0 0.0
        %1023 = vmatprep.subr.mxu0 0.0
        %1024 = vmatpush1.msra.mxu0 0.0
        %1025 = vmatprep.subr.mxu0 0.0
        %1026 = vmatpush1.msra.mxu0 0.0
        %1027 = vmatprep.subr.mxu0 0.0
        %1028 = vmatpush1.msra.mxu0 0.0
        %1029 = vmatprep.subr.mxu0 0.0
        %1030 = vmatpush1.msra.mxu0 %v994
        %1031 = vmatprep.subr.mxu0 0.0
        %1032 = vmatpush2.msra.mxu0 0.0
        %1033 = vmatprep.subr.mxu0 0.0
        %1034 = vmatpush2.msra.mxu0 0.0
        %1035 = vmatprep.subr.mxu0 0.0
        %1036 = vmatpush2.msra.mxu0 0.0
        %1037 = vmatprep.subr.mxu0 0.0
        %1038 = vmatpush2.msra.mxu0 0.0
        %1039 = vmatprep.subr.mxu0 0.0
        %1040 = vmatpush2.msra.mxu0 0.0
        %1041 = vmatprep.subr.mxu0 0.0
        %1042 = vmatpush2.msra.mxu0 0.0
        %1043 = vmatprep.subr.mxu0 0.0
        %1044 = vmatpush2.msra.mxu0 0.0
        %1045 = vmatprep.subr.mxu0 0.0
        %1046 = vmatpush2.msra.mxu0 0.0
        %1047 = vmatprep.subr.mxu0 0.0
        %1048 = vmatpush2.msra.mxu0 0.0
        %1049 = vmatprep.subr.mxu0 0.0
        %1050 = vmatpush2.msra.mxu0 0.0
        %1051 = vmatprep.subr.mxu0 0.0
        %1052 = vmatpush2.msra.mxu0 0.0
        %1053 = vmatprep.subr.mxu0 0.0
        %1054 = vmatpush2.msra.mxu0 0.0
        %1055 = vmatprep.subr.mxu0 0.0
        %1056 = vmatpush2.msra.mxu0 0.0
        %1057 = vmatprep.subr.mxu0 0.0
        %1058 = vmatpush2.msra.mxu0 0.0
        %1059 = vmatprep.subr.mxu0 0.0
        %1060 = vmatpush2.msra.mxu0 0.0
        %1061 = vmatprep.subr.mxu0 0.0
        %1062 = vmatpush2.msra.mxu0 0.0
        %1063 = vmatprep.mubr.f32.mxu0 0.0
        %1064 = vmatmul.mubr.f32.gmra.mxu0 %v997
        %v1065 = vpop.f32.mrf.mxu0
        %v1066 = vadd.f32 %v985, %v1065
        %v1067 = vpop.f32.mrf.mxu0
        %1068 = vdwg.mxu0
        %v1069 = vmax.f32 %v1066, 0.0
        %v1070 = vtanh.pop %v1066
        %v1071 = vmul.f32 %v1069, %v1070
        %s1072 = scalar_lea.vmem [#allocation5], 8
        %v1073 = vld [vmem:[%s1072] sm:$0xff]
        %s1074 = scalar_lea.vmem %s4, 8
        %v1075 = vld [vmem:[%s1074] sm:$0xff]
        %1077 = vset.pattern.permute.xlu0 0
        %1078 = vperm.xlu0 %1077, %v1075
        %v1079 = vpop.permute.xlu0 %1078
        %v1082 = vsel %vm434, %v1073, 0
        %1084 = vmatprep.subr.mxu0 0.0
        %1085 = vmatpush1.msra.mxu0 0.0
        %1086 = vmatprep.subr.mxu0 0.0
        %1087 = vmatpush1.msra.mxu0 0.0
        %1088 = vmatprep.subr.mxu0 0.0
        %1089 = vmatpush1.msra.mxu0 0.0
        %1090 = vmatprep.subr.mxu0 0.0
        %1091 = vmatpush1.msra.mxu0 0.0
        %1092 = vmatprep.subr.mxu0 0.0
        %1093 = vmatpush1.msra.mxu0 0.0
        %1094 = vmatprep.subr.mxu0 0.0
        %1095 = vmatpush1.msra.mxu0 0.0
        %1096 = vmatprep.subr.mxu0 0.0
        %1097 = vmatpush1.msra.mxu0 0.0
        %1098 = vmatprep.subr.mxu0 0.0
        %1099 = vmatpush1.msra.mxu0 0.0
        %1100 = vmatprep.subr.mxu0 0.0
        %1101 = vmatpush1.msra.mxu0 0.0
        %1102 = vmatprep.subr.mxu0 0.0
        %1103 = vmatpush1.msra.mxu0 0.0
        %1104 = vmatprep.subr.mxu0 0.0
        %1105 = vmatpush1.msra.mxu0 0.0
        %1106 = vmatprep.subr.mxu0 0.0
        %1107 = vmatpush1.msra.mxu0 0.0
        %1108 = vmatprep.subr.mxu0 0.0
        %1109 = vmatpush1.msra.mxu0 0.0
        %1110 = vmatprep.subr.mxu0 0.0
        %1111 = vmatpush1.msra.mxu0 0.0
        %1112 = vmatprep.subr.mxu0 0.0
        %1113 = vmatpush1.msra.mxu0 0.0
        %1114 = vmatprep.subr.mxu0 0.0
        %1115 = vmatpush1.msra.mxu0 %v1071
        %1116 = vmatprep.subr.mxu0 0.0
        %1117 = vmatpush2.msra.mxu0 0.0
        %1118 = vmatprep.subr.mxu0 0.0
        %1119 = vmatpush2.msra.mxu0 0.0
        %1120 = vmatprep.subr.mxu0 0.0
        %1121 = vmatpush2.msra.mxu0 0.0
        %1122 = vmatprep.subr.mxu0 0.0
        %1123 = vmatpush2.msra.mxu0 0.0
        %1124 = vmatprep.subr.mxu0 0.0
        %1125 = vmatpush2.msra.mxu0 0.0
        %1126 = vmatprep.subr.mxu0 0.0
        %1127 = vmatpush2.msra.mxu0 0.0
        %1128 = vmatprep.subr.mxu0 0.0
        %1129 = vmatpush2.msra.mxu0 0.0
        %1130 = vmatprep.subr.mxu0 0.0
        %1131 = vmatpush2.msra.mxu0 0.0
        %1132 = vmatprep.subr.mxu0 0.0
        %1133 = vmatpush2.msra.mxu0 0.0
        %1134 = vmatprep.subr.mxu0 0.0
        %1135 = vmatpush2.msra.mxu0 0.0
        %1136 = vmatprep.subr.mxu0 0.0
        %1137 = vmatpush2.msra.mxu0 0.0
        %1138 = vmatprep.subr.mxu0 0.0
        %1139 = vmatpush2.msra.mxu0 0.0
        %1140 = vmatprep.subr.mxu0 0.0
        %1141 = vmatpush2.msra.mxu0 0.0
        %1142 = vmatprep.subr.mxu0 0.0
        %1143 = vmatpush2.msra.mxu0 0.0
        %1144 = vmatprep.subr.mxu0 0.0
        %1145 = vmatpush2.msra.mxu0 0.0
        %1146 = vmatprep.subr.mxu0 0.0
        %1147 = vmatpush2.msra.mxu0 0.0
        %1148 = vmatprep.mubr.f32.mxu0 0.0
        %1149 = vmatmul.mubr.f32.gmra.mxu0 %v1082
        %v1150 = vpop.f32.mrf.mxu0
        %v1151 = vadd.f32 %v1079, %v1150
        %v1152 = vpop.f32.mrf.mxu0
        %1153 = vdwg.mxu0
        %1154 = vrot.lane.b32.xlu0 %v910, 126
        %v1155 = vpop.permute.xlu0 %1154
        %v1157 = vadd.f32 %v1151, %v1155
        %s1158 = scalar_lea.vmem [#allocation7], 8
        %v1159 = vld [vmem:[%s1158] sm:$0xff]
        %1161 = vrot.lane.b32.xlu0 %v1071, 100
        %v1162 = vpop.permute.xlu0 %1161
        %v1165 = vsel %vm434, %v1159, 0
        %1167 = vmatprep.subr.mxu0 0.0
        %1168 = vmatpush1.msra.mxu0 0.0
        %1169 = vmatprep.subr.mxu0 0.0
        %1170 = vmatpush1.msra.mxu0 0.0
        %1171 = vmatprep.subr.mxu0 0.0
        %1172 = vmatpush1.msra.mxu0 0.0
        %1173 = vmatprep.subr.mxu0 0.0
        %1174 = vmatpush1.msra.mxu0 0.0
        %1175 = vmatprep.subr.mxu0 0.0
        %1176 = vmatpush1.msra.mxu0 0.0
        %1177 = vmatprep.subr.mxu0 0.0
        %1178 = vmatpush1.msra.mxu0 0.0
        %1179 = vmatprep.subr.mxu0 0.0
        %1180 = vmatpush1.msra.mxu0 0.0
        %1181 = vmatprep.subr.mxu0 0.0
        %1182 = vmatpush1.msra.mxu0 0.0
        %1183 = vmatprep.subr.mxu0 0.0
        %1184 = vmatpush1.msra.mxu0 0.0
        %1185 = vmatprep.subr.mxu0 0.0
        %1186 = vmatpush1.msra.mxu0 0.0
        %1187 = vmatprep.subr.mxu0 0.0
        %1188 = vmatpush1.msra.mxu0 0.0
        %1189 = vmatprep.subr.mxu0 0.0
        %1190 = vmatpush1.msra.mxu0 0.0
        %1191 = vmatprep.subr.mxu0 0.0
        %1192 = vmatpush1.msra.mxu0 0.0
        %1193 = vmatprep.subr.mxu0 0.0
        %1194 = vmatpush1.msra.mxu0 0.0
        %1195 = vmatprep.subr.mxu0 0.0
        %1196 = vmatpush1.msra.mxu0 0.0
        %1197 = vmatprep.subr.mxu0 0.0
        %1198 = vmatpush1.msra.mxu0 %v1162
        %1199 = vmatprep.subr.mxu0 0.0
        %1200 = vmatpush2.msra.mxu0 0.0
        %1201 = vmatprep.subr.mxu0 0.0
        %1202 = vmatpush2.msra.mxu0 0.0
        %1203 = vmatprep.subr.mxu0 0.0
        %1204 = vmatpush2.msra.mxu0 0.0
        %1205 = vmatprep.subr.mxu0 0.0
        %1206 = vmatpush2.msra.mxu0 0.0
        %1207 = vmatprep.subr.mxu0 0.0
        %1208 = vmatpush2.msra.mxu0 0.0
        %1209 = vmatprep.subr.mxu0 0.0
        %1210 = vmatpush2.msra.mxu0 0.0
        %1211 = vmatprep.subr.mxu0 0.0
        %1212 = vmatpush2.msra.mxu0 0.0
        %1213 = vmatprep.subr.mxu0 0.0
        %1214 = vmatpush2.msra.mxu0 0.0
        %1215 = vmatprep.subr.mxu0 0.0
        %1216 = vmatpush2.msra.mxu0 0.0
        %1217 = vmatprep.subr.mxu0 0.0
        %1218 = vmatpush2.msra.mxu0 0.0
        %1219 = vmatprep.subr.mxu0 0.0
        %1220 = vmatpush2.msra.mxu0 0.0
        %1221 = vmatprep.subr.mxu0 0.0
        %1222 = vmatpush2.msra.mxu0 0.0
        %1223 = vmatprep.subr.mxu0 0.0
        %1224 = vmatpush2.msra.mxu0 0.0
        %1225 = vmatprep.subr.mxu0 0.0
        %1226 = vmatpush2.msra.mxu0 0.0
        %1227 = vmatprep.subr.mxu0 0.0
        %1228 = vmatpush2.msra.mxu0 0.0
        %1229 = vmatprep.subr.mxu0 0.0
        %1230 = vmatpush2.msra.mxu0 0.0
        %1231 = vmatprep.mubr.f32.mxu0 0.0
        %1232 = vmatmul.mubr.f32.gmra.mxu0 %v1165
        %v1233 = vpop.f32.mrf.mxu0
        %v1234 = vadd.f32 0.0, %v1233
        %v1235 = vpop.f32.mrf.mxu0
        %1236 = vdwg.mxu0
        %v1237 = vadd.f32 %v901, %v1234
        %s1238 = scalar_lea.vmem %s6, 8
        %v1239 = vld [vmem:[%s1238] sm:$0xff]
        %1241 = vset.pattern.permute.xlu0 0
        %1242 = vperm.xlu0 %1241, %v1239
        %v1243 = vpop.permute.xlu0 %1242
        %v1245 = vadd.f32 %v1237, %v1243
        %vm1246 = vcmask 1014784
        %1247 = vst.msk [vmem:[#allocation2 + $0x8] sm:$0xff] %vm1246, %v1157
        %s1248 = scalar_lea.vmem %s2, 32
        %v1249 = vld [vmem:[%s1248] sm:$0xff]
        %v1250 = vld [vmem:[%s1248 + $0x8] sm:$0xff]
        %v1251 = vld [vmem:[#allocation2] sm:$0xff]
        %v1252 = vld [vmem:[#allocation2 + $0x8] sm:$0xff]
        %1254 = vrot.lane.b32.xlu0 %v1252, 126
        %v1255 = vpop.permute.xlu0 %1254
        %v1258 = vsel %vm434, %v1250, 0
        %1260 = vmatprep.subr.mxu0 0.0
        %1261 = vmatpush1.msra.mxu0 0.0
        %1262 = vmatprep.subr.mxu0 0.0
        %1263 = vmatpush1.msra.mxu0 0.0
        %1264 = vmatprep.subr.mxu0 0.0
        %1265 = vmatpush1.msra.mxu0 0.0
        %1266 = vmatprep.subr.mxu0 0.0
        %1267 = vmatpush1.msra.mxu0 0.0
        %1268 = vmatprep.subr.mxu0 0.0
        %1269 = vmatpush1.msra.mxu0 0.0
        %1270 = vmatprep.subr.mxu0 0.0
        %1271 = vmatpush1.msra.mxu0 0.0
        %1272 = vmatprep.subr.mxu0 0.0
        %1273 = vmatpush1.msra.mxu0 0.0
        %1274 = vmatprep.subr.mxu0 0.0
        %1275 = vmatpush1.msra.mxu0 0.0
        %1276 = vmatprep.subr.mxu0 0.0
        %1277 = vmatpush1.msra.mxu0 0.0
        %1278 = vmatprep.subr.mxu0 0.0
        %1279 = vmatpush1.msra.mxu0 0.0
        %1280 = vmatprep.subr.mxu0 0.0
        %1281 = vmatpush1.msra.mxu0 0.0
        %1282 = vmatprep.subr.mxu0 0.0
        %1283 = vmatpush1.msra.mxu0 0.0
        %1284 = vmatprep.subr.mxu0 0.0
        %1285 = vmatpush1.msra.mxu0 0.0
        %1286 = vmatprep.subr.mxu0 0.0
        %1287 = vmatpush1.msra.mxu0 0.0
        %1288 = vmatprep.subr.mxu0 0.0
        %1289 = vmatpush1.msra.mxu0 0.0
        %1290 = vmatprep.subr.mxu0 0.0
        %1291 = vmatpush1.msra.mxu0 %v1255
        %1292 = vmatprep.subr.mxu0 0.0
        %1293 = vmatpush2.msra.mxu0 0.0
        %1294 = vmatprep.subr.mxu0 0.0
        %1295 = vmatpush2.msra.mxu0 0.0
        %1296 = vmatprep.subr.mxu0 0.0
        %1297 = vmatpush2.msra.mxu0 0.0
        %1298 = vmatprep.subr.mxu0 0.0
        %1299 = vmatpush2.msra.mxu0 0.0
        %1300 = vmatprep.subr.mxu0 0.0
        %1301 = vmatpush2.msra.mxu0 0.0
        %1302 = vmatprep.subr.mxu0 0.0
        %1303 = vmatpush2.msra.mxu0 0.0
        %1304 = vmatprep.subr.mxu0 0.0
        %1305 = vmatpush2.msra.mxu0 0.0
        %1306 = vmatprep.subr.mxu0 0.0
        %1307 = vmatpush2.msra.mxu0 0.0
        %1308 = vmatprep.subr.mxu0 0.0
        %1309 = vmatpush2.msra.mxu0 0.0
        %1310 = vmatprep.subr.mxu0 0.0
        %1311 = vmatpush2.msra.mxu0 0.0
        %1312 = vmatprep.subr.mxu0 0.0
        %1313 = vmatpush2.msra.mxu0 0.0
        %1314 = vmatprep.subr.mxu0 0.0
        %1315 = vmatpush2.msra.mxu0 0.0
        %1316 = vmatprep.subr.mxu0 0.0
        %1317 = vmatpush2.msra.mxu0 0.0
        %1318 = vmatprep.subr.mxu0 0.0
        %1319 = vmatpush2.msra.mxu0 0.0
        %1320 = vmatprep.subr.mxu0 0.0
        %1321 = vmatpush2.msra.mxu0 0.0
        %1322 = vmatprep.subr.mxu0 0.0
        %1323 = vmatpush2.msra.mxu0 0.0
        %1324 = vmatprep.mubr.f32.mxu0 0.0
        %1325 = vmatmul.mubr.f32.gmra.mxu0 %v1258
        %v1326 = vpop.f32.mrf.mxu0
        %v1327 = vadd.f32 0.0, %v1326
        %v1328 = vpop.f32.mrf.mxu0
        %1329 = vdwg.mxu0
        %1331 = vrot.lane.b32.xlu0 %v1251, 2
        %v1332 = vpop.permute.xlu0 %1331
        %1333 = vrot.lane.b32.xlu0 %v1252, 2
        %v1334 = vpop.permute.xlu0 %1333
        %vm1335 = vcmask 15360
        %v1336 = vsel %vm1335, %v1332, %v1334
        %v1339 = vsel %vm434, %v1249, 0
        %1341 = vmatprep.subr.mxu0 0.0
        %1342 = vmatpush1.msra.mxu0 0.0
        %1343 = vmatprep.subr.mxu0 0.0
        %1344 = vmatpush1.msra.mxu0 0.0
        %1345 = vmatprep.subr.mxu0 0.0
        %1346 = vmatpush1.msra.mxu0 0.0
        %1347 = vmatprep.subr.mxu0 0.0
        %1348 = vmatpush1.msra.mxu0 0.0
        %1349 = vmatprep.subr.mxu0 0.0
        %1350 = vmatpush1.msra.mxu0 0.0
        %1351 = vmatprep.subr.mxu0 0.0
        %1352 = vmatpush1.msra.mxu0 0.0
        %1353 = vmatprep.subr.mxu0 0.0
        %1354 = vmatpush1.msra.mxu0 0.0
        %1355 = vmatprep.subr.mxu0 0.0
        %1356 = vmatpush1.msra.mxu0 0.0
        %1357 = vmatprep.subr.mxu0 0.0
        %1358 = vmatpush1.msra.mxu0 0.0
        %1359 = vmatprep.subr.mxu0 0.0
        %1360 = vmatpush1.msra.mxu0 0.0
        %1361 = vmatprep.subr.mxu0 0.0
        %1362 = vmatpush1.msra.mxu0 0.0
        %1363 = vmatprep.subr.mxu0 0.0
        %1364 = vmatpush1.msra.mxu0 0.0
        %1365 = vmatprep.subr.mxu0 0.0
        %1366 = vmatpush1.msra.mxu0 0.0
        %1367 = vmatprep.subr.mxu0 0.0
        %1368 = vmatpush1.msra.mxu0 0.0
        %1369 = vmatprep.subr.mxu0 0.0
        %1370 = vmatpush1.msra.mxu0 0.0
        %1371 = vmatprep.subr.mxu0 0.0
        %1372 = vmatpush1.msra.mxu0 %v1336
        %1373 = vmatprep.subr.mxu0 0.0
        %1374 = vmatpush2.msra.mxu0 0.0
        %1375 = vmatprep.subr.mxu0 0.0
        %1376 = vmatpush2.msra.mxu0 0.0
        %1377 = vmatprep.subr.mxu0 0.0
        %1378 = vmatpush2.msra.mxu0 0.0
        %1379 = vmatprep.subr.mxu0 0.0
        %1380 = vmatpush2.msra.mxu0 0.0
        %1381 = vmatprep.subr.mxu0 0.0
        %1382 = vmatpush2.msra.mxu0 0.0
        %1383 = vmatprep.subr.mxu0 0.0
        %1384 = vmatpush2.msra.mxu0 0.0
        %1385 = vmatprep.subr.mxu0 0.0
        %1386 = vmatpush2.msra.mxu0 0.0
        %1387 = vmatprep.subr.mxu0 0.0
        %1388 = vmatpush2.msra.mxu0 0.0
        %1389 = vmatprep.subr.mxu0 0.0
        %1390 = vmatpush2.msra.mxu0 0.0
        %1391 = vmatprep.subr.mxu0 0.0
        %1392 = vmatpush2.msra.mxu0 0.0
        %1393 = vmatprep.subr.mxu0 0.0
        %1394 = vmatpush2.msra.mxu0 0.0
        %1395 = vmatprep.subr.mxu0 0.0
        %1396 = vmatpush2.msra.mxu0 0.0
        %1397 = vmatprep.subr.mxu0 0.0
        %1398 = vmatpush2.msra.mxu0 0.0
        %1399 = vmatprep.subr.mxu0 0.0
        %1400 = vmatpush2.msra.mxu0 0.0
        %1401 = vmatprep.subr.mxu0 0.0
        %1402 = vmatpush2.msra.mxu0 0.0
        %1403 = vmatprep.subr.mxu0 0.0
        %1404 = vmatpush2.msra.mxu0 0.0
        %1405 = vmatprep.mubr.f32.mxu0 0.0
        %1406 = vmatmul.mubr.f32.gmra.mxu0 %v1339
        %v1407 = vpop.f32.mrf.mxu0
        %v1408 = vadd.f32 %v1327, %v1407
        %v1409 = vpop.f32.mrf.mxu0
        %1410 = vdwg.mxu0
        %v1411 = vmax.f32 %v1408, 0.0
        %v1412 = vtanh.pop %v1408
        %v1413 = vmul.f32 %v1411, %v1412
        %s1414 = scalar_lea.vmem [#allocation5], 16
        %v1415 = vld [vmem:[%s1414] sm:$0xff]
        %s1416 = scalar_lea.vmem %s4, 16
        %v1417 = vld [vmem:[%s1416] sm:$0xff]
        %1419 = vset.pattern.permute.xlu0 0
        %1420 = vperm.xlu0 %1419, %v1417
        %v1421 = vpop.permute.xlu0 %1420
        %v1424 = vsel %vm434, %v1415, 0
        %1426 = vmatprep.subr.mxu0 0.0
        %1427 = vmatpush1.msra.mxu0 0.0
        %1428 = vmatprep.subr.mxu0 0.0
        %1429 = vmatpush1.msra.mxu0 0.0
        %1430 = vmatprep.subr.mxu0 0.0
        %1431 = vmatpush1.msra.mxu0 0.0
        %1432 = vmatprep.subr.mxu0 0.0
        %1433 = vmatpush1.msra.mxu0 0.0
        %1434 = vmatprep.subr.mxu0 0.0
        %1435 = vmatpush1.msra.mxu0 0.0
        %1436 = vmatprep.subr.mxu0 0.0
        %1437 = vmatpush1.msra.mxu0 0.0
        %1438 = vmatprep.subr.mxu0 0.0
        %1439 = vmatpush1.msra.mxu0 0.0
        %1440 = vmatprep.subr.mxu0 0.0
        %1441 = vmatpush1.msra.mxu0 0.0
        %1442 = vmatprep.subr.mxu0 0.0
        %1443 = vmatpush1.msra.mxu0 0.0
        %1444 = vmatprep.subr.mxu0 0.0
        %1445 = vmatpush1.msra.mxu0 0.0
        %1446 = vmatprep.subr.mxu0 0.0
        %1447 = vmatpush1.msra.mxu0 0.0
        %1448 = vmatprep.subr.mxu0 0.0
        %1449 = vmatpush1.msra.mxu0 0.0
        %1450 = vmatprep.subr.mxu0 0.0
        %1451 = vmatpush1.msra.mxu0 0.0
        %1452 = vmatprep.subr.mxu0 0.0
        %1453 = vmatpush1.msra.mxu0 0.0
        %1454 = vmatprep.subr.mxu0 0.0
        %1455 = vmatpush1.msra.mxu0 0.0
        %1456 = vmatprep.subr.mxu0 0.0
        %1457 = vmatpush1.msra.mxu0 %v1413
        %1458 = vmatprep.subr.mxu0 0.0
        %1459 = vmatpush2.msra.mxu0 0.0
        %1460 = vmatprep.subr.mxu0 0.0
        %1461 = vmatpush2.msra.mxu0 0.0
        %1462 = vmatprep.subr.mxu0 0.0
        %1463 = vmatpush2.msra.mxu0 0.0
        %1464 = vmatprep.subr.mxu0 0.0
        %1465 = vmatpush2.msra.mxu0 0.0
        %1466 = vmatprep.subr.mxu0 0.0
        %1467 = vmatpush2.msra.mxu0 0.0
        %1468 = vmatprep.subr.mxu0 0.0
        %1469 = vmatpush2.msra.mxu0 0.0
        %1470 = vmatprep.subr.mxu0 0.0
        %1471 = vmatpush2.msra.mxu0 0.0
        %1472 = vmatprep.subr.mxu0 0.0
        %1473 = vmatpush2.msra.mxu0 0.0
        %1474 = vmatprep.subr.mxu0 0.0
        %1475 = vmatpush2.msra.mxu0 0.0
        %1476 = vmatprep.subr.mxu0 0.0
        %1477 = vmatpush2.msra.mxu0 0.0
        %1478 = vmatprep.subr.mxu0 0.0
        %1479 = vmatpush2.msra.mxu0 0.0
        %1480 = vmatprep.subr.mxu0 0.0
        %1481 = vmatpush2.msra.mxu0 0.0
        %1482 = vmatprep.subr.mxu0 0.0
        %1483 = vmatpush2.msra.mxu0 0.0
        %1484 = vmatprep.subr.mxu0 0.0
        %1485 = vmatpush2.msra.mxu0 0.0
        %1486 = vmatprep.subr.mxu0 0.0
        %1487 = vmatpush2.msra.mxu0 0.0
        %1488 = vmatprep.subr.mxu0 0.0
        %1489 = vmatpush2.msra.mxu0 0.0
        %1490 = vmatprep.mubr.f32.mxu0 0.0
        %1491 = vmatmul.mubr.f32.gmra.mxu0 %v1424
        %v1492 = vpop.f32.mrf.mxu0
        %v1493 = vadd.f32 %v1421, %v1492
        %v1494 = vpop.f32.mrf.mxu0
        %1495 = vdwg.mxu0
        %1496 = vrot.lane.b32.xlu0 %v1252, 124
        %v1497 = vpop.permute.xlu0 %1496
        %v1499 = vadd.f32 %v1493, %v1497
        %s1500 = scalar_lea.vmem [#allocation7], 16
        %v1501 = vld [vmem:[%s1500] sm:$0xff]
        %1503 = vrot.lane.b32.xlu0 %v1413, 104
        %v1504 = vpop.permute.xlu0 %1503
        %v1507 = vsel %vm434, %v1501, 0
        %1509 = vmatprep.subr.mxu0 0.0
        %1510 = vmatpush1.msra.mxu0 0.0
        %1511 = vmatprep.subr.mxu0 0.0
        %1512 = vmatpush1.msra.mxu0 0.0
        %1513 = vmatprep.subr.mxu0 0.0
        %1514 = vmatpush1.msra.mxu0 0.0
        %1515 = vmatprep.subr.mxu0 0.0
        %1516 = vmatpush1.msra.mxu0 0.0
        %1517 = vmatprep.subr.mxu0 0.0
        %1518 = vmatpush1.msra.mxu0 0.0
        %1519 = vmatprep.subr.mxu0 0.0
        %1520 = vmatpush1.msra.mxu0 0.0
        %1521 = vmatprep.subr.mxu0 0.0
        %1522 = vmatpush1.msra.mxu0 0.0
        %1523 = vmatprep.subr.mxu0 0.0
        %1524 = vmatpush1.msra.mxu0 0.0
        %1525 = vmatprep.subr.mxu0 0.0
        %1526 = vmatpush1.msra.mxu0 0.0
        %1527 = vmatprep.subr.mxu0 0.0
        %1528 = vmatpush1.msra.mxu0 0.0
        %1529 = vmatprep.subr.mxu0 0.0
        %1530 = vmatpush1.msra.mxu0 0.0
        %1531 = vmatprep.subr.mxu0 0.0
        %1532 = vmatpush1.msra.mxu0 0.0
        %1533 = vmatprep.subr.mxu0 0.0
        %1534 = vmatpush1.msra.mxu0 0.0
        %1535 = vmatprep.subr.mxu0 0.0
        %1536 = vmatpush1.msra.mxu0 0.0
        %1537 = vmatprep.subr.mxu0 0.0
        %1538 = vmatpush1.msra.mxu0 0.0
        %1539 = vmatprep.subr.mxu0 0.0
        %1540 = vmatpush1.msra.mxu0 %v1504
        %1541 = vmatprep.subr.mxu0 0.0
        %1542 = vmatpush2.msra.mxu0 0.0
        %1543 = vmatprep.subr.mxu0 0.0
        %1544 = vmatpush2.msra.mxu0 0.0
        %1545 = vmatprep.subr.mxu0 0.0
        %1546 = vmatpush2.msra.mxu0 0.0
        %1547 = vmatprep.subr.mxu0 0.0
        %1548 = vmatpush2.msra.mxu0 0.0
        %1549 = vmatprep.subr.mxu0 0.0
        %1550 = vmatpush2.msra.mxu0 0.0
        %1551 = vmatprep.subr.mxu0 0.0
        %1552 = vmatpush2.msra.mxu0 0.0
        %1553 = vmatprep.subr.mxu0 0.0
        %1554 = vmatpush2.msra.mxu0 0.0
        %1555 = vmatprep.subr.mxu0 0.0
        %1556 = vmatpush2.msra.mxu0 0.0
        %1557 = vmatprep.subr.mxu0 0.0
        %1558 = vmatpush2.msra.mxu0 0.0
        %1559 = vmatprep.subr.mxu0 0.0
        %1560 = vmatpush2.msra.mxu0 0.0
        %1561 = vmatprep.subr.mxu0 0.0
        %1562 = vmatpush2.msra.mxu0 0.0
        %1563 = vmatprep.subr.mxu0 0.0
        %1564 = vmatpush2.msra.mxu0 0.0
        %1565 = vmatprep.subr.mxu0 0.0
        %1566 = vmatpush2.msra.mxu0 0.0
        %1567 = vmatprep.subr.mxu0 0.0
        %1568 = vmatpush2.msra.mxu0 0.0
        %1569 = vmatprep.subr.mxu0 0.0
        %1570 = vmatpush2.msra.mxu0 0.0
        %1571 = vmatprep.subr.mxu0 0.0
        %1572 = vmatpush2.msra.mxu0 0.0
        %1573 = vmatprep.mubr.f32.mxu0 0.0
        %1574 = vmatmul.mubr.f32.gmra.mxu0 %v1507
        %v1575 = vpop.f32.mrf.mxu0
        %v1576 = vadd.f32 0.0, %v1575
        %v1577 = vpop.f32.mrf.mxu0
        %1578 = vdwg.mxu0
        %v1579 = vadd.f32 %v1245, %v1576
        %s1580 = scalar_lea.vmem %s6, 16
        %v1581 = vld [vmem:[%s1580] sm:$0xff]
        %1583 = vset.pattern.permute.xlu0 0
        %1584 = vperm.xlu0 %1583, %v1581
        %v1585 = vpop.permute.xlu0 %1584
        %v1587 = vadd.f32 %v1579, %v1585
        %vm1588 = vcmask 982016
        %1589 = vst.msk [vmem:[#allocation2 + $0x8] sm:$0xff] %vm1588, %v1499
        %s1590 = scalar_lea.vmem %s2, 48
        %v1591 = vld [vmem:[%s1590] sm:$0xff]
        %v1592 = vld [vmem:[%s1590 + $0x8] sm:$0xff]
        %v1593 = vld [vmem:[#allocation2] sm:$0xff]
        %v1594 = vld [vmem:[#allocation2 + $0x8] sm:$0xff]
        %1596 = vrot.lane.b32.xlu0 %v1594, 124
        %v1597 = vpop.permute.xlu0 %1596
        %v1600 = vsel %vm434, %v1592, 0
        %1602 = vmatprep.subr.mxu0 0.0
        %1603 = vmatpush1.msra.mxu0 0.0
        %1604 = vmatprep.subr.mxu0 0.0
        %1605 = vmatpush1.msra.mxu0 0.0
        %1606 = vmatprep.subr.mxu0 0.0
        %1607 = vmatpush1.msra.mxu0 0.0
        %1608 = vmatprep.subr.mxu0 0.0
        %1609 = vmatpush1.msra.mxu0 0.0
        %1610 = vmatprep.subr.mxu0 0.0
        %1611 = vmatpush1.msra.mxu0 0.0
        %1612 = vmatprep.subr.mxu0 0.0
        %1613 = vmatpush1.msra.mxu0 0.0
        %1614 = vmatprep.subr.mxu0 0.0
        %1615 = vmatpush1.msra.mxu0 0.0
        %1616 = vmatprep.subr.mxu0 0.0
        %1617 = vmatpush1.msra.mxu0 0.0
        %1618 = vmatprep.subr.mxu0 0.0
        %1619 = vmatpush1.msra.mxu0 0.0
        %1620 = vmatprep.subr.mxu0 0.0
        %1621 = vmatpush1.msra.mxu0 0.0
        %1622 = vmatprep.subr.mxu0 0.0
        %1623 = vmatpush1.msra.mxu0 0.0
        %1624 = vmatprep.subr.mxu0 0.0
        %1625 = vmatpush1.msra.mxu0 0.0
        %1626 = vmatprep.subr.mxu0 0.0
        %1627 = vmatpush1.msra.mxu0 0.0
        %1628 = vmatprep.subr.mxu0 0.0
        %1629 = vmatpush1.msra.mxu0 0.0
        %1630 = vmatprep.subr.mxu0 0.0
        %1631 = vmatpush1.msra.mxu0 0.0
        %1632 = vmatprep.subr.mxu0 0.0
        %1633 = vmatpush1.msra.mxu0 %v1597
        %1634 = vmatprep.subr.mxu0 0.0
        %1635 = vmatpush2.msra.mxu0 0.0
        %1636 = vmatprep.subr.mxu0 0.0
        %1637 = vmatpush2.msra.mxu0 0.0
        %1638 = vmatprep.subr.mxu0 0.0
        %1639 = vmatpush2.msra.mxu0 0.0
        %1640 = vmatprep.subr.mxu0 0.0
        %1641 = vmatpush2.msra.mxu0 0.0
        %1642 = vmatprep.subr.mxu0 0.0
        %1643 = vmatpush2.msra.mxu0 0.0
        %1644 = vmatprep.subr.mxu0 0.0
        %1645 = vmatpush2.msra.mxu0 0.0
        %1646 = vmatprep.subr.mxu0 0.0
        %1647 = vmatpush2.msra.mxu0 0.0
        %1648 = vmatprep.subr.mxu0 0.0
        %1649 = vmatpush2.msra.mxu0 0.0
        %1650 = vmatprep.subr.mxu0 0.0
        %1651 = vmatpush2.msra.mxu0 0.0
        %1652 = vmatprep.subr.mxu0 0.0
        %1653 = vmatpush2.msra.mxu0 0.0
        %1654 = vmatprep.subr.mxu0 0.0
        %1655 = vmatpush2.msra.mxu0 0.0
        %1656 = vmatprep.subr.mxu0 0.0
        %1657 = vmatpush2.msra.mxu0 0.0
        %1658 = vmatprep.subr.mxu0 0.0
        %1659 = vmatpush2.msra.mxu0 0.0
        %1660 = vmatprep.subr.mxu0 0.0
        %1661 = vmatpush2.msra.mxu0 0.0
        %1662 = vmatprep.subr.mxu0 0.0
        %1663 = vmatpush2.msra.mxu0 0.0
        %1664 = vmatprep.subr.mxu0 0.0
        %1665 = vmatpush2.msra.mxu0 0.0
        %1666 = vmatprep.mubr.f32.mxu0 0.0
        %1667 = vmatmul.mubr.f32.gmra.mxu0 %v1600
        %v1668 = vpop.f32.mrf.mxu0
        %v1669 = vadd.f32 0.0, %v1668
        %v1670 = vpop.f32.mrf.mxu0
        %1671 = vdwg.mxu0
        %1673 = vrot.lane.b32.xlu0 %v1593, 4
        %v1674 = vpop.permute.xlu0 %1673
        %1675 = vrot.lane.b32.xlu0 %v1594, 4
        %v1676 = vpop.permute.xlu0 %1675
        %vm1677 = vcmask 31744
        %v1678 = vsel %vm1677, %v1674, %v1676
        %v1681 = vsel %vm434, %v1591, 0
        %1683 = vmatprep.subr.mxu0 0.0
        %1684 = vmatpush1.msra.mxu0 0.0
        %1685 = vmatprep.subr.mxu0 0.0
        %1686 = vmatpush1.msra.mxu0 0.0
        %1687 = vmatprep.subr.mxu0 0.0
        %1688 = vmatpush1.msra.mxu0 0.0
        %1689 = vmatprep.subr.mxu0 0.0
        %1690 = vmatpush1.msra.mxu0 0.0
        %1691 = vmatprep.subr.mxu0 0.0
        %1692 = vmatpush1.msra.mxu0 0.0
        %1693 = vmatprep.subr.mxu0 0.0
        %1694 = vmatpush1.msra.mxu0 0.0
        %1695 = vmatprep.subr.mxu0 0.0
        %1696 = vmatpush1.msra.mxu0 0.0
        %1697 = vmatprep.subr.mxu0 0.0
        %1698 = vmatpush1.msra.mxu0 0.0
        %1699 = vmatprep.subr.mxu0 0.0
        %1700 = vmatpush1.msra.mxu0 0.0
        %1701 = vmatprep.subr.mxu0 0.0
        %1702 = vmatpush1.msra.mxu0 0.0
        %1703 = vmatprep.subr.mxu0 0.0
        %1704 = vmatpush1.msra.mxu0 0.0
        %1705 = vmatprep.subr.mxu0 0.0
        %1706 = vmatpush1.msra.mxu0 0.0
        %1707 = vmatprep.subr.mxu0 0.0
        %1708 = vmatpush1.msra.mxu0 0.0
        %1709 = vmatprep.subr.mxu0 0.0
        %1710 = vmatpush1.msra.mxu0 0.0
        %1711 = vmatprep.subr.mxu0 0.0
        %1712 = vmatpush1.msra.mxu0 0.0
        %1713 = vmatprep.subr.mxu0 0.0
        %1714 = vmatpush1.msra.mxu0 %v1678
        %1715 = vmatprep.subr.mxu0 0.0
        %1716 = vmatpush2.msra.mxu0 0.0
        %1717 = vmatprep.subr.mxu0 0.0
        %1718 = vmatpush2.msra.mxu0 0.0
        %1719 = vmatprep.subr.mxu0 0.0
        %1720 = vmatpush2.msra.mxu0 0.0
        %1721 = vmatprep.subr.mxu0 0.0
        %1722 = vmatpush2.msra.mxu0 0.0
        %1723 = vmatprep.subr.mxu0 0.0
        %1724 = vmatpush2.msra.mxu0 0.0
        %1725 = vmatprep.subr.mxu0 0.0
        %1726 = vmatpush2.msra.mxu0 0.0
        %1727 = vmatprep.subr.mxu0 0.0
        %1728 = vmatpush2.msra.mxu0 0.0
        %1729 = vmatprep.subr.mxu0 0.0
        %1730 = vmatpush2.msra.mxu0 0.0
        %1731 = vmatprep.subr.mxu0 0.0
        %1732 = vmatpush2.msra.mxu0 0.0
        %1733 = vmatprep.subr.mxu0 0.0
        %1734 = vmatpush2.msra.mxu0 0.0
        %1735 = vmatprep.subr.mxu0 0.0
        %1736 = vmatpush2.msra.mxu0 0.0
        %1737 = vmatprep.subr.mxu0 0.0
        %1738 = vmatpush2.msra.mxu0 0.0
        %1739 = vmatprep.subr.mxu0 0.0
        %1740 = vmatpush2.msra.mxu0 0.0
        %1741 = vmatprep.subr.mxu0 0.0
        %1742 = vmatpush2.msra.mxu0 0.0
        %1743 = vmatprep.subr.mxu0 0.0
        %1744 = vmatpush2.msra.mxu0 0.0
        %1745 = vmatprep.subr.mxu0 0.0
        %1746 = vmatpush2.msra.mxu0 0.0
        %1747 = vmatprep.mubr.f32.mxu0 0.0
        %1748 = vmatmul.mubr.f32.gmra.mxu0 %v1681
        %v1749 = vpop.f32.mrf.mxu0
        %v1750 = vadd.f32 %v1669, %v1749
        %v1751 = vpop.f32.mrf.mxu0
        %1752 = vdwg.mxu0
        %v1753 = vmax.f32 %v1750, 0.0
        %v1754 = vtanh.pop %v1750
        %v1755 = vmul.f32 %v1753, %v1754
        %s1756 = scalar_lea.vmem [#allocation5], 24
        %v1757 = vld [vmem:[%s1756] sm:$0xff]
        %s1758 = scalar_lea.vmem %s4, 24
        %v1759 = vld [vmem:[%s1758] sm:$0xff]
        %1761 = vset.pattern.permute.xlu0 0
        %1762 = vperm.xlu0 %1761, %v1759
        %v1763 = vpop.permute.xlu0 %1762
        %v1766 = vsel %vm434, %v1757, 0
        %1768 = vmatprep.subr.mxu0 0.0
        %1769 = vmatpush1.msra.mxu0 0.0
        %1770 = vmatprep.subr.mxu0 0.0
        %1771 = vmatpush1.msra.mxu0 0.0
        %1772 = vmatprep.subr.mxu0 0.0
        %1773 = vmatpush1.msra.mxu0 0.0
        %1774 = vmatprep.subr.mxu0 0.0
        %1775 = vmatpush1.msra.mxu0 0.0
        %1776 = vmatprep.subr.mxu0 0.0
        %1777 = vmatpush1.msra.mxu0 0.0
        %1778 = vmatprep.subr.mxu0 0.0
        %1779 = vmatpush1.msra.mxu0 0.0
        %1780 = vmatprep.subr.mxu0 0.0
        %1781 = vmatpush1.msra.mxu0 0.0
        %1782 = vmatprep.subr.mxu0 0.0
        %1783 = vmatpush1.msra.mxu0 0.0
        %1784 = vmatprep.subr.mxu0 0.0
        %1785 = vmatpush1.msra.mxu0 0.0
        %1786 = vmatprep.subr.mxu0 0.0
        %1787 = vmatpush1.msra.mxu0 0.0
        %1788 = vmatprep.subr.mxu0 0.0
        %1789 = vmatpush1.msra.mxu0 0.0
        %1790 = vmatprep.subr.mxu0 0.0
        %1791 = vmatpush1.msra.mxu0 0.0
        %1792 = vmatprep.subr.mxu0 0.0
        %1793 = vmatpush1.msra.mxu0 0.0
        %1794 = vmatprep.subr.mxu0 0.0
        %1795 = vmatpush1.msra.mxu0 0.0
        %1796 = vmatprep.subr.mxu0 0.0
        %1797 = vmatpush1.msra.mxu0 0.0
        %1798 = vmatprep.subr.mxu0 0.0
        %1799 = vmatpush1.msra.mxu0 %v1755
        %1800 = vmatprep.subr.mxu0 0.0
        %1801 = vmatpush2.msra.mxu0 0.0
        %1802 = vmatprep.subr.mxu0 0.0
        %1803 = vmatpush2.msra.mxu0 0.0
        %1804 = vmatprep.subr.mxu0 0.0
        %1805 = vmatpush2.msra.mxu0 0.0
        %1806 = vmatprep.subr.mxu0 0.0
        %1807 = vmatpush2.msra.mxu0 0.0
        %1808 = vmatprep.subr.mxu0 0.0
        %1809 = vmatpush2.msra.mxu0 0.0
        %1810 = vmatprep.subr.mxu0 0.0
        %1811 = vmatpush2.msra.mxu0 0.0
        %1812 = vmatprep.subr.mxu0 0.0
        %1813 = vmatpush2.msra.mxu0 0.0
        %1814 = vmatprep.subr.mxu0 0.0
        %1815 = vmatpush2.msra.mxu0 0.0
        %1816 = vmatprep.subr.mxu0 0.0
        %1817 = vmatpush2.msra.mxu0 0.0
        %1818 = vmatprep.subr.mxu0 0.0
        %1819 = vmatpush2.msra.mxu0 0.0
        %1820 = vmatprep.subr.mxu0 0.0
        %1821 = vmatpush2.msra.mxu0 0.0
        %1822 = vmatprep.subr.mxu0 0.0
        %1823 = vmatpush2.msra.mxu0 0.0
        %1824 = vmatprep.subr.mxu0 0.0
        %1825 = vmatpush2.msra.mxu0 0.0
        %1826 = vmatprep.subr.mxu0 0.0
        %1827 = vmatpush2.msra.mxu0 0.0
        %1828 = vmatprep.subr.mxu0 0.0
        %1829 = vmatpush2.msra.mxu0 0.0
        %1830 = vmatprep.subr.mxu0 0.0
        %1831 = vmatpush2.msra.mxu0 0.0
        %1832 = vmatprep.mubr.f32.mxu0 0.0
        %1833 = vmatmul.mubr.f32.gmra.mxu0 %v1766
        %v1834 = vpop.f32.mrf.mxu0
        %v1835 = vadd.f32 %v1763, %v1834
        %v1836 = vpop.f32.mrf.mxu0
        %1837 = vdwg.mxu0
        %1838 = vrot.lane.b32.xlu0 %v1594, 120
        %v1839 = vpop.permute.xlu0 %1838
        %v1841 = vadd.f32 %v1835, %v1839
        %s1842 = scalar_lea.vmem [#allocation7], 24
        %v1843 = vld [vmem:[%s1842] sm:$0xff]
        %1845 = vrot.lane.b32.xlu0 %v1755, 112
        %v1846 = vpop.permute.xlu0 %1845
        %v1849 = vsel %vm434, %v1843, 0
        %1851 = vmatprep.subr.mxu0 0.0
        %1852 = vmatpush1.msra.mxu0 0.0
        %1853 = vmatprep.subr.mxu0 0.0
        %1854 = vmatpush1.msra.mxu0 0.0
        %1855 = vmatprep.subr.mxu0 0.0
        %1856 = vmatpush1.msra.mxu0 0.0
        %1857 = vmatprep.subr.mxu0 0.0
        %1858 = vmatpush1.msra.mxu0 0.0
        %1859 = vmatprep.subr.mxu0 0.0
        %1860 = vmatpush1.msra.mxu0 0.0
        %1861 = vmatprep.subr.mxu0 0.0
        %1862 = vmatpush1.msra.mxu0 0.0
        %1863 = vmatprep.subr.mxu0 0.0
        %1864 = vmatpush1.msra.mxu0 0.0
        %1865 = vmatprep.subr.mxu0 0.0
        %1866 = vmatpush1.msra.mxu0 0.0
        %1867 = vmatprep.subr.mxu0 0.0
        %1868 = vmatpush1.msra.mxu0 0.0
        %1869 = vmatprep.subr.mxu0 0.0
        %1870 = vmatpush1.msra.mxu0 0.0
        %1871 = vmatprep.subr.mxu0 0.0
        %1872 = vmatpush1.msra.mxu0 0.0
        %1873 = vmatprep.subr.mxu0 0.0
        %1874 = vmatpush1.msra.mxu0 0.0
        %1875 = vmatprep.subr.mxu0 0.0
        %1876 = vmatpush1.msra.mxu0 0.0
        %1877 = vmatprep.subr.mxu0 0.0
        %1878 = vmatpush1.msra.mxu0 0.0
        %1879 = vmatprep.subr.mxu0 0.0
        %1880 = vmatpush1.msra.mxu0 0.0
        %1881 = vmatprep.subr.mxu0 0.0
        %1882 = vmatpush1.msra.mxu0 %v1846
        %1883 = vmatprep.subr.mxu0 0.0
        %1884 = vmatpush2.msra.mxu0 0.0
        %1885 = vmatprep.subr.mxu0 0.0
        %1886 = vmatpush2.msra.mxu0 0.0
        %1887 = vmatprep.subr.mxu0 0.0
        %1888 = vmatpush2.msra.mxu0 0.0
        %1889 = vmatprep.subr.mxu0 0.0
        %1890 = vmatpush2.msra.mxu0 0.0
        %1891 = vmatprep.subr.mxu0 0.0
        %1892 = vmatpush2.msra.mxu0 0.0
        %1893 = vmatprep.subr.mxu0 0.0
        %1894 = vmatpush2.msra.mxu0 0.0
        %1895 = vmatprep.subr.mxu0 0.0
        %1896 = vmatpush2.msra.mxu0 0.0
        %1897 = vmatprep.subr.mxu0 0.0
        %1898 = vmatpush2.msra.mxu0 0.0
        %1899 = vmatprep.subr.mxu0 0.0
        %1900 = vmatpush2.msra.mxu0 0.0
        %1901 = vmatprep.subr.mxu0 0.0
        %1902 = vmatpush2.msra.mxu0 0.0
        %1903 = vmatprep.subr.mxu0 0.0
        %1904 = vmatpush2.msra.mxu0 0.0
        %1905 = vmatprep.subr.mxu0 0.0
        %1906 = vmatpush2.msra.mxu0 0.0
        %1907 = vmatprep.subr.mxu0 0.0
        %1908 = vmatpush2.msra.mxu0 0.0
        %1909 = vmatprep.subr.mxu0 0.0
        %1910 = vmatpush2.msra.mxu0 0.0
        %1911 = vmatprep.subr.mxu0 0.0
        %1912 = vmatpush2.msra.mxu0 0.0
        %1913 = vmatprep.subr.mxu0 0.0
        %1914 = vmatpush2.msra.mxu0 0.0
        %1915 = vmatprep.mubr.f32.mxu0 0.0
        %1916 = vmatmul.mubr.f32.gmra.mxu0 %v1849
        %v1917 = vpop.f32.mrf.mxu0
        %v1918 = vadd.f32 0.0, %v1917
        %v1919 = vpop.f32.mrf.mxu0
        %1920 = vdwg.mxu0
        %v1921 = vadd.f32 %v1587, %v1918
        %s1922 = scalar_lea.vmem %s6, 24
        %v1923 = vld [vmem:[%s1922] sm:$0xff]
        %1925 = vset.pattern.permute.xlu0 0
        %1926 = vperm.xlu0 %1925, %v1923
        %v1927 = vpop.permute.xlu0 %1926
        %v1929 = vadd.f32 %v1921, %v1927
        %vm1930 = vcmask 916480
        %1931 = vst.msk [vmem:[#allocation2 + $0x8] sm:$0xff] %vm1930, %v1841
        %s1932 = scalar_lea.vmem %s2, 64
        %v1933 = vld [vmem:[%s1932] sm:$0xff]
        %v1934 = vld [vmem:[%s1932 + $0x8] sm:$0xff]
        %v1935 = vld [vmem:[#allocation2 + $0x8] sm:$0xff]
        %1937 = vrot.lane.b32.xlu0 %v1935, 127
        %v1938 = vpop.permute.xlu0 %1937
        %v1941 = vsel %vm434, %v1934, 0
        %1943 = vmatprep.subr.mxu0 0.0
        %1944 = vmatpush1.msra.mxu0 0.0
        %1945 = vmatprep.subr.mxu0 0.0
        %1946 = vmatpush1.msra.mxu0 0.0
        %1947 = vmatprep.subr.mxu0 0.0
        %1948 = vmatpush1.msra.mxu0 0.0
        %1949 = vmatprep.subr.mxu0 0.0
        %1950 = vmatpush1.msra.mxu0 0.0
        %1951 = vmatprep.subr.mxu0 0.0
        %1952 = vmatpush1.msra.mxu0 0.0
        %1953 = vmatprep.subr.mxu0 0.0
        %1954 = vmatpush1.msra.mxu0 0.0
        %1955 = vmatprep.subr.mxu0 0.0
        %1956 = vmatpush1.msra.mxu0 0.0
        %1957 = vmatprep.subr.mxu0 0.0
        %1958 = vmatpush1.msra.mxu0 0.0
        %1959 = vmatprep.subr.mxu0 0.0
        %1960 = vmatpush1.msra.mxu0 0.0
        %1961 = vmatprep.subr.mxu0 0.0
        %1962 = vmatpush1.msra.mxu0 0.0
        %1963 = vmatprep.subr.mxu0 0.0
        %1964 = vmatpush1.msra.mxu0 0.0
        %1965 = vmatprep.subr.mxu0 0.0
        %1966 = vmatpush1.msra.mxu0 0.0
        %1967 = vmatprep.subr.mxu0 0.0
        %1968 = vmatpush1.msra.mxu0 0.0
        %1969 = vmatprep.subr.mxu0 0.0
        %1970 = vmatpush1.msra.mxu0 0.0
        %1971 = vmatprep.subr.mxu0 0.0
        %1972 = vmatpush1.msra.mxu0 0.0
        %1973 = vmatprep.subr.mxu0 0.0
        %1974 = vmatpush1.msra.mxu0 %v1938
        %1975 = vmatprep.subr.mxu0 0.0
        %1976 = vmatpush2.msra.mxu0 0.0
        %1977 = vmatprep.subr.mxu0 0.0
        %1978 = vmatpush2.msra.mxu0 0.0
        %1979 = vmatprep.subr.mxu0 0.0
        %1980 = vmatpush2.msra.mxu0 0.0
        %1981 = vmatprep.subr.mxu0 0.0
        %1982 = vmatpush2.msra.mxu0 0.0
        %1983 = vmatprep.subr.mxu0 0.0
        %1984 = vmatpush2.msra.mxu0 0.0
        %1985 = vmatprep.subr.mxu0 0.0
        %1986 = vmatpush2.msra.mxu0 0.0
        %1987 = vmatprep.subr.mxu0 0.0
        %1988 = vmatpush2.msra.mxu0 0.0
        %1989 = vmatprep.subr.mxu0 0.0
        %1990 = vmatpush2.msra.mxu0 0.0
        %1991 = vmatprep.subr.mxu0 0.0
        %1992 = vmatpush2.msra.mxu0 0.0
        %1993 = vmatprep.subr.mxu0 0.0
        %1994 = vmatpush2.msra.mxu0 0.0
        %1995 = vmatprep.subr.mxu0 0.0
        %1996 = vmatpush2.msra.mxu0 0.0
        %1997 = vmatprep.subr.mxu0 0.0
        %1998 = vmatpush2.msra.mxu0 0.0
        %1999 = vmatprep.subr.mxu0 0.0
        %2000 = vmatpush2.msra.mxu0 0.0
        %2001 = vmatprep.subr.mxu0 0.0
        %2002 = vmatpush2.msra.mxu0 0.0
        %2003 = vmatprep.subr.mxu0 0.0
        %2004 = vmatpush2.msra.mxu0 0.0
        %2005 = vmatprep.subr.mxu0 0.0
        %2006 = vmatpush2.msra.mxu0 0.0
        %2007 = vmatprep.mubr.f32.mxu0 0.0
        %2008 = vmatmul.mubr.f32.gmra.mxu0 %v1941
        %v2009 = vpop.f32.mrf.mxu0
        %v2010 = vadd.f32 0.0, %v2009
        %v2011 = vpop.f32.mrf.mxu0
        %2012 = vdwg.mxu0
        %v2014 = vsel %vm434, %v1933, 0
        %2016 = vmatprep.subr.mxu0 0.0
        %2017 = vmatpush1.msra.mxu0 0.0
        %2018 = vmatprep.subr.mxu0 0.0
        %2019 = vmatpush1.msra.mxu0 0.0
        %2020 = vmatprep.subr.mxu0 0.0
        %2021 = vmatpush1.msra.mxu0 0.0
        %2022 = vmatprep.subr.mxu0 0.0
        %2023 = vmatpush1.msra.mxu0 0.0
        %2024 = vmatprep.subr.mxu0 0.0
        %2025 = vmatpush1.msra.mxu0 0.0
        %2026 = vmatprep.subr.mxu0 0.0
        %2027 = vmatpush1.msra.mxu0 0.0
        %2028 = vmatprep.subr.mxu0 0.0
        %2029 = vmatpush1.msra.mxu0 0.0
        %2030 = vmatprep.subr.mxu0 0.0
        %2031 = vmatpush1.msra.mxu0 0.0
        %2032 = vmatprep.subr.mxu0 0.0
        %2033 = vmatpush1.msra.mxu0 0.0
        %2034 = vmatprep.subr.mxu0 0.0
        %2035 = vmatpush1.msra.mxu0 0.0
        %2036 = vmatprep.subr.mxu0 0.0
        %2037 = vmatpush1.msra.mxu0 0.0
        %2038 = vmatprep.subr.mxu0 0.0
        %2039 = vmatpush1.msra.mxu0 0.0
        %2040 = vmatprep.subr.mxu0 0.0
        %2041 = vmatpush1.msra.mxu0 0.0
        %2042 = vmatprep.subr.mxu0 0.0
        %2043 = vmatpush1.msra.mxu0 0.0
        %2044 = vmatprep.subr.mxu0 0.0
        %2045 = vmatpush1.msra.mxu0 0.0
        %2046 = vmatprep.subr.mxu0 0.0
        %2047 = vmatpush1.msra.mxu0 %v1935
        %2048 = vmatprep.subr.mxu0 0.0
        %2049 = vmatpush2.msra.mxu0 0.0
        %2050 = vmatprep.subr.mxu0 0.0
        %2051 = vmatpush2.msra.mxu0 0.0
        %2052 = vmatprep.subr.mxu0 0.0
        %2053 = vmatpush2.msra.mxu0 0.0
        %2054 = vmatprep.subr.mxu0 0.0
        %2055 = vmatpush2.msra.mxu0 0.0
        %2056 = vmatprep.subr.mxu0 0.0
        %2057 = vmatpush2.msra.mxu0 0.0
        %2058 = vmatprep.subr.mxu0 0.0
        %2059 = vmatpush2.msra.mxu0 0.0
        %2060 = vmatprep.subr.mxu0 0.0
        %2061 = vmatpush2.msra.mxu0 0.0
        %2062 = vmatprep.subr.mxu0 0.0
        %2063 = vmatpush2.msra.mxu0 0.0
        %2064 = vmatprep.subr.mxu0 0.0
        %2065 = vmatpush2.msra.mxu0 0.0
        %2066 = vmatprep.subr.mxu0 0.0
        %2067 = vmatpush2.msra.mxu0 0.0
        %2068 = vmatprep.subr.mxu0 0.0
        %2069 = vmatpush2.msra.mxu0 0.0
        %2070 = vmatprep.subr.mxu0 0.0
        %2071 = vmatpush2.msra.mxu0 0.0
        %2072 = vmatprep.subr.mxu0 0.0
        %2073 = vmatpush2.msra.mxu0 0.0
        %2074 = vmatprep.subr.mxu0 0.0
        %2075 = vmatpush2.msra.mxu0 0.0
        %2076 = vmatprep.subr.mxu0 0.0
        %2077 = vmatpush2.msra.mxu0 0.0
        %2078 = vmatprep.subr.mxu0 0.0
        %2079 = vmatpush2.msra.mxu0 0.0
        %2080 = vmatprep.mubr.f32.mxu0 0.0
        %2081 = vmatmul.mubr.f32.gmra.mxu0 %v2014
        %v2082 = vpop.f32.mrf.mxu0
        %v2083 = vadd.f32 %v2010, %v2082
        %v2084 = vpop.f32.mrf.mxu0
        %2085 = vdwg.mxu0
        %v2086 = vmax.f32 %v2083, 0.0
        %v2087 = vtanh.pop %v2083
        %v2088 = vmul.f32 %v2086, %v2087
        %s2089 = scalar_lea.vmem [#allocation5], 32
        %v2090 = vld [vmem:[%s2089] sm:$0xff]
        %s2091 = scalar_lea.vmem %s4, 32
        %v2092 = vld [vmem:[%s2091] sm:$0xff]
        %2094 = vset.pattern.permute.xlu0 0
        %2095 = vperm.xlu0 %2094, %v2092
        %v2096 = vpop.permute.xlu0 %2095
        %v2099 = vsel %vm434, %v2090, 0
        %2101 = vmatprep.subr.mxu0 0.0
        %2102 = vmatpush1.msra.mxu0 0.0
        %2103 = vmatprep.subr.mxu0 0.0
        %2104 = vmatpush1.msra.mxu0 0.0
        %2105 = vmatprep.subr.mxu0 0.0
        %2106 = vmatpush1.msra.mxu0 0.0
        %2107 = vmatprep.subr.mxu0 0.0
        %2108 = vmatpush1.msra.mxu0 0.0
        %2109 = vmatprep.subr.mxu0 0.0
        %2110 = vmatpush1.msra.mxu0 0.0
        %2111 = vmatprep.subr.mxu0 0.0
        %2112 = vmatpush1.msra.mxu0 0.0
        %2113 = vmatprep.subr.mxu0 0.0
        %2114 = vmatpush1.msra.mxu0 0.0
        %2115 = vmatprep.subr.mxu0 0.0
        %2116 = vmatpush1.msra.mxu0 0.0
        %2117 = vmatprep.subr.mxu0 0.0
        %2118 = vmatpush1.msra.mxu0 0.0
        %2119 = vmatprep.subr.mxu0 0.0
        %2120 = vmatpush1.msra.mxu0 0.0
        %2121 = vmatprep.subr.mxu0 0.0
        %2122 = vmatpush1.msra.mxu0 0.0
        %2123 = vmatprep.subr.mxu0 0.0
        %2124 = vmatpush1.msra.mxu0 0.0
        %2125 = vmatprep.subr.mxu0 0.0
        %2126 = vmatpush1.msra.mxu0 0.0
        %2127 = vmatprep.subr.mxu0 0.0
        %2128 = vmatpush1.msra.mxu0 0.0
        %2129 = vmatprep.subr.mxu0 0.0
        %2130 = vmatpush1.msra.mxu0 0.0
        %2131 = vmatprep.subr.mxu0 0.0
        %2132 = vmatpush1.msra.mxu0 %v2088
        %2133 = vmatprep.subr.mxu0 0.0
        %2134 = vmatpush2.msra.mxu0 0.0
        %2135 = vmatprep.subr.mxu0 0.0
        %2136 = vmatpush2.msra.mxu0 0.0
        %2137 = vmatprep.subr.mxu0 0.0
        %2138 = vmatpush2.msra.mxu0 0.0
        %2139 = vmatprep.subr.mxu0 0.0
        %2140 = vmatpush2.msra.mxu0 0.0
        %2141 = vmatprep.subr.mxu0 0.0
        %2142 = vmatpush2.msra.mxu0 0.0
        %2143 = vmatprep.subr.mxu0 0.0
        %2144 = vmatpush2.msra.mxu0 0.0
        %2145 = vmatprep.subr.mxu0 0.0
        %2146 = vmatpush2.msra.mxu0 0.0
        %2147 = vmatprep.subr.mxu0 0.0
        %2148 = vmatpush2.msra.mxu0 0.0
        %2149 = vmatprep.subr.mxu0 0.0
        %2150 = vmatpush2.msra.mxu0 0.0
        %2151 = vmatprep.subr.mxu0 0.0
        %2152 = vmatpush2.msra.mxu0 0.0
        %2153 = vmatprep.subr.mxu0 0.0
        %2154 = vmatpush2.msra.mxu0 0.0
        %2155 = vmatprep.subr.mxu0 0.0
        %2156 = vmatpush2.msra.mxu0 0.0
        %2157 = vmatprep.subr.mxu0 0.0
        %2158 = vmatpush2.msra.mxu0 0.0
        %2159 = vmatprep.subr.mxu0 0.0
        %2160 = vmatpush2.msra.mxu0 0.0
        %2161 = vmatprep.subr.mxu0 0.0
        %2162 = vmatpush2.msra.mxu0 0.0
        %2163 = vmatprep.subr.mxu0 0.0
        %2164 = vmatpush2.msra.mxu0 0.0
        %2165 = vmatprep.mubr.f32.mxu0 0.0
        %2166 = vmatmul.mubr.f32.gmra.mxu0 %v2099
        %v2167 = vpop.f32.mrf.mxu0
        %v2168 = vadd.f32 %v2096, %v2167
        %v2169 = vpop.f32.mrf.mxu0
        %2170 = vdwg.mxu0
        %v2171 = vadd.f32 %v2168, %v1938
        %s2172 = scalar_lea.vmem [#allocation7], 32
        %v2173 = vld [vmem:[%s2172] sm:$0xff]
        %2175 = vrot.lane.b32.xlu0 %v2088, 113
        %v2176 = vpop.permute.xlu0 %2175
        %v2179 = vsel %vm434, %v2173, 0
        %2181 = vmatprep.subr.mxu0 0.0
        %2182 = vmatpush1.msra.mxu0 0.0
        %2183 = vmatprep.subr.mxu0 0.0
        %2184 = vmatpush1.msra.mxu0 0.0
        %2185 = vmatprep.subr.mxu0 0.0
        %2186 = vmatpush1.msra.mxu0 0.0
        %2187 = vmatprep.subr.mxu0 0.0
        %2188 = vmatpush1.msra.mxu0 0.0
        %2189 = vmatprep.subr.mxu0 0.0
        %2190 = vmatpush1.msra.mxu0 0.0
        %2191 = vmatprep.subr.mxu0 0.0
        %2192 = vmatpush1.msra.mxu0 0.0
        %2193 = vmatprep.subr.mxu0 0.0
        %2194 = vmatpush1.msra.mxu0 0.0
        %2195 = vmatprep.subr.mxu0 0.0
        %2196 = vmatpush1.msra.mxu0 0.0
        %2197 = vmatprep.subr.mxu0 0.0
        %2198 = vmatpush1.msra.mxu0 0.0
        %2199 = vmatprep.subr.mxu0 0.0
        %2200 = vmatpush1.msra.mxu0 0.0
        %2201 = vmatprep.subr.mxu0 0.0
        %2202 = vmatpush1.msra.mxu0 0.0
        %2203 = vmatprep.subr.mxu0 0.0
        %2204 = vmatpush1.msra.mxu0 0.0
        %2205 = vmatprep.subr.mxu0 0.0
        %2206 = vmatpush1.msra.mxu0 0.0
        %2207 = vmatprep.subr.mxu0 0.0
        %2208 = vmatpush1.msra.mxu0 0.0
        %2209 = vmatprep.subr.mxu0 0.0
        %2210 = vmatpush1.msra.mxu0 0.0
        %2211 = vmatprep.subr.mxu0 0.0
        %2212 = vmatpush1.msra.mxu0 %v2176
        %2213 = vmatprep.subr.mxu0 0.0
        %2214 = vmatpush2.msra.mxu0 0.0
        %2215 = vmatprep.subr.mxu0 0.0
        %2216 = vmatpush2.msra.mxu0 0.0
        %2217 = vmatprep.subr.mxu0 0.0
        %2218 = vmatpush2.msra.mxu0 0.0
        %2219 = vmatprep.subr.mxu0 0.0
        %2220 = vmatpush2.msra.mxu0 0.0
        %2221 = vmatprep.subr.mxu0 0.0
        %2222 = vmatpush2.msra.mxu0 0.0
        %2223 = vmatprep.subr.mxu0 0.0
        %2224 = vmatpush2.msra.mxu0 0.0
        %2225 = vmatprep.subr.mxu0 0.0
        %2226 = vmatpush2.msra.mxu0 0.0
        %2227 = vmatprep.subr.mxu0 0.0
        %2228 = vmatpush2.msra.mxu0 0.0
        %2229 = vmatprep.subr.mxu0 0.0
        %2230 = vmatpush2.msra.mxu0 0.0
        %2231 = vmatprep.subr.mxu0 0.0
        %2232 = vmatpush2.msra.mxu0 0.0
        %2233 = vmatprep.subr.mxu0 0.0
        %2234 = vmatpush2.msra.mxu0 0.0
        %2235 = vmatprep.subr.mxu0 0.0
        %2236 = vmatpush2.msra.mxu0 0.0
        %2237 = vmatprep.subr.mxu0 0.0
        %2238 = vmatpush2.msra.mxu0 0.0
        %2239 = vmatprep.subr.mxu0 0.0
        %2240 = vmatpush2.msra.mxu0 0.0
        %2241 = vmatprep.subr.mxu0 0.0
        %2242 = vmatpush2.msra.mxu0 0.0
        %2243 = vmatprep.subr.mxu0 0.0
        %2244 = vmatpush2.msra.mxu0 0.0
        %2245 = vmatprep.mubr.f32.mxu0 0.0
        %2246 = vmatmul.mubr.f32.gmra.mxu0 %v2179
        %v2247 = vpop.f32.mrf.mxu0
        %v2248 = vadd.f32 0.0, %v2247
        %v2249 = vpop.f32.mrf.mxu0
        %2250 = vdwg.mxu0
        %v2251 = vadd.f32 %v1929, %v2248
        %s2252 = scalar_lea.vmem %s6, 32
        %v2253 = vld [vmem:[%s2252] sm:$0xff]
        %2255 = vset.pattern.permute.xlu0 0
        %2256 = vperm.xlu0 %2255, %v2253
        %v2257 = vpop.permute.xlu0 %2256
        %v2259 = vadd.f32 %v2251, %v2257
        %vm2260 = vcmask 908288
        %2261 = vst.msk [vmem:[#allocation2 + $0x8] sm:$0xff] %vm2260, %v2171
        %s2262 = scalar_lea.vmem %s2, 80
        %v2263 = vld [vmem:[%s2262] sm:$0xff]
        %v2264 = vld [vmem:[%s2262 + $0x8] sm:$0xff]
        %v2265 = vld [vmem:[#allocation2] sm:$0xff]
        %v2266 = vld [vmem:[#allocation2 + $0x8] sm:$0xff]
        %2268 = vrot.lane.b32.xlu0 %v2266, 127
        %v2269 = vpop.permute.xlu0 %2268
        %v2272 = vsel %vm434, %v2264, 0
        %2274 = vmatprep.subr.mxu0 0.0
        %2275 = vmatpush1.msra.mxu0 0.0
        %2276 = vmatprep.subr.mxu0 0.0
        %2277 = vmatpush1.msra.mxu0 0.0
        %2278 = vmatprep.subr.mxu0 0.0
        %2279 = vmatpush1.msra.mxu0 0.0
        %2280 = vmatprep.subr.mxu0 0.0
        %2281 = vmatpush1.msra.mxu0 0.0
        %2282 = vmatprep.subr.mxu0 0.0
        %2283 = vmatpush1.msra.mxu0 0.0
        %2284 = vmatprep.subr.mxu0 0.0
        %2285 = vmatpush1.msra.mxu0 0.0
        %2286 = vmatprep.subr.mxu0 0.0
        %2287 = vmatpush1.msra.mxu0 0.0
        %2288 = vmatprep.subr.mxu0 0.0
        %2289 = vmatpush1.msra.mxu0 0.0
        %2290 = vmatprep.subr.mxu0 0.0
        %2291 = vmatpush1.msra.mxu0 0.0
        %2292 = vmatprep.subr.mxu0 0.0
        %2293 = vmatpush1.msra.mxu0 0.0
        %2294 = vmatprep.subr.mxu0 0.0
        %2295 = vmatpush1.msra.mxu0 0.0
        %2296 = vmatprep.subr.mxu0 0.0
        %2297 = vmatpush1.msra.mxu0 0.0
        %2298 = vmatprep.subr.mxu0 0.0
        %2299 = vmatpush1.msra.mxu0 0.0
        %2300 = vmatprep.subr.mxu0 0.0
        %2301 = vmatpush1.msra.mxu0 0.0
        %2302 = vmatprep.subr.mxu0 0.0
        %2303 = vmatpush1.msra.mxu0 0.0
        %2304 = vmatprep.subr.mxu0 0.0
        %2305 = vmatpush1.msra.mxu0 %v2269
        %2306 = vmatprep.subr.mxu0 0.0
        %2307 = vmatpush2.msra.mxu0 0.0
        %2308 = vmatprep.subr.mxu0 0.0
        %2309 = vmatpush2.msra.mxu0 0.0
        %2310 = vmatprep.subr.mxu0 0.0
        %2311 = vmatpush2.msra.mxu0 0.0
        %2312 = vmatprep.subr.mxu0 0.0
        %2313 = vmatpush2.msra.mxu0 0.0
        %2314 = vmatprep.subr.mxu0 0.0
        %2315 = vmatpush2.msra.mxu0 0.0
        %2316 = vmatprep.subr.mxu0 0.0
        %2317 = vmatpush2.msra.mxu0 0.0
        %2318 = vmatprep.subr.mxu0 0.0
        %2319 = vmatpush2.msra.mxu0 0.0
        %2320 = vmatprep.subr.mxu0 0.0
        %2321 = vmatpush2.msra.mxu0 0.0
        %2322 = vmatprep.subr.mxu0 0.0
        %2323 = vmatpush2.msra.mxu0 0.0
        %2324 = vmatprep.subr.mxu0 0.0
        %2325 = vmatpush2.msra.mxu0 0.0
        %2326 = vmatprep.subr.mxu0 0.0
        %2327 = vmatpush2.msra.mxu0 0.0
        %2328 = vmatprep.subr.mxu0 0.0
        %2329 = vmatpush2.msra.mxu0 0.0
        %2330 = vmatprep.subr.mxu0 0.0
        %2331 = vmatpush2.msra.mxu0 0.0
        %2332 = vmatprep.subr.mxu0 0.0
        %2333 = vmatpush2.msra.mxu0 0.0
        %2334 = vmatprep.subr.mxu0 0.0
        %2335 = vmatpush2.msra.mxu0 0.0
        %2336 = vmatprep.subr.mxu0 0.0
        %2337 = vmatpush2.msra.mxu0 0.0
        %2338 = vmatprep.mubr.f32.mxu0 0.0
        %2339 = vmatmul.mubr.f32.gmra.mxu0 %v2272
        %v2340 = vpop.f32.mrf.mxu0
        %v2341 = vadd.f32 0.0, %v2340
        %v2342 = vpop.f32.mrf.mxu0
        %2343 = vdwg.mxu0
        %2345 = vrot.lane.b32.xlu0 %v2265, 1
        %v2346 = vpop.permute.xlu0 %2345
        %2347 = vrot.lane.b32.xlu0 %v2266, 1
        %v2348 = vpop.permute.xlu0 %2347
        %v2349 = vsel %vm993, %v2346, %v2348
        %v2352 = vsel %vm434, %v2263, 0
        %2354 = vmatprep.subr.mxu0 0.0
        %2355 = vmatpush1.msra.mxu0 0.0
        %2356 = vmatprep.subr.mxu0 0.0
        %2357 = vmatpush1.msra.mxu0 0.0
        %2358 = vmatprep.subr.mxu0 0.0
        %2359 = vmatpush1.msra.mxu0 0.0
        %2360 = vmatprep.subr.mxu0 0.0
        %2361 = vmatpush1.msra.mxu0 0.0
        %2362 = vmatprep.subr.mxu0 0.0
        %2363 = vmatpush1.msra.mxu0 0.0
        %2364 = vmatprep.subr.mxu0 0.0
        %2365 = vmatpush1.msra.mxu0 0.0
        %2366 = vmatprep.subr.mxu0 0.0
        %2367 = vmatpush1.msra.mxu0 0.0
        %2368 = vmatprep.subr.mxu0 0.0
        %2369 = vmatpush1.msra.mxu0 0.0
        %2370 = vmatprep.subr.mxu0 0.0
        %2371 = vmatpush1.msra.mxu0 0.0
        %2372 = vmatprep.subr.mxu0 0.0
        %2373 = vmatpush1.msra.mxu0 0.0
        %2374 = vmatprep.subr.mxu0 0.0
        %2375 = vmatpush1.msra.mxu0 0.0
        %2376 = vmatprep.subr.mxu0 0.0
        %2377 = vmatpush1.msra.mxu0 0.0
        %2378 = vmatprep.subr.mxu0 0.0
        %2379 = vmatpush1.msra.mxu0 0.0
        %2380 = vmatprep.subr.mxu0 0.0
        %2381 = vmatpush1.msra.mxu0 0.0
        %2382 = vmatprep.subr.mxu0 0.0
        %2383 = vmatpush1.msra.mxu0 0.0
        %2384 = vmatprep.subr.mxu0 0.0
        %2385 = vmatpush1.msra.mxu0 %v2349
        %2386 = vmatprep.subr.mxu0 0.0
        %2387 = vmatpush2.msra.mxu0 0.0
        %2388 = vmatprep.subr.mxu0 0.0
        %2389 = vmatpush2.msra.mxu0 0.0
        %2390 = vmatprep.subr.mxu0 0.0
        %2391 = vmatpush2.msra.mxu0 0.0
        %2392 = vmatprep.subr.mxu0 0.0
        %2393 = vmatpush2.msra.mxu0 0.0
        %2394 = vmatprep.subr.mxu0 0.0
        %2395 = vmatpush2.msra.mxu0 0.0
        %2396 = vmatprep.subr.mxu0 0.0
        %2397 = vmatpush2.msra.mxu0 0.0
        %2398 = vmatprep.subr.mxu0 0.0
        %2399 = vmatpush2.msra.mxu0 0.0
        %2400 = vmatprep.subr.mxu0 0.0
        %2401 = vmatpush2.msra.mxu0 0.0
        %2402 = vmatprep.subr.mxu0 0.0
        %2403 = vmatpush2.msra.mxu0 0.0
        %2404 = vmatprep.subr.mxu0 0.0
        %2405 = vmatpush2.msra.mxu0 0.0
        %2406 = vmatprep.subr.mxu0 0.0
        %2407 = vmatpush2.msra.mxu0 0.0
        %2408 = vmatprep.subr.mxu0 0.0
        %2409 = vmatpush2.msra.mxu0 0.0
        %2410 = vmatprep.subr.mxu0 0.0
        %2411 = vmatpush2.msra.mxu0 0.0
        %2412 = vmatprep.subr.mxu0 0.0
        %2413 = vmatpush2.msra.mxu0 0.0
        %2414 = vmatprep.subr.mxu0 0.0
        %2415 = vmatpush2.msra.mxu0 0.0
        %2416 = vmatprep.subr.mxu0 0.0
        %2417 = vmatpush2.msra.mxu0 0.0
        %2418 = vmatprep.mubr.f32.mxu0 0.0
        %2419 = vmatmul.mubr.f32.gmra.mxu0 %v2352
        %v2420 = vpop.f32.mrf.mxu0
        %v2421 = vadd.f32 %v2341, %v2420
        %v2422 = vpop.f32.mrf.mxu0
        %2423 = vdwg.mxu0
        %v2424 = vmax.f32 %v2421, 0.0
        %v2425 = vtanh.pop %v2421
        %v2426 = vmul.f32 %v2424, %v2425
        %s2427 = scalar_lea.vmem [#allocation5], 40
        %v2428 = vld [vmem:[%s2427] sm:$0xff]
        %s2429 = scalar_lea.vmem %s4, 40
        %v2430 = vld [vmem:[%s2429] sm:$0xff]
        %2432 = vset.pattern.permute.xlu0 0
        %2433 = vperm.xlu0 %2432, %v2430
        %v2434 = vpop.permute.xlu0 %2433
        %v2437 = vsel %vm434, %v2428, 0
        %2439 = vmatprep.subr.mxu0 0.0
        %2440 = vmatpush1.msra.mxu0 0.0
        %2441 = vmatprep.subr.mxu0 0.0
        %2442 = vmatpush1.msra.mxu0 0.0
        %2443 = vmatprep.subr.mxu0 0.0
        %2444 = vmatpush1.msra.mxu0 0.0
        %2445 = vmatprep.subr.mxu0 0.0
        %2446 = vmatpush1.msra.mxu0 0.0
        %2447 = vmatprep.subr.mxu0 0.0
        %2448 = vmatpush1.msra.mxu0 0.0
        %2449 = vmatprep.subr.mxu0 0.0
        %2450 = vmatpush1.msra.mxu0 0.0
        %2451 = vmatprep.subr.mxu0 0.0
        %2452 = vmatpush1.msra.mxu0 0.0
        %2453 = vmatprep.subr.mxu0 0.0
        %2454 = vmatpush1.msra.mxu0 0.0
        %2455 = vmatprep.subr.mxu0 0.0
        %2456 = vmatpush1.msra.mxu0 0.0
        %2457 = vmatprep.subr.mxu0 0.0
        %2458 = vmatpush1.msra.mxu0 0.0
        %2459 = vmatprep.subr.mxu0 0.0
        %2460 = vmatpush1.msra.mxu0 0.0
        %2461 = vmatprep.subr.mxu0 0.0
        %2462 = vmatpush1.msra.mxu0 0.0
        %2463 = vmatprep.subr.mxu0 0.0
        %2464 = vmatpush1.msra.mxu0 0.0
        %2465 = vmatprep.subr.mxu0 0.0
        %2466 = vmatpush1.msra.mxu0 0.0
        %2467 = vmatprep.subr.mxu0 0.0
        %2468 = vmatpush1.msra.mxu0 0.0
        %2469 = vmatprep.subr.mxu0 0.0
        %2470 = vmatpush1.msra.mxu0 %v2426
        %2471 = vmatprep.subr.mxu0 0.0
        %2472 = vmatpush2.msra.mxu0 0.0
        %2473 = vmatprep.subr.mxu0 0.0
        %2474 = vmatpush2.msra.mxu0 0.0
        %2475 = vmatprep.subr.mxu0 0.0
        %2476 = vmatpush2.msra.mxu0 0.0
        %2477 = vmatprep.subr.mxu0 0.0
        %2478 = vmatpush2.msra.mxu0 0.0
        %2479 = vmatprep.subr.mxu0 0.0
        %2480 = vmatpush2.msra.mxu0 0.0
        %2481 = vmatprep.subr.mxu0 0.0
        %2482 = vmatpush2.msra.mxu0 0.0
        %2483 = vmatprep.subr.mxu0 0.0
        %2484 = vmatpush2.msra.mxu0 0.0
        %2485 = vmatprep.subr.mxu0 0.0
        %2486 = vmatpush2.msra.mxu0 0.0
        %2487 = vmatprep.subr.mxu0 0.0
        %2488 = vmatpush2.msra.mxu0 0.0
        %2489 = vmatprep.subr.mxu0 0.0
        %2490 = vmatpush2.msra.mxu0 0.0
        %2491 = vmatprep.subr.mxu0 0.0
        %2492 = vmatpush2.msra.mxu0 0.0
        %2493 = vmatprep.subr.mxu0 0.0
        %2494 = vmatpush2.msra.mxu0 0.0
        %2495 = vmatprep.subr.mxu0 0.0
        %2496 = vmatpush2.msra.mxu0 0.0
        %2497 = vmatprep.subr.mxu0 0.0
        %2498 = vmatpush2.msra.mxu0 0.0
        %2499 = vmatprep.subr.mxu0 0.0
        %2500 = vmatpush2.msra.mxu0 0.0
        %2501 = vmatprep.subr.mxu0 0.0
        %2502 = vmatpush2.msra.mxu0 0.0
        %2503 = vmatprep.mubr.f32.mxu0 0.0
        %2504 = vmatmul.mubr.f32.gmra.mxu0 %v2437
        %v2505 = vpop.f32.mrf.mxu0
        %v2506 = vadd.f32 %v2434, %v2505
        %v2507 = vpop.f32.mrf.mxu0
        %2508 = vdwg.mxu0
        %2509 = vrot.lane.b32.xlu0 %v2266, 126
        %v2510 = vpop.permute.xlu0 %2509
        %v2512 = vadd.f32 %v2506, %v2510
        %s2513 = scalar_lea.vmem [#allocation7], 40
        %v2514 = vld [vmem:[%s2513] sm:$0xff]
        %2516 = vrot.lane.b32.xlu0 %v2426, 115
        %v2517 = vpop.permute.xlu0 %2516
        %v2520 = vsel %vm434, %v2514, 0
        %2522 = vmatprep.subr.mxu0 0.0
        %2523 = vmatpush1.msra.mxu0 0.0
        %2524 = vmatprep.subr.mxu0 0.0
        %2525 = vmatpush1.msra.mxu0 0.0
        %2526 = vmatprep.subr.mxu0 0.0
        %2527 = vmatpush1.msra.mxu0 0.0
        %2528 = vmatprep.subr.mxu0 0.0
        %2529 = vmatpush1.msra.mxu0 0.0
        %2530 = vmatprep.subr.mxu0 0.0
        %2531 = vmatpush1.msra.mxu0 0.0
        %2532 = vmatprep.subr.mxu0 0.0
        %2533 = vmatpush1.msra.mxu0 0.0
        %2534 = vmatprep.subr.mxu0 0.0
        %2535 = vmatpush1.msra.mxu0 0.0
        %2536 = vmatprep.subr.mxu0 0.0
        %2537 = vmatpush1.msra.mxu0 0.0
        %2538 = vmatprep.subr.mxu0 0.0
        %2539 = vmatpush1.msra.mxu0 0.0
        %2540 = vmatprep.subr.mxu0 0.0
        %2541 = vmatpush1.msra.mxu0 0.0
        %2542 = vmatprep.subr.mxu0 0.0
        %2543 = vmatpush1.msra.mxu0 0.0
        %2544 = vmatprep.subr.mxu0 0.0
        %2545 = vmatpush1.msra.mxu0 0.0
        %2546 = vmatprep.subr.mxu0 0.0
        %2547 = vmatpush1.msra.mxu0 0.0
        %2548 = vmatprep.subr.mxu0 0.0
        %2549 = vmatpush1.msra.mxu0 0.0
        %2550 = vmatprep.subr.mxu0 0.0
        %2551 = vmatpush1.msra.mxu0 0.0
        %2552 = vmatprep.subr.mxu0 0.0
        %2553 = vmatpush1.msra.mxu0 %v2517
        %2554 = vmatprep.subr.mxu0 0.0
        %2555 = vmatpush2.msra.mxu0 0.0
        %2556 = vmatprep.subr.mxu0 0.0
        %2557 = vmatpush2.msra.mxu0 0.0
        %2558 = vmatprep.subr.mxu0 0.0
        %2559 = vmatpush2.msra.mxu0 0.0
        %2560 = vmatprep.subr.mxu0 0.0
        %2561 = vmatpush2.msra.mxu0 0.0
        %2562 = vmatprep.subr.mxu0 0.0
        %2563 = vmatpush2.msra.mxu0 0.0
        %2564 = vmatprep.subr.mxu0 0.0
        %2565 = vmatpush2.msra.mxu0 0.0
        %2566 = vmatprep.subr.mxu0 0.0
        %2567 = vmatpush2.msra.mxu0 0.0
        %2568 = vmatprep.subr.mxu0 0.0
        %2569 = vmatpush2.msra.mxu0 0.0
        %2570 = vmatprep.subr.mxu0 0.0
        %2571 = vmatpush2.msra.mxu0 0.0
        %2572 = vmatprep.subr.mxu0 0.0
        %2573 = vmatpush2.msra.mxu0 0.0
        %2574 = vmatprep.subr.mxu0 0.0
        %2575 = vmatpush2.msra.mxu0 0.0
        %2576 = vmatprep.subr.mxu0 0.0
        %2577 = vmatpush2.msra.mxu0 0.0
        %2578 = vmatprep.subr.mxu0 0.0
        %2579 = vmatpush2.msra.mxu0 0.0
        %2580 = vmatprep.subr.mxu0 0.0
        %2581 = vmatpush2.msra.mxu0 0.0
        %2582 = vmatprep.subr.mxu0 0.0
        %2583 = vmatpush2.msra.mxu0 0.0
        %2584 = vmatprep.subr.mxu0 0.0
        %2585 = vmatpush2.msra.mxu0 0.0
        %2586 = vmatprep.mubr.f32.mxu0 0.0
        %2587 = vmatmul.mubr.f32.gmra.mxu0 %v2520
        %v2588 = vpop.f32.mrf.mxu0
        %v2589 = vadd.f32 0.0, %v2588
        %v2590 = vpop.f32.mrf.mxu0
        %2591 = vdwg.mxu0
        %v2592 = vadd.f32 %v2259, %v2589
        %s2593 = scalar_lea.vmem %s6, 40
        %v2594 = vld [vmem:[%s2593] sm:$0xff]
        %2596 = vset.pattern.permute.xlu0 0
        %2597 = vperm.xlu0 %2596, %v2594
        %v2598 = vpop.permute.xlu0 %2597
        %v2600 = vadd.f32 %v2592, %v2598
        %vm2601 = vcmask 891904
        %2602 = vst.msk [vmem:[#allocation2 + $0x8] sm:$0xff] %vm2601, %v2512
        %s2603 = scalar_lea.vmem %s2, 96
        %v2604 = vld [vmem:[%s2603] sm:$0xff]
        %v2605 = vld [vmem:[%s2603 + $0x8] sm:$0xff]
        %v2606 = vld [vmem:[#allocation2] sm:$0xff]
        %v2607 = vld [vmem:[#allocation2 + $0x8] sm:$0xff]
        %2609 = vrot.lane.b32.xlu0 %v2607, 126
        %v2610 = vpop.permute.xlu0 %2609
        %v2613 = vsel %vm434, %v2605, 0
        %2615 = vmatprep.subr.mxu0 0.0
        %2616 = vmatpush1.msra.mxu0 0.0
        %2617 = vmatprep.subr.mxu0 0.0
        %2618 = vmatpush1.msra.mxu0 0.0
        %2619 = vmatprep.subr.mxu0 0.0
        %2620 = vmatpush1.msra.mxu0 0.0
        %2621 = vmatprep.subr.mxu0 0.0
        %2622 = vmatpush1.msra.mxu0 0.0
        %2623 = vmatprep.subr.mxu0 0.0
        %2624 = vmatpush1.msra.mxu0 0.0
        %2625 = vmatprep.subr.mxu0 0.0
        %2626 = vmatpush1.msra.mxu0 0.0
        %2627 = vmatprep.subr.mxu0 0.0
        %2628 = vmatpush1.msra.mxu0 0.0
        %2629 = vmatprep.subr.mxu0 0.0
        %2630 = vmatpush1.msra.mxu0 0.0
        %2631 = vmatprep.subr.mxu0 0.0
        %2632 = vmatpush1.msra.mxu0 0.0
        %2633 = vmatprep.subr.mxu0 0.0
        %2634 = vmatpush1.msra.mxu0 0.0
        %2635 = vmatprep.subr.mxu0 0.0
        %2636 = vmatpush1.msra.mxu0 0.0
        %2637 = vmatprep.subr.mxu0 0.0
        %2638 = vmatpush1.msra.mxu0 0.0
        %2639 = vmatprep.subr.mxu0 0.0
        %2640 = vmatpush1.msra.mxu0 0.0
        %2641 = vmatprep.subr.mxu0 0.0
        %2642 = vmatpush1.msra.mxu0 0.0
        %2643 = vmatprep.subr.mxu0 0.0
        %2644 = vmatpush1.msra.mxu0 0.0
        %2645 = vmatprep.subr.mxu0 0.0
        %2646 = vmatpush1.msra.mxu0 %v2610
        %2647 = vmatprep.subr.mxu0 0.0
        %2648 = vmatpush2.msra.mxu0 0.0
        %2649 = vmatprep.subr.mxu0 0.0
        %2650 = vmatpush2.msra.mxu0 0.0
        %2651 = vmatprep.subr.mxu0 0.0
        %2652 = vmatpush2.msra.mxu0 0.0
        %2653 = vmatprep.subr.mxu0 0.0
        %2654 = vmatpush2.msra.mxu0 0.0
        %2655 = vmatprep.subr.mxu0 0.0
        %2656 = vmatpush2.msra.mxu0 0.0
        %2657 = vmatprep.subr.mxu0 0.0
        %2658 = vmatpush2.msra.mxu0 0.0
        %2659 = vmatprep.subr.mxu0 0.0
        %2660 = vmatpush2.msra.mxu0 0.0
        %2661 = vmatprep.subr.mxu0 0.0
        %2662 = vmatpush2.msra.mxu0 0.0
        %2663 = vmatprep.subr.mxu0 0.0
        %2664 = vmatpush2.msra.mxu0 0.0
        %2665 = vmatprep.subr.mxu0 0.0
        %2666 = vmatpush2.msra.mxu0 0.0
        %2667 = vmatprep.subr.mxu0 0.0
        %2668 = vmatpush2.msra.mxu0 0.0
        %2669 = vmatprep.subr.mxu0 0.0
        %2670 = vmatpush2.msra.mxu0 0.0
        %2671 = vmatprep.subr.mxu0 0.0
        %2672 = vmatpush2.msra.mxu0 0.0
        %2673 = vmatprep.subr.mxu0 0.0
        %2674 = vmatpush2.msra.mxu0 0.0
        %2675 = vmatprep.subr.mxu0 0.0
        %2676 = vmatpush2.msra.mxu0 0.0
        %2677 = vmatprep.subr.mxu0 0.0
        %2678 = vmatpush2.msra.mxu0 0.0
        %2679 = vmatprep.mubr.f32.mxu0 0.0
        %2680 = vmatmul.mubr.f32.gmra.mxu0 %v2613
        %v2681 = vpop.f32.mrf.mxu0
        %v2682 = vadd.f32 0.0, %v2681
        %v2683 = vpop.f32.mrf.mxu0
        %2684 = vdwg.mxu0
        %2686 = vrot.lane.b32.xlu0 %v2606, 2
        %v2687 = vpop.permute.xlu0 %2686
        %2688 = vrot.lane.b32.xlu0 %v2607, 2
        %v2689 = vpop.permute.xlu0 %2688
        %v2690 = vsel %vm1335, %v2687, %v2689
        %v2693 = vsel %vm434, %v2604, 0
        %2695 = vmatprep.subr.mxu0 0.0
        %2696 = vmatpush1.msra.mxu0 0.0
        %2697 = vmatprep.subr.mxu0 0.0
        %2698 = vmatpush1.msra.mxu0 0.0
        %2699 = vmatprep.subr.mxu0 0.0
        %2700 = vmatpush1.msra.mxu0 0.0
        %2701 = vmatprep.subr.mxu0 0.0
        %2702 = vmatpush1.msra.mxu0 0.0
        %2703 = vmatprep.subr.mxu0 0.0
        %2704 = vmatpush1.msra.mxu0 0.0
        %2705 = vmatprep.subr.mxu0 0.0
        %2706 = vmatpush1.msra.mxu0 0.0
        %2707 = vmatprep.subr.mxu0 0.0
        %2708 = vmatpush1.msra.mxu0 0.0
        %2709 = vmatprep.subr.mxu0 0.0
        %2710 = vmatpush1.msra.mxu0 0.0
        %2711 = vmatprep.subr.mxu0 0.0
        %2712 = vmatpush1.msra.mxu0 0.0
        %2713 = vmatprep.subr.mxu0 0.0
        %2714 = vmatpush1.msra.mxu0 0.0
        %2715 = vmatprep.subr.mxu0 0.0
        %2716 = vmatpush1.msra.mxu0 0.0
        %2717 = vmatprep.subr.mxu0 0.0
        %2718 = vmatpush1.msra.mxu0 0.0
        %2719 = vmatprep.subr.mxu0 0.0
        %2720 = vmatpush1.msra.mxu0 0.0
        %2721 = vmatprep.subr.mxu0 0.0
        %2722 = vmatpush1.msra.mxu0 0.0
        %2723 = vmatprep.subr.mxu0 0.0
        %2724 = vmatpush1.msra.mxu0 0.0
        %2725 = vmatprep.subr.mxu0 0.0
        %2726 = vmatpush1.msra.mxu0 %v2690
        %2727 = vmatprep.subr.mxu0 0.0
        %2728 = vmatpush2.msra.mxu0 0.0
        %2729 = vmatprep.subr.mxu0 0.0
        %2730 = vmatpush2.msra.mxu0 0.0
        %2731 = vmatprep.subr.mxu0 0.0
        %2732 = vmatpush2.msra.mxu0 0.0
        %2733 = vmatprep.subr.mxu0 0.0
        %2734 = vmatpush2.msra.mxu0 0.0
        %2735 = vmatprep.subr.mxu0 0.0
        %2736 = vmatpush2.msra.mxu0 0.0
        %2737 = vmatprep.subr.mxu0 0.0
        %2738 = vmatpush2.msra.mxu0 0.0
        %2739 = vmatprep.subr.mxu0 0.0
        %2740 = vmatpush2.msra.mxu0 0.0
        %2741 = vmatprep.subr.mxu0 0.0
        %2742 = vmatpush2.msra.mxu0 0.0
        %2743 = vmatprep.subr.mxu0 0.0
        %2744 = vmatpush2.msra.mxu0 0.0
        %2745 = vmatprep.subr.mxu0 0.0
        %2746 = vmatpush2.msra.mxu0 0.0
        %2747 = vmatprep.subr.mxu0 0.0
        %2748 = vmatpush2.msra.mxu0 0.0
        %2749 = vmatprep.subr.mxu0 0.0
        %2750 = vmatpush2.msra.mxu0 0.0
        %2751 = vmatprep.subr.mxu0 0.0
        %2752 = vmatpush2.msra.mxu0 0.0
        %2753 = vmatprep.subr.mxu0 0.0
        %2754 = vmatpush2.msra.mxu0 0.0
        %2755 = vmatprep.subr.mxu0 0.0
        %2756 = vmatpush2.msra.mxu0 0.0
        %2757 = vmatprep.subr.mxu0 0.0
        %2758 = vmatpush2.msra.mxu0 0.0
        %2759 = vmatprep.mubr.f32.mxu0 0.0
        %2760 = vmatmul.mubr.f32.gmra.mxu0 %v2693
        %v2761 = vpop.f32.mrf.mxu0
        %v2762 = vadd.f32 %v2682, %v2761
        %v2763 = vpop.f32.mrf.mxu0
        %2764 = vdwg.mxu0
        %v2765 = vmax.f32 %v2762, 0.0
        %v2766 = vtanh.pop %v2762
        %v2767 = vmul.f32 %v2765, %v2766
        %s2768 = scalar_lea.vmem [#allocation5], 48
        %v2769 = vld [vmem:[%s2768] sm:$0xff]
        %s2770 = scalar_lea.vmem %s4, 48
        %v2771 = vld [vmem:[%s2770] sm:$0xff]
        %2773 = vset.pattern.permute.xlu0 0
        %2774 = vperm.xlu0 %2773, %v2771
        %v2775 = vpop.permute.xlu0 %2774
        %v2778 = vsel %vm434, %v2769, 0
        %2780 = vmatprep.subr.mxu0 0.0
        %2781 = vmatpush1.msra.mxu0 0.0
        %2782 = vmatprep.subr.mxu0 0.0
        %2783 = vmatpush1.msra.mxu0 0.0
        %2784 = vmatprep.subr.mxu0 0.0
        %2785 = vmatpush1.msra.mxu0 0.0
        %2786 = vmatprep.subr.mxu0 0.0
        %2787 = vmatpush1.msra.mxu0 0.0
        %2788 = vmatprep.subr.mxu0 0.0
        %2789 = vmatpush1.msra.mxu0 0.0
        %2790 = vmatprep.subr.mxu0 0.0
        %2791 = vmatpush1.msra.mxu0 0.0
        %2792 = vmatprep.subr.mxu0 0.0
        %2793 = vmatpush1.msra.mxu0 0.0
        %2794 = vmatprep.subr.mxu0 0.0
        %2795 = vmatpush1.msra.mxu0 0.0
        %2796 = vmatprep.subr.mxu0 0.0
        %2797 = vmatpush1.msra.mxu0 0.0
        %2798 = vmatprep.subr.mxu0 0.0
        %2799 = vmatpush1.msra.mxu0 0.0
        %2800 = vmatprep.subr.mxu0 0.0
        %2801 = vmatpush1.msra.mxu0 0.0
        %2802 = vmatprep.subr.mxu0 0.0
        %2803 = vmatpush1.msra.mxu0 0.0
        %2804 = vmatprep.subr.mxu0 0.0
        %2805 = vmatpush1.msra.mxu0 0.0
        %2806 = vmatprep.subr.mxu0 0.0
        %2807 = vmatpush1.msra.mxu0 0.0
        %2808 = vmatprep.subr.mxu0 0.0
        %2809 = vmatpush1.msra.mxu0 0.0
        %2810 = vmatprep.subr.mxu0 0.0
        %2811 = vmatpush1.msra.mxu0 %v2767
        %2812 = vmatprep.subr.mxu0 0.0
        %2813 = vmatpush2.msra.mxu0 0.0
        %2814 = vmatprep.subr.mxu0 0.0
        %2815 = vmatpush2.msra.mxu0 0.0
        %2816 = vmatprep.subr.mxu0 0.0
        %2817 = vmatpush2.msra.mxu0 0.0
        %2818 = vmatprep.subr.mxu0 0.0
        %2819 = vmatpush2.msra.mxu0 0.0
        %2820 = vmatprep.subr.mxu0 0.0
        %2821 = vmatpush2.msra.mxu0 0.0
        %2822 = vmatprep.subr.mxu0 0.0
        %2823 = vmatpush2.msra.mxu0 0.0
        %2824 = vmatprep.subr.mxu0 0.0
        %2825 = vmatpush2.msra.mxu0 0.0
        %2826 = vmatprep.subr.mxu0 0.0
        %2827 = vmatpush2.msra.mxu0 0.0
        %2828 = vmatprep.subr.mxu0 0.0
        %2829 = vmatpush2.msra.mxu0 0.0
        %2830 = vmatprep.subr.mxu0 0.0
        %2831 = vmatpush2.msra.mxu0 0.0
        %2832 = vmatprep.subr.mxu0 0.0
        %2833 = vmatpush2.msra.mxu0 0.0
        %2834 = vmatprep.subr.mxu0 0.0
        %2835 = vmatpush2.msra.mxu0 0.0
        %2836 = vmatprep.subr.mxu0 0.0
        %2837 = vmatpush2.msra.mxu0 0.0
        %2838 = vmatprep.subr.mxu0 0.0
        %2839 = vmatpush2.msra.mxu0 0.0
        %2840 = vmatprep.subr.mxu0 0.0
        %2841 = vmatpush2.msra.mxu0 0.0
        %2842 = vmatprep.subr.mxu0 0.0
        %2843 = vmatpush2.msra.mxu0 0.0
        %2844 = vmatprep.mubr.f32.mxu0 0.0
        %2845 = vmatmul.mubr.f32.gmra.mxu0 %v2778
        %v2846 = vpop.f32.mrf.mxu0
        %v2847 = vadd.f32 %v2775, %v2846
        %v2848 = vpop.f32.mrf.mxu0
        %2849 = vdwg.mxu0
        %2850 = vrot.lane.b32.xlu0 %v2607, 124
        %v2851 = vpop.permute.xlu0 %2850
        %v2853 = vadd.f32 %v2847, %v2851
        %s2854 = scalar_lea.vmem [#allocation7], 48
        %v2855 = vld [vmem:[%s2854] sm:$0xff]
        %2857 = vrot.lane.b32.xlu0 %v2767, 119
        %v2858 = vpop.permute.xlu0 %2857
        %v2861 = vsel %vm434, %v2855, 0
        %2863 = vmatprep.subr.mxu0 0.0
        %2864 = vmatpush1.msra.mxu0 0.0
        %2865 = vmatprep.subr.mxu0 0.0
        %2866 = vmatpush1.msra.mxu0 0.0
        %2867 = vmatprep.subr.mxu0 0.0
        %2868 = vmatpush1.msra.mxu0 0.0
        %2869 = vmatprep.subr.mxu0 0.0
        %2870 = vmatpush1.msra.mxu0 0.0
        %2871 = vmatprep.subr.mxu0 0.0
        %2872 = vmatpush1.msra.mxu0 0.0
        %2873 = vmatprep.subr.mxu0 0.0
        %2874 = vmatpush1.msra.mxu0 0.0
        %2875 = vmatprep.subr.mxu0 0.0
        %2876 = vmatpush1.msra.mxu0 0.0
        %2877 = vmatprep.subr.mxu0 0.0
        %2878 = vmatpush1.msra.mxu0 0.0
        %2879 = vmatprep.subr.mxu0 0.0
        %2880 = vmatpush1.msra.mxu0 0.0
        %2881 = vmatprep.subr.mxu0 0.0
        %2882 = vmatpush1.msra.mxu0 0.0
        %2883 = vmatprep.subr.mxu0 0.0
        %2884 = vmatpush1.msra.mxu0 0.0
        %2885 = vmatprep.subr.mxu0 0.0
        %2886 = vmatpush1.msra.mxu0 0.0
        %2887 = vmatprep.subr.mxu0 0.0
        %2888 = vmatpush1.msra.mxu0 0.0
        %2889 = vmatprep.subr.mxu0 0.0
        %2890 = vmatpush1.msra.mxu0 0.0
        %2891 = vmatprep.subr.mxu0 0.0
        %2892 = vmatpush1.msra.mxu0 0.0
        %2893 = vmatprep.subr.mxu0 0.0
        %2894 = vmatpush1.msra.mxu0 %v2858
        %2895 = vmatprep.subr.mxu0 0.0
        %2896 = vmatpush2.msra.mxu0 0.0
        %2897 = vmatprep.subr.mxu0 0.0
        %2898 = vmatpush2.msra.mxu0 0.0
        %2899 = vmatprep.subr.mxu0 0.0
        %2900 = vmatpush2.msra.mxu0 0.0
        %2901 = vmatprep.subr.mxu0 0.0
        %2902 = vmatpush2.msra.mxu0 0.0
        %2903 = vmatprep.subr.mxu0 0.0
        %2904 = vmatpush2.msra.mxu0 0.0
        %2905 = vmatprep.subr.mxu0 0.0
        %2906 = vmatpush2.msra.mxu0 0.0
        %2907 = vmatprep.subr.mxu0 0.0
        %2908 = vmatpush2.msra.mxu0 0.0
        %2909 = vmatprep.subr.mxu0 0.0
        %2910 = vmatpush2.msra.mxu0 0.0
        %2911 = vmatprep.subr.mxu0 0.0
        %2912 = vmatpush2.msra.mxu0 0.0
        %2913 = vmatprep.subr.mxu0 0.0
        %2914 = vmatpush2.msra.mxu0 0.0
        %2915 = vmatprep.subr.mxu0 0.0
        %2916 = vmatpush2.msra.mxu0 0.0
        %2917 = vmatprep.subr.mxu0 0.0
        %2918 = vmatpush2.msra.mxu0 0.0
        %2919 = vmatprep.subr.mxu0 0.0
        %2920 = vmatpush2.msra.mxu0 0.0
        %2921 = vmatprep.subr.mxu0 0.0
        %2922 = vmatpush2.msra.mxu0 0.0
        %2923 = vmatprep.subr.mxu0 0.0
        %2924 = vmatpush2.msra.mxu0 0.0
        %2925 = vmatprep.subr.mxu0 0.0
        %2926 = vmatpush2.msra.mxu0 0.0
        %2927 = vmatprep.mubr.f32.mxu0 0.0
        %2928 = vmatmul.mubr.f32.gmra.mxu0 %v2861
        %v2929 = vpop.f32.mrf.mxu0
        %v2930 = vadd.f32 0.0, %v2929
        %v2931 = vpop.f32.mrf.mxu0
        %2932 = vdwg.mxu0
        %v2933 = vadd.f32 %v2600, %v2930
        %s2934 = scalar_lea.vmem %s6, 48
        %v2935 = vld [vmem:[%s2934] sm:$0xff]
        %2937 = vset.pattern.permute.xlu0 0
        %2938 = vperm.xlu0 %2937, %v2935
        %v2939 = vpop.permute.xlu0 %2938
        %v2941 = vadd.f32 %v2933, %v2939
        %vm2942 = vcmask 859136
        %2943 = vst.msk [vmem:[#allocation2 + $0x8] sm:$0xff] %vm2942, %v2853
        %s2944 = scalar_lea.vmem %s2, 112
        %v2945 = vld [vmem:[%s2944] sm:$0xff]
        %v2946 = vld [vmem:[%s2944 + $0x8] sm:$0xff]
        %v2947 = vld [vmem:[#allocation2] sm:$0xff]
        %v2948 = vld [vmem:[#allocation2 + $0x8] sm:$0xff]
        %2950 = vrot.lane.b32.xlu0 %v2948, 124
        %v2951 = vpop.permute.xlu0 %2950
        %v2954 = vsel %vm434, %v2946, 0
        %2956 = vmatprep.subr.mxu0 0.0
        %2957 = vmatpush1.msra.mxu0 0.0
        %2958 = vmatprep.subr.mxu0 0.0
        %2959 = vmatpush1.msra.mxu0 0.0
        %2960 = vmatprep.subr.mxu0 0.0
        %2961 = vmatpush1.msra.mxu0 0.0
        %2962 = vmatprep.subr.mxu0 0.0
        %2963 = vmatpush1.msra.mxu0 0.0
        %2964 = vmatprep.subr.mxu0 0.0
        %2965 = vmatpush1.msra.mxu0 0.0
        %2966 = vmatprep.subr.mxu0 0.0
        %2967 = vmatpush1.msra.mxu0 0.0
        %2968 = vmatprep.subr.mxu0 0.0
        %2969 = vmatpush1.msra.mxu0 0.0
        %2970 = vmatprep.subr.mxu0 0.0
        %2971 = vmatpush1.msra.mxu0 0.0
        %2972 = vmatprep.subr.mxu0 0.0
        %2973 = vmatpush1.msra.mxu0 0.0
        %2974 = vmatprep.subr.mxu0 0.0
        %2975 = vmatpush1.msra.mxu0 0.0
        %2976 = vmatprep.subr.mxu0 0.0
        %2977 = vmatpush1.msra.mxu0 0.0
        %2978 = vmatprep.subr.mxu0 0.0
        %2979 = vmatpush1.msra.mxu0 0.0
        %2980 = vmatprep.subr.mxu0 0.0
        %2981 = vmatpush1.msra.mxu0 0.0
        %2982 = vmatprep.subr.mxu0 0.0
        %2983 = vmatpush1.msra.mxu0 0.0
        %2984 = vmatprep.subr.mxu0 0.0
        %2985 = vmatpush1.msra.mxu0 0.0
        %2986 = vmatprep.subr.mxu0 0.0
        %2987 = vmatpush1.msra.mxu0 %v2951
        %2988 = vmatprep.subr.mxu0 0.0
        %2989 = vmatpush2.msra.mxu0 0.0
        %2990 = vmatprep.subr.mxu0 0.0
        %2991 = vmatpush2.msra.mxu0 0.0
        %2992 = vmatprep.subr.mxu0 0.0
        %2993 = vmatpush2.msra.mxu0 0.0
        %2994 = vmatprep.subr.mxu0 0.0
        %2995 = vmatpush2.msra.mxu0 0.0
        %2996 = vmatprep.subr.mxu0 0.0
        %2997 = vmatpush2.msra.mxu0 0.0
        %2998 = vmatprep.subr.mxu0 0.0
        %2999 = vmatpush2.msra.mxu0 0.0
        %3000 = vmatprep.subr.mxu0 0.0
        %3001 = vmatpush2.msra.mxu0 0.0
        %3002 = vmatprep.subr.mxu0 0.0
        %3003 = vmatpush2.msra.mxu0 0.0
        %3004 = vmatprep.subr.mxu0 0.0
        %3005 = vmatpush2.msra.mxu0 0.0
        %3006 = vmatprep.subr.mxu0 0.0
        %3007 = vmatpush2.msra.mxu0 0.0
        %3008 = vmatprep.subr.mxu0 0.0
        %3009 = vmatpush2.msra.mxu0 0.0
        %3010 = vmatprep.subr.mxu0 0.0
        %3011 = vmatpush2.msra.mxu0 0.0
        %3012 = vmatprep.subr.mxu0 0.0
        %3013 = vmatpush2.msra.mxu0 0.0
        %3014 = vmatprep.subr.mxu0 0.0
        %3015 = vmatpush2.msra.mxu0 0.0
        %3016 = vmatprep.subr.mxu0 0.0
        %3017 = vmatpush2.msra.mxu0 0.0
        %3018 = vmatprep.subr.mxu0 0.0
        %3019 = vmatpush2.msra.mxu0 0.0
        %3020 = vmatprep.mubr.f32.mxu0 0.0
        %3021 = vmatmul.mubr.f32.gmra.mxu0 %v2954
        %v3022 = vpop.f32.mrf.mxu0
        %v3023 = vadd.f32 0.0, %v3022
        %v3024 = vpop.f32.mrf.mxu0
        %3025 = vdwg.mxu0
        %3027 = vrot.lane.b32.xlu0 %v2947, 4
        %v3028 = vpop.permute.xlu0 %3027
        %3029 = vrot.lane.b32.xlu0 %v2948, 4
        %v3030 = vpop.permute.xlu0 %3029
        %v3031 = vsel %vm1677, %v3028, %v3030
        %v3034 = vsel %vm434, %v2945, 0
        %3036 = vmatprep.subr.mxu0 0.0
        %3037 = vmatpush1.msra.mxu0 0.0
        %3038 = vmatprep.subr.mxu0 0.0
        %3039 = vmatpush1.msra.mxu0 0.0
        %3040 = vmatprep.subr.mxu0 0.0
        %3041 = vmatpush1.msra.mxu0 0.0
        %3042 = vmatprep.subr.mxu0 0.0
        %3043 = vmatpush1.msra.mxu0 0.0
        %3044 = vmatprep.subr.mxu0 0.0
        %3045 = vmatpush1.msra.mxu0 0.0
        %3046 = vmatprep.subr.mxu0 0.0
        %3047 = vmatpush1.msra.mxu0 0.0
        %3048 = vmatprep.subr.mxu0 0.0
        %3049 = vmatpush1.msra.mxu0 0.0
        %3050 = vmatprep.subr.mxu0 0.0
        %3051 = vmatpush1.msra.mxu0 0.0
        %3052 = vmatprep.subr.mxu0 0.0
        %3053 = vmatpush1.msra.mxu0 0.0
        %3054 = vmatprep.subr.mxu0 0.0
        %3055 = vmatpush1.msra.mxu0 0.0
        %3056 = vmatprep.subr.mxu0 0.0
        %3057 = vmatpush1.msra.mxu0 0.0
        %3058 = vmatprep.subr.mxu0 0.0
        %3059 = vmatpush1.msra.mxu0 0.0
        %3060 = vmatprep.subr.mxu0 0.0
        %3061 = vmatpush1.msra.mxu0 0.0
        %3062 = vmatprep.subr.mxu0 0.0
        %3063 = vmatpush1.msra.mxu0 0.0
        %3064 = vmatprep.subr.mxu0 0.0
        %3065 = vmatpush1.msra.mxu0 0.0
        %3066 = vmatprep.subr.mxu0 0.0
        %3067 = vmatpush1.msra.mxu0 %v3031
        %3068 = vmatprep.subr.mxu0 0.0
        %3069 = vmatpush2.msra.mxu0 0.0
        %3070 = vmatprep.subr.mxu0 0.0
        %3071 = vmatpush2.msra.mxu0 0.0
        %3072 = vmatprep.subr.mxu0 0.0
        %3073 = vmatpush2.msra.mxu0 0.0
        %3074 = vmatprep.subr.mxu0 0.0
        %3075 = vmatpush2.msra.mxu0 0.0
        %3076 = vmatprep.subr.mxu0 0.0
        %3077 = vmatpush2.msra.mxu0 0.0
        %3078 = vmatprep.subr.mxu0 0.0
        %3079 = vmatpush2.msra.mxu0 0.0
        %3080 = vmatprep.subr.mxu0 0.0
        %3081 = vmatpush2.msra.mxu0 0.0
        %3082 = vmatprep.subr.mxu0 0.0
        %3083 = vmatpush2.msra.mxu0 0.0
        %3084 = vmatprep.subr.mxu0 0.0
        %3085 = vmatpush2.msra.mxu0 0.0
        %3086 = vmatprep.subr.mxu0 0.0
        %3087 = vmatpush2.msra.mxu0 0.0
        %3088 = vmatprep.subr.mxu0 0.0
        %3089 = vmatpush2.msra.mxu0 0.0
        %3090 = vmatprep.subr.mxu0 0.0
        %3091 = vmatpush2.msra.mxu0 0.0
        %3092 = vmatprep.subr.mxu0 0.0
        %3093 = vmatpush2.msra.mxu0 0.0
        %3094 = vmatprep.subr.mxu0 0.0
        %3095 = vmatpush2.msra.mxu0 0.0
        %3096 = vmatprep.subr.mxu0 0.0
        %3097 = vmatpush2.msra.mxu0 0.0
        %3098 = vmatprep.subr.mxu0 0.0
        %3099 = vmatpush2.msra.mxu0 0.0
        %3100 = vmatprep.mubr.f32.mxu0 0.0
        %3101 = vmatmul.mubr.f32.gmra.mxu0 %v3034
        %v3102 = vpop.f32.mrf.mxu0
        %v3103 = vadd.f32 %v3023, %v3102
        %v3104 = vpop.f32.mrf.mxu0
        %3105 = vdwg.mxu0
        %v3106 = vmax.f32 %v3103, 0.0
        %v3107 = vtanh.pop %v3103
        %v3108 = vmul.f32 %v3106, %v3107
        %s3109 = scalar_lea.vmem [#allocation5], 56
        %v3110 = vld [vmem:[%s3109] sm:$0xff]
        %s3111 = scalar_lea.vmem %s4, 56
        %v3112 = vld [vmem:[%s3111] sm:$0xff]
        %3114 = vset.pattern.permute.xlu0 0
        %3115 = vperm.xlu0 %3114, %v3112
        %v3116 = vpop.permute.xlu0 %3115
        %v3119 = vsel %vm434, %v3110, 0
        %3121 = vmatprep.subr.mxu0 0.0
        %3122 = vmatpush1.msra.mxu0 0.0
        %3123 = vmatprep.subr.mxu0 0.0
        %3124 = vmatpush1.msra.mxu0 0.0
        %3125 = vmatprep.subr.mxu0 0.0
        %3126 = vmatpush1.msra.mxu0 0.0
        %3127 = vmatprep.subr.mxu0 0.0
        %3128 = vmatpush1.msra.mxu0 0.0
        %3129 = vmatprep.subr.mxu0 0.0
        %3130 = vmatpush1.msra.mxu0 0.0
        %3131 = vmatprep.subr.mxu0 0.0
        %3132 = vmatpush1.msra.mxu0 0.0
        %3133 = vmatprep.subr.mxu0 0.0
        %3134 = vmatpush1.msra.mxu0 0.0
        %3135 = vmatprep.subr.mxu0 0.0
        %3136 = vmatpush1.msra.mxu0 0.0
        %3137 = vmatprep.subr.mxu0 0.0
        %3138 = vmatpush1.msra.mxu0 0.0
        %3139 = vmatprep.subr.mxu0 0.0
        %3140 = vmatpush1.msra.mxu0 0.0
        %3141 = vmatprep.subr.mxu0 0.0
        %3142 = vmatpush1.msra.mxu0 0.0
        %3143 = vmatprep.subr.mxu0 0.0
        %3144 = vmatpush1.msra.mxu0 0.0
        %3145 = vmatprep.subr.mxu0 0.0
        %3146 = vmatpush1.msra.mxu0 0.0
        %3147 = vmatprep.subr.mxu0 0.0
        %3148 = vmatpush1.msra.mxu0 0.0
        %3149 = vmatprep.subr.mxu0 0.0
        %3150 = vmatpush1.msra.mxu0 0.0
        %3151 = vmatprep.subr.mxu0 0.0
        %3152 = vmatpush1.msra.mxu0 %v3108
        %3153 = vmatprep.subr.mxu0 0.0
        %3154 = vmatpush2.msra.mxu0 0.0
        %3155 = vmatprep.subr.mxu0 0.0
        %3156 = vmatpush2.msra.mxu0 0.0
        %3157 = vmatprep.subr.mxu0 0.0
        %3158 = vmatpush2.msra.mxu0 0.0
        %3159 = vmatprep.subr.mxu0 0.0
        %3160 = vmatpush2.msra.mxu0 0.0
        %3161 = vmatprep.subr.mxu0 0.0
        %3162 = vmatpush2.msra.mxu0 0.0
        %3163 = vmatprep.subr.mxu0 0.0
        %3164 = vmatpush2.msra.mxu0 0.0
        %3165 = vmatprep.subr.mxu0 0.0
        %3166 = vmatpush2.msra.mxu0 0.0
        %3167 = vmatprep.subr.mxu0 0.0
        %3168 = vmatpush2.msra.mxu0 0.0
        %3169 = vmatprep.subr.mxu0 0.0
        %3170 = vmatpush2.msra.mxu0 0.0
        %3171 = vmatprep.subr.mxu0 0.0
        %3172 = vmatpush2.msra.mxu0 0.0
        %3173 = vmatprep.subr.mxu0 0.0
        %3174 = vmatpush2.msra.mxu0 0.0
        %3175 = vmatprep.subr.mxu0 0.0
        %3176 = vmatpush2.msra.mxu0 0.0
        %3177 = vmatprep.subr.mxu0 0.0
        %3178 = vmatpush2.msra.mxu0 0.0
        %3179 = vmatprep.subr.mxu0 0.0
        %3180 = vmatpush2.msra.mxu0 0.0
        %3181 = vmatprep.subr.mxu0 0.0
        %3182 = vmatpush2.msra.mxu0 0.0
        %3183 = vmatprep.subr.mxu0 0.0
        %3184 = vmatpush2.msra.mxu0 0.0
        %3185 = vmatprep.mubr.f32.mxu0 0.0
        %3186 = vmatmul.mubr.f32.gmra.mxu0 %v3119
        %v3187 = vpop.f32.mrf.mxu0
        %v3188 = vadd.f32 %v3116, %v3187
        %v3189 = vpop.f32.mrf.mxu0
        %3190 = vdwg.mxu0
        %3191 = vrot.lane.b32.xlu0 %v2948, 120
        %v3192 = vpop.permute.xlu0 %3191
        %v3194 = vadd.f32 %v3188, %v3192
        %s3195 = scalar_lea.vmem [#allocation7], 56
        %v3196 = vld [vmem:[%s3195] sm:$0xff]
        %3198 = vrot.lane.b32.xlu0 %v3108, 127
        %v3199 = vpop.permute.xlu0 %3198
        %v3202 = vsel %vm434, %v3196, 0
        %3204 = vmatprep.subr.mxu0 0.0
        %3205 = vmatpush1.msra.mxu0 0.0
        %3206 = vmatprep.subr.mxu0 0.0
        %3207 = vmatpush1.msra.mxu0 0.0
        %3208 = vmatprep.subr.mxu0 0.0
        %3209 = vmatpush1.msra.mxu0 0.0
        %3210 = vmatprep.subr.mxu0 0.0
        %3211 = vmatpush1.msra.mxu0 0.0
        %3212 = vmatprep.subr.mxu0 0.0
        %3213 = vmatpush1.msra.mxu0 0.0
        %3214 = vmatprep.subr.mxu0 0.0
        %3215 = vmatpush1.msra.mxu0 0.0
        %3216 = vmatprep.subr.mxu0 0.0
        %3217 = vmatpush1.msra.mxu0 0.0
        %3218 = vmatprep.subr.mxu0 0.0
        %3219 = vmatpush1.msra.mxu0 0.0
        %3220 = vmatprep.subr.mxu0 0.0
        %3221 = vmatpush1.msra.mxu0 0.0
        %3222 = vmatprep.subr.mxu0 0.0
        %3223 = vmatpush1.msra.mxu0 0.0
        %3224 = vmatprep.subr.mxu0 0.0
        %3225 = vmatpush1.msra.mxu0 0.0
        %3226 = vmatprep.subr.mxu0 0.0
        %3227 = vmatpush1.msra.mxu0 0.0
        %3228 = vmatprep.subr.mxu0 0.0
        %3229 = vmatpush1.msra.mxu0 0.0
        %3230 = vmatprep.subr.mxu0 0.0
        %3231 = vmatpush1.msra.mxu0 0.0
        %3232 = vmatprep.subr.mxu0 0.0
        %3233 = vmatpush1.msra.mxu0 0.0
        %3234 = vmatprep.subr.mxu0 0.0
        %3235 = vmatpush1.msra.mxu0 %v3199
        %3236 = vmatprep.subr.mxu0 0.0
        %3237 = vmatpush2.msra.mxu0 0.0
        %3238 = vmatprep.subr.mxu0 0.0
        %3239 = vmatpush2.msra.mxu0 0.0
        %3240 = vmatprep.subr.mxu0 0.0
        %3241 = vmatpush2.msra.mxu0 0.0
        %3242 = vmatprep.subr.mxu0 0.0
        %3243 = vmatpush2.msra.mxu0 0.0
        %3244 = vmatprep.subr.mxu0 0.0
        %3245 = vmatpush2.msra.mxu0 0.0
        %3246 = vmatprep.subr.mxu0 0.0
        %3247 = vmatpush2.msra.mxu0 0.0
        %3248 = vmatprep.subr.mxu0 0.0
        %3249 = vmatpush2.msra.mxu0 0.0
        %3250 = vmatprep.subr.mxu0 0.0
        %3251 = vmatpush2.msra.mxu0 0.0
        %3252 = vmatprep.subr.mxu0 0.0
        %3253 = vmatpush2.msra.mxu0 0.0
        %3254 = vmatprep.subr.mxu0 0.0
        %3255 = vmatpush2.msra.mxu0 0.0
        %3256 = vmatprep.subr.mxu0 0.0
        %3257 = vmatpush2.msra.mxu0 0.0
        %3258 = vmatprep.subr.mxu0 0.0
        %3259 = vmatpush2.msra.mxu0 0.0
        %3260 = vmatprep.subr.mxu0 0.0
        %3261 = vmatpush2.msra.mxu0 0.0
        %3262 = vmatprep.subr.mxu0 0.0
        %3263 = vmatpush2.msra.mxu0 0.0
        %3264 = vmatprep.subr.mxu0 0.0
        %3265 = vmatpush2.msra.mxu0 0.0
        %3266 = vmatprep.subr.mxu0 0.0
        %3267 = vmatpush2.msra.mxu0 0.0
        %3268 = vmatprep.mubr.f32.mxu0 0.0
        %3269 = vmatmul.mubr.f32.gmra.mxu0 %v3202
        %v3270 = vpop.f32.mrf.mxu0
        %v3271 = vadd.f32 0.0, %v3270
        %v3272 = vpop.f32.mrf.mxu0
        %3273 = vdwg.mxu0
        %v3274 = vadd.f32 %v2941, %v3271
        %s3275 = scalar_lea.vmem %s6, 56
        %v3276 = vld [vmem:[%s3275] sm:$0xff]
        %3278 = vset.pattern.permute.xlu0 0
        %3279 = vperm.xlu0 %3278, %v3276
        %v3280 = vpop.permute.xlu0 %3279
        %v3282 = vadd.f32 %v3274, %v3280
        %vm3283 = vcmask 793600
        %3284 = vst.msk [vmem:[#allocation2 + $0x8] sm:$0xff] %vm3283, %v3194
        %v3285 = vmul.f32 %v3282, 0.125
        %v3286 = vld [vmem:[#allocation8] sm:$0xff]
        %v3287 = vmax.f32 %v3285, 0.0
        %v3289 = vsel %vm434, %v3286, 0
        %3291 = vmatprep.subr.mxu0 0.0
        %3292 = vmatpush1.msra.mxu0 0.0
        %3293 = vmatprep.subr.mxu0 0.0
        %3294 = vmatpush1.msra.mxu0 0.0
        %3295 = vmatprep.subr.mxu0 0.0
        %3296 = vmatpush1.msra.mxu0 0.0
        %3297 = vmatprep.subr.mxu0 0.0
        %3298 = vmatpush1.msra.mxu0 0.0
        %3299 = vmatprep.subr.mxu0 0.0
        %3300 = vmatpush1.msra.mxu0 0.0
        %3301 = vmatprep.subr.mxu0 0.0
        %3302 = vmatpush1.msra.mxu0 0.0
        %3303 = vmatprep.subr.mxu0 0.0
        %3304 = vmatpush1.msra.mxu0 0.0
        %3305 = vmatprep.subr.mxu0 0.0
        %3306 = vmatpush1.msra.mxu0 0.0
        %3307 = vmatprep.subr.mxu0 0.0
        %3308 = vmatpush1.msra.mxu0 0.0
        %3309 = vmatprep.subr.mxu0 0.0
        %3310 = vmatpush1.msra.mxu0 0.0
        %3311 = vmatprep.subr.mxu0 0.0
        %3312 = vmatpush1.msra.mxu0 0.0
        %3313 = vmatprep.subr.mxu0 0.0
        %3314 = vmatpush1.msra.mxu0 0.0
        %3315 = vmatprep.subr.mxu0 0.0
        %3316 = vmatpush1.msra.mxu0 0.0
        %3317 = vmatprep.subr.mxu0 0.0
        %3318 = vmatpush1.msra.mxu0 0.0
        %3319 = vmatprep.subr.mxu0 0.0
        %3320 = vmatpush1.msra.mxu0 0.0
        %3321 = vmatprep.subr.mxu0 0.0
        %3322 = vmatpush1.msra.mxu0 %v3287
        %3323 = vmatprep.subr.mxu0 0.0
        %3324 = vmatpush2.msra.mxu0 0.0
        %3325 = vmatprep.subr.mxu0 0.0
        %3326 = vmatpush2.msra.mxu0 0.0
        %3327 = vmatprep.subr.mxu0 0.0
        %3328 = vmatpush2.msra.mxu0 0.0
        %3329 = vmatprep.subr.mxu0 0.0
        %3330 = vmatpush2.msra.mxu0 0.0
        %3331 = vmatprep.subr.mxu0 0.0
        %3332 = vmatpush2.msra.mxu0 0.0
        %3333 = vmatprep.subr.mxu0 0.0
        %3334 = vmatpush2.msra.mxu0 0.0
        %3335 = vmatprep.subr.mxu0 0.0
        %3336 = vmatpush2.msra.mxu0 0.0
        %3337 = vmatprep.subr.mxu0 0.0
        %3338 = vmatpush2.msra.mxu0 0.0
        %3339 = vmatprep.subr.mxu0 0.0
        %3340 = vmatpush2.msra.mxu0 0.0
        %3341 = vmatprep.subr.mxu0 0.0
        %3342 = vmatpush2.msra.mxu0 0.0
        %3343 = vmatprep.subr.mxu0 0.0
        %3344 = vmatpush2.msra.mxu0 0.0
        %3345 = vmatprep.subr.mxu0 0.0
        %3346 = vmatpush2.msra.mxu0 0.0
        %3347 = vmatprep.subr.mxu0 0.0
        %3348 = vmatpush2.msra.mxu0 0.0
        %3349 = vmatprep.subr.mxu0 0.0
        %3350 = vmatpush2.msra.mxu0 0.0
        %3351 = vmatprep.subr.mxu0 0.0
        %3352 = vmatpush2.msra.mxu0 0.0
        %3353 = vmatprep.subr.mxu0 0.0
        %3354 = vmatpush2.msra.mxu0 0.0
        %3355 = vmatprep.mubr.f32.mxu0 0.0
        %3356 = vmatmul.mubr.f32.gmra.mxu0 %v3289
        %v3357 = vpop.f32.mrf.mxu0
        %v3358 = vadd.f32 0.0, %v3357
        %v3359 = vpop.f32.mrf.mxu0
        %3360 = vdwg.mxu0
        %v3361 = vmax.f32 %v3358, 0.0
        %3362 = vmatprep.subr.mxu0 0.0
        %3363 = vmatpush1.msra.mxu0 0.0
        %3364 = vmatprep.subr.mxu0 0.0
        %3365 = vmatpush1.msra.mxu0 0.0
        %3366 = vmatprep.subr.mxu0 0.0
        %3367 = vmatpush1.msra.mxu0 0.0
        %3368 = vmatprep.subr.mxu0 0.0
        %3369 = vmatpush1.msra.mxu0 0.0
        %3370 = vmatprep.subr.mxu0 0.0
        %3371 = vmatpush1.msra.mxu0 0.0
        %3372 = vmatprep.subr.mxu0 0.0
        %3373 = vmatpush1.msra.mxu0 0.0
        %3374 = vmatprep.subr.mxu0 0.0
        %3375 = vmatpush1.msra.mxu0 0.0
        %3376 = vmatprep.subr.mxu0 0.0
        %3377 = vmatpush1.msra.mxu0 0.0
        %3378 = vmatprep.subr.mxu0 0.0
        %3379 = vmatpush1.msra.mxu0 0.0
        %3380 = vmatprep.subr.mxu0 0.0
        %3381 = vmatpush1.msra.mxu0 0.0
        %3382 = vmatprep.subr.mxu0 0.0
        %3383 = vmatpush1.msra.mxu0 0.0
        %3384 = vmatprep.subr.mxu0 0.0
        %3385 = vmatpush1.msra.mxu0 0.0
        %3386 = vmatprep.subr.mxu0 0.0
        %3387 = vmatpush1.msra.mxu0 0.0
        %3388 = vmatprep.subr.mxu0 0.0
        %3389 = vmatpush1.msra.mxu0 0.0
        %3390 = vmatprep.subr.mxu0 0.0
        %3391 = vmatpush1.msra.mxu0 0.0
        %3392 = vmatprep.subr.mxu0 0.0
        %3393 = vmatpush1.msra.mxu0 %v3361
        %3394 = vmatprep.subr.mxu0 0.0
        %3395 = vmatpush2.msra.mxu0 0.0
        %3396 = vmatprep.subr.mxu0 0.0
        %3397 = vmatpush2.msra.mxu0 0.0
        %3398 = vmatprep.subr.mxu0 0.0
        %3399 = vmatpush2.msra.mxu0 0.0
        %3400 = vmatprep.subr.mxu0 0.0
        %3401 = vmatpush2.msra.mxu0 0.0
        %3402 = vmatprep.subr.mxu0 0.0
        %3403 = vmatpush2.msra.mxu0 0.0
        %3404 = vmatprep.subr.mxu0 0.0
        %3405 = vmatpush2.msra.mxu0 0.0
        %3406 = vmatprep.subr.mxu0 0.0
        %3407 = vmatpush2.msra.mxu0 0.0
        %3408 = vmatprep.subr.mxu0 0.0
        %3409 = vmatpush2.msra.mxu0 0.0
        %3410 = vmatprep.subr.mxu0 0.0
        %3411 = vmatpush2.msra.mxu0 0.0
        %3412 = vmatprep.subr.mxu0 0.0
        %3413 = vmatpush2.msra.mxu0 0.0
        %3414 = vmatprep.subr.mxu0 0.0
        %3415 = vmatpush2.msra.mxu0 0.0
        %3416 = vmatprep.subr.mxu0 0.0
        %3417 = vmatpush2.msra.mxu0 0.0
        %3418 = vmatprep.subr.mxu0 0.0
        %3419 = vmatpush2.msra.mxu0 0.0
        %3420 = vmatprep.subr.mxu0 0.0
        %3421 = vmatpush2.msra.mxu0 0.0
        %3422 = vmatprep.subr.mxu0 0.0
        %3423 = vmatpush2.msra.mxu0 0.0
        %3424 = vmatprep.subr.mxu0 0.0
        %3425 = vmatpush2.msra.mxu0 0.0
        %3426 = vmatprep.mubr.f32.mxu0 0.0
        %3427 = vmatmul.mubr.f32.gmra.mxu0 %v3289
        %v3428 = vpop.f32.mrf.mxu0
        %v3429 = vadd.f32 0.0, %v3428
        %v3430 = vpop.f32.mrf.mxu0
        %3431 = vdwg.mxu0
        %v3432 = vld [vmem:[#allocation10] sm:$0x1f]
        %v3433 = vld [vmem:[%s9] sm:$0x1f]
        %3435 = vset.pattern.permute.xlu0 0
        %3436 = vperm.xlu0 %3435, %v3433
        %v3437 = vpop.permute.xlu0 %3436
        %v3440 = vsel %vm434, %v3432, 0
        %3442 = vmatprep.subr.mxu0 0.0
        %3443 = vmatpush1.msra.mxu0 0.0
        %3444 = vmatprep.subr.mxu0 0.0
        %3445 = vmatpush1.msra.mxu0 0.0
        %3446 = vmatprep.subr.mxu0 0.0
        %3447 = vmatpush1.msra.mxu0 0.0
        %3448 = vmatprep.subr.mxu0 0.0
        %3449 = vmatpush1.msra.mxu0 0.0
        %3450 = vmatprep.subr.mxu0 0.0
        %3451 = vmatpush1.msra.mxu0 0.0
        %3452 = vmatprep.subr.mxu0 0.0
        %3453 = vmatpush1.msra.mxu0 0.0
        %3454 = vmatprep.subr.mxu0 0.0
        %3455 = vmatpush1.msra.mxu0 0.0
        %3456 = vmatprep.subr.mxu0 0.0
        %3457 = vmatpush1.msra.mxu0 0.0
        %3458 = vmatprep.subr.mxu0 0.0
        %3459 = vmatpush1.msra.mxu0 0.0
        %3460 = vmatprep.subr.mxu0 0.0
        %3461 = vmatpush1.msra.mxu0 0.0
        %3462 = vmatprep.subr.mxu0 0.0
        %3463 = vmatpush1.msra.mxu0 0.0
        %3464 = vmatprep.subr.mxu0 0.0
        %3465 = vmatpush1.msra.mxu0 0.0
        %3466 = vmatprep.subr.mxu0 0.0
        %3467 = vmatpush1.msra.mxu0 0.0
        %3468 = vmatprep.subr.mxu0 0.0
        %3469 = vmatpush1.msra.mxu0 0.0
        %3470 = vmatprep.subr.mxu0 0.0
        %3471 = vmatpush1.msra.mxu0 0.0
        %3472 = vmatprep.subr.mxu0 0.0
        %3473 = vmatpush1.msra.mxu0 %v3429
        %3474 = vmatprep.subr.mxu0 0.0
        %3475 = vmatpush2.msra.mxu0 0.0
        %3476 = vmatprep.subr.mxu0 0.0
        %3477 = vmatpush2.msra.mxu0 0.0
        %3478 = vmatprep.subr.mxu0 0.0
        %3479 = vmatpush2.msra.mxu0 0.0
        %3480 = vmatprep.subr.mxu0 0.0
        %3481 = vmatpush2.msra.mxu0 0.0
        %3482 = vmatprep.subr.mxu0 0.0
        %3483 = vmatpush2.msra.mxu0 0.0
        %3484 = vmatprep.subr.mxu0 0.0
        %3485 = vmatpush2.msra.mxu0 0.0
        %3486 = vmatprep.subr.mxu0 0.0
        %3487 = vmatpush2.msra.mxu0 0.0
        %3488 = vmatprep.subr.mxu0 0.0
        %3489 = vmatpush2.msra.mxu0 0.0
        %3490 = vmatprep.subr.mxu0 0.0
        %3491 = vmatpush2.msra.mxu0 0.0
        %3492 = vmatprep.subr.mxu0 0.0
        %3493 = vmatpush2.msra.mxu0 0.0
        %3494 = vmatprep.subr.mxu0 0.0
        %3495 = vmatpush2.msra.mxu0 0.0
        %3496 = vmatprep.subr.mxu0 0.0
        %3497 = vmatpush2.msra.mxu0 0.0
        %3498 = vmatprep.subr.mxu0 0.0
        %3499 = vmatpush2.msra.mxu0 0.0
        %3500 = vmatprep.subr.mxu0 0.0
        %3501 = vmatpush2.msra.mxu0 0.0
        %3502 = vmatprep.subr.mxu0 0.0
        %3503 = vmatpush2.msra.mxu0 0.0
        %3504 = vmatprep.subr.mxu0 0.0
        %3505 = vmatpush2.msra.mxu0 0.0
        %3506 = vmatprep.mubr.f32.mxu0 0.0
        %3507 = vmatmul.mubr.f32.gmra.mxu0 %v3440
        %v3508 = vpop.f32.mrf.mxu0
        %v3509 = vadd.f32 %v3437, %v3508
        %v3510 = vpop.f32.mrf.mxu0
        %3511 = vdwg.mxu0
        %vm3512 = vcmask 782336
        %v3513 = vsel %vm3512, %v3509, -inf
        %3514 = vmax.xlane.f32.xlu0 %v3513
        %v3515 = vpop.xlane.xlu0 %3514
        %v3516 = vsub.f32 %v3509, %v3515
        %v3517 = vmul.f32 %v3516, 1.442695
        %v3518 = vpow.pop %v3517
        %v3519 = vsel %vm3512, %v3518, 0.0
        %3520 = vadd.xlane.f32.xlu0 %v3519
        %v3521 = vpop.xlane.xlu0 %3520
        %v3522 = vrcp.pop %v3521
        %v3523 = vmul.f32 %v3518, %v3522
        %3524 = vst.msk [vmem:[%s423] sm:$0x1f] %vm3512, %v3523
        %p3525 = scmp.lt.s32.totalorder %s24, 1
        %s3526 = scalar_select %p3525, %s24, 1
        %s3527 = smul.addr %s3526, 8
        %s3528 = scalar_lea.vmem %s10, %s3527
        // Predicated region
        $region81: #{tpu_custom_call.1} parent=59 // pred_check
          %p3529 = pneg %p257
        $region82: #{tpu_custom_call.1} parent=59 // pred_check_branch
          %3531 = sbr.rel (%p3529) target = $region84
        $region83: #{tpu_custom_call.1} parent=59 // pred_region
          _
        $region84: #{tpu_custom_call.1} parent=59 // pred_fallthru
          _
      $region60: #{tpu_custom_call.1} parent=5 // pred_fallthru
        _
      %p3532 = scmp.le.s32.totalorder 2, %s19
      // Predicated region
      $region85: #{tpu_custom_call.1} parent=5 // pred_check
        %p3533 = pneg %p3532
      $region86: #{tpu_custom_call.1} parent=5 // pred_check_branch
        %3535 = sbr.rel (%p3533) target = $region88
      $region87: #{tpu_custom_call.1} parent=5 // pred_region
        %s3536 = ssub.s32 %s19, 2
        // Predicated region
        $region89: #{tpu_custom_call.1} parent=87 // pred_check
          %p3537 = pneg %p263
        $region90: #{tpu_custom_call.1} parent=87 // pred_check_branch
          %3539 = sbr.rel (%p3537) target = $region92
        $region91: #{tpu_custom_call.1} parent=87 // pred_region
          %p3540 = scmp.lt.s32.totalorder %s25, 1
          %s3541 = scalar_select %p3540, %s25, 1
          %s3542 = smul.addr %s3541, 8
          %s3543 = scalar_lea.vmem %s10, %s3542
        $region92: #{tpu_custom_call.1} parent=87 // pred_fallthru
          _
      $region88: #{tpu_custom_call.1} parent=5 // pred_fallthru
        _
    $region6: #{tpu_custom_call.1} parent=1 // loop_footer
      %s23 = sadd.s32 1, %s19
    $region7: #{tpu_custom_call.1} parent=1 // loop_footer_branch
      %18 = sbr.rel target = $region3
    $region8: #{tpu_custom_call.1} parent=1 // loop_exit
      _
    %3544 = vsyncpa [#allocation4], 1
    %s3545 = scalar_lea.sflag [#allocation4], 1
    %3546 = vsyncpa %s3545, 1
    %3547 = vsyncpa [#allocation6], 1
    %3548 = vsyncpa [#allocation9], 1

</llo_original>
